<compile_context>
chip_gen: v7x
topology: tpu7x:2x2x1
jax: 0.10.0
libtpu: 0.0.40
codegen_flags: <defaults>
</compile_context>

<pallas_src>
import numpy as np

import jax
import jax.numpy as jnp
from jax.experimental import pallas as pl
from jax.experimental.pallas import tpu as pltpu


# ------------------------------------------------------------------
# gate-layout helpers (PyTorch gate order [i, f, g, o], each H lanes)
# ------------------------------------------------------------------
def _gate_vectors(h):
    """Per-lane (pre_scale, post_scale, post_offset) for the fused-tanh trick:
    sigmoid(x) = 0.5*tanh(0.5*x) + 0.5 for i/f/o lanes, plain tanh for g lanes.
    The pre_scale is folded into the weights, not applied at runtime."""
    half = np.full(h, 0.5, np.float32)
    one = np.full(h, 1.0, np.float32)
    zero = np.zeros(h, np.float32)
    pre = np.concatenate([half, half, one, half])
    post_s = np.concatenate([half, half, one, half])
    post_o = np.concatenate([half, half, zero, half])
    return pre, post_s, post_o


def _blockdiag(a, b):
    ra, ca = a.shape
    rb, cb = b.shape
    out = np.zeros((ra + rb, ca + cb), np.float32)
    out[:ra, :ca] = a
    out[ra:, ca:] = b
    return out


def _prep_stream(layers_raw):
    """PyTorch-layout (w_ih, w_hh, b_ih, b_hh) per layer -> kernel layout:
    transposed to (Din,4H)/(H,4H), b_ih+b_hh folded, sigmoid pre-scale folded."""
    out = []
    for (w_ih, w_hh, b_ih, b_hh) in layers_raw:
        h = int(np.asarray(w_hh).shape[1])
        pre, _, _ = _gate_vectors(h)
        wih = np.asarray(w_ih, np.float32).T * pre[None, :]       # (Din, 4H)
        whh = np.asarray(w_hh, np.float32).T * pre[None, :]       # (H,   4H)
        b = ((np.asarray(b_ih, np.float32) +
              np.asarray(b_hh, np.float32)) * pre)[None, :]       # (1,   4H)
        out.append({'wih': wih, 'whh': whh, 'b': b, 'h': h})
    return out


# ------------------------------------------------------------------
# one-time parameter preparation (host side, outside jit)
# ------------------------------------------------------------------
def prepare_params(raw_params, fusion_type='mean', concat_score=0.5):
    if fusion_type == 'mean':
        alphas = (0.5, 0.5)
    elif fusion_type == 'sum':
        alphas = (float(concat_score), 1.0 - float(concat_score))
    elif fusion_type == 'only_sk':
        alphas = (0.0, 1.0)
    else:  # None / 'only_embd'
        alphas = (1.0, 0.0)
    active = (alphas[0] != 0.0, alphas[1] != 0.0)

    s0 = _prep_stream(raw_params['lstm0'])
    s1 = _prep_stream(raw_params['lstm1'])
    heads = []
    for (w, b) in (raw_params['lin0'], raw_params['lin1']):
        heads.append((np.asarray(w, np.float32).T,                 # (H, C)
                      np.asarray(b, np.float32)[None, :]))         # (1, C)

    L0, L1 = len(s0), len(s1)
    H0, H1 = s0[0]['h'], s1[0]['h']
    C = heads[0][0].shape[1]

    def solo_block(stream):
        arrs = [stream[0]['wih'], stream[0]['b'], stream[0]['whh']]
        for layer in stream[1:]:
            arrs.append(np.concatenate([layer['wih'], layer['whh']], axis=0))
            arrs.append(layer['b'])
        _, ps, po = _gate_vectors(stream[0]['h'])
        arrs.extend([ps[None, :], po[None, :]])
        return arrs

    plan = {'alphas': alphas, 'active': active, 'C': int(C)}

    if active[0] and active[1] and L0 == L1:
        plan['mode'] = 'fused'
        plan['L'] = L0
        plan['H'] = (H0, H1)
        arrays = [s0[0]['wih'], s0[0]['b'], s1[0]['wih'], s1[0]['b'],
                  _blockdiag(s0[0]['whh'], s1[0]['whh'])]
        for l in range(1, L0):
            stk0 = np.concatenate([s0[l]['wih'], s0[l]['whh']], axis=0)
            stk1 = np.concatenate([s1[l]['wih'], s1[l]['whh']], axis=0)
            arrays.append(_blockdiag(stk0, stk1))
            arrays.append(np.concatenate([s0[l]['b'], s1[l]['b']], axis=-1))
        _, ps0, po0 = _gate_vectors(H0)
        _, ps1, po1 = _gate_vectors(H1)
        arrays.append(np.concatenate([ps0, ps1])[None, :])
        arrays.append(np.concatenate([po0, po1])[None, :])
        w_head = np.concatenate([alphas[0] * heads[0][0],
                                 alphas[1] * heads[1][0]], axis=0)   # (H0+H1, C)
        b_head = alphas[0] * heads[0][1] + alphas[1] * heads[1][1]   # (1, C)
        arrays.extend([w_head, b_head])
    elif active[0] != active[1]:
        s_idx = 0 if active[0] else 1
        stream = s0 if s_idx == 0 else s1
        plan['mode'] = 'solo'
        plan['stream'] = s_idx
        plan['L'] = len(stream)
        arrays = solo_block(stream)
        a = alphas[s_idx]
        arrays.extend([a * heads[s_idx][0], a * heads[s_idx][1]])
    else:
        # both active but different layer counts -> run both solo in one kernel
        plan['mode'] = 'two_solo'
        plan['L'] = (L0, L1)
        arrays = solo_block(s0) + solo_block(s1)
        w_head = np.concatenate([alphas[0] * heads[0][0],
                                 alphas[1] * heads[1][0]], axis=0)
        b_head = alphas[0] * heads[0][1] + alphas[1] * heads[1][1]
        arrays.extend([w_head, b_head])

    return {'plan': plan,
            'arrays': tuple(jnp.asarray(a, jnp.float32) for a in arrays)}


# ------------------------------------------------------------------
# in-kernel building blocks (traced inside the Pallas kernel)
# ------------------------------------------------------------------
def _activate(z, post_s, post_o):
    # z already carries the 0.5 pre-scale on sigmoid lanes (folded into weights)
    return jnp.tanh(z) * post_s + post_o


def _cell(act, c, h_size, off):
    i = act[:, off + 0 * h_size: off + 1 * h_size]
    f = act[:, off + 1 * h_size: off + 2 * h_size]
    g = act[:, off + 2 * h_size: off + 3 * h_size]
    o = act[:, off + 3 * h_size: off + 4 * h_size]
    c_new = f * c + i * g
    h_new = o * jnp.tanh(c_new)
    return h_new, c_new


def _project_inputs(x_tm, wih, b):
    """Hoisted layer-0 projection: x_tm (T,B,Din) -> (T*B, 4H), pre-scaled."""
    T, B, Din = x_tm.shape
    return jnp.dot(x_tm.reshape(T * B, Din), wih,
                   preferred_element_type=jnp.float32) + b


def _run_solo(x_tm, layer_ws, post_s, post_o):
    """Single-stream stacked LSTM, wavefront layers, fused-tanh gates.
    layer_ws[0] = (wih, b, whh); layer_ws[l>=1] = (wstk, b).
    Returns the last layer's final cell state (B, H)."""
    T, B, _ = x_tm.shape
    H = layer_ws[0][2].shape[0]
    L = len(layer_ws)
    gx = _project_inputs(x_tm, layer_ws[0][0], layer_ws[0][1])     # (T*B, 4H)
    h = [jnp.zeros((B, H), jnp.float32) for _ in range(L)]
    c = [jnp.zeros((B, H), jnp.float32) for _ in range(L)]
    for t in range(T):
        z = gx[t * B:(t + 1) * B, :] + jnp.dot(
            h[0], layer_ws[0][2], preferred_element_type=jnp.float32)
        act = _activate(z, post_s, post_o)
        h[0], c[0] = _cell(act, c[0], H, 0)
        for l in range(1, L):
            wstk, b = layer_ws[l]
            inp = jnp.concatenate([h[l - 1], h[l]], axis=-1)       # (B, 2H)
            z = jnp.dot(inp, wstk, preferred_element_type=jnp.float32) + b
            act = _activate(z, post_s, post_o)
            h[l], c[l] = _cell(act, c[l], H, 0)
    return c[L - 1]


def _run_fused(x0_tm, x1_tm, w0_l0, b0_l0, w1_l0, b1_l0, whhblk0,
               deep, post_s, post_o, H0, H1, L):
    """Both streams, block-diagonally fused per timestep; the longer stream's
    tail runs solo on slices of the fused weights.  Returns (c0_last, c1_last)."""
    T0, B, _ = x0_tm.shape
    T1 = x1_tm.shape[0]
    Tmin = min(T0, T1)
    off1 = 4 * H0                                                  # stream-1 lane offset

    gx0 = _project_inputs(x0_tm, w0_l0, b0_l0)                     # (T0*B, 4H0)
    gx1 = _project_inputs(x1_tm, w1_l0, b1_l0)                     # (T1*B, 4H1)
    gx_cat = jnp.concatenate([gx0[:Tmin * B, :], gx1[:Tmin * B, :]], axis=-1)

    h0 = [jnp.zeros((B, H0), jnp.float32) for _ in range(L)]
    c0 = [jnp.zeros((B, H0), jnp.float32) for _ in range(L)]
    h1 = [jnp.zeros((B, H1), jnp.float32) for _ in range(L)]
    c1 = [jnp.zeros((B, H1), jnp.float32) for _ in range(L)]

    # ---- shared timesteps: one block-diagonal matmul per (layer, step) ----
    for t in range(Tmin):
        rec = jnp.concatenate([h0[0], h1[0]], axis=-1)             # (B, H0+H1)
        z = gx_cat[t * B:(t + 1) * B, :] + jnp.dot(
            rec, whhblk0, preferred_element_type=jnp.float32)      # (B, 4H0+4H1)
        act = _activate(z, post_s, post_o)
        h0[0], c0[0] = _cell(act, c0[0], H0, 0)
        h1[0], c1[0] = _cell(act, c1[0], H1, off1)
        for l in range(1, L):
            wstk, bcat = deep[l - 1]
            inp = jnp.concatenate([h0[l - 1], h0[l], h1[l - 1], h1[l]], axis=-1)
            z = jnp.dot(inp, wstk, preferred_element_type=jnp.float32) + bcat
            act = _activate(z, post_s, post_o)
            h0[l], c0[l] = _cell(act, c0[l], H0, 0)
            h1[l], c1[l] = _cell(act, c1[l], H1, off1)

    # ---- tail: longer stream finishes on aligned slices of the fused weights ----
    if T0 != T1:
        if T0 > T1:
            gx_long, h, c, H, Tlong = gx0, h0, c0, H0, T0
            roff_hh, roff_stk, coff = 0, 0, 0
        else:
            gx_long, h, c, H, Tlong = gx1, h1, c1, H1, T1
            roff_hh, roff_stk, coff = H0, 2 * H0, 4 * H0
        whh_s = whhblk0[roff_hh:roff_hh + H, coff:coff + 4 * H]
        ps_s = post_s[:, coff:coff + 4 * H]
        po_s = post_o[:, coff:coff + 4 * H]
        deep_s = [(wstk[roff_stk:roff_stk + 2 * H, coff:coff + 4 * H],
                   bcat[:, coff:coff + 4 * H]) for (wstk, bcat) in deep]
        for t in range(Tmin, Tlong):
            z = gx_long[t * B:(t + 1) * B, :] + jnp.dot(
                h[0], whh_s, preferred_element_type=jnp.float32)
            act = _activate(z, ps_s, po_s)
            h[0], c[0] = _cell(act, c[0], H, 0)
            for l in range(1, L):
                wstk_s, b_s = deep_s[l - 1]
                inp = jnp.concatenate([h[l - 1], h[l]], axis=-1)
                z = jnp.dot(inp, wstk_s, preferred_element_type=jnp.float32) + b_s
                act = _activate(z, ps_s, po_s)
                h[l], c[l] = _cell(act, c[l], H, 0)

    return c0[L - 1], c1[L - 1]


# ------------------------------------------------------------------
# fused-model kernel
# ------------------------------------------------------------------
def _build_kernel(plan):
    mode = plan['mode']

    def kernel(*refs):
        out_ref = refs[-1]
        vals = [r[...] for r in refs[:-1]]
        it = iter(vals)

        if mode == 'fused':
            L = plan['L']
            H0, H1 = plan['H']
            x0 = next(it)
            x1 = next(it)
            w0_l0 = next(it); b0_l0 = next(it)
            w1_l0 = next(it); b1_l0 = next(it)
            whhblk0 = next(it)
            deep = [(next(it), next(it)) for _ in range(L - 1)]
            post_s = next(it); post_o = next(it)
            w_head = next(it); b_head = next(it)
            c0, c1 = _run_fused(x0, x1, w0_l0, b0_l0, w1_l0, b1_l0,
                                whhblk0, deep, post_s, post_o, H0, H1, L)
            feat = jnp.concatenate([c0, c1], axis=-1)
        elif mode == 'solo':
            L = plan['L']
            x = next(it)
            layer_ws = [(next(it), next(it), next(it))]
            for _ in range(L - 1):
                layer_ws.append((next(it), next(it)))
            post_s = next(it); post_o = next(it)
            w_head = next(it); b_head = next(it)
            feat = _run_solo(x, layer_ws, post_s, post_o)
        else:  # 'two_solo'
            L0, L1 = plan['L']
            x0 = next(it)
            x1 = next(it)

            def read_solo(L):
                lw = [(next(it), next(it), next(it))]
                for _ in range(L - 1):
                    lw.append((next(it), next(it)))
                return lw, next(it), next(it)

            lw0, ps0, po0 = read_solo(L0)
            lw1, ps1, po1 = read_solo(L1)
            w_head = next(it); b_head = next(it)
            c0 = _run_solo(x0, lw0, ps0, po0)
            c1 = _run_solo(x1, lw1, ps1, po1)
            feat = jnp.concatenate([c0, c1], axis=-1)

        # fused linear heads + alpha blend (weights pre-scaled/stacked)
        y = jnp.dot(feat, w_head, preferred_element_type=jnp.float32) + b_head
        out_ref[...] = y.astype(out_ref.dtype)

    return kernel


def make_forward(params):
    """Returns a jitted forward(x0, x1) -> (B, num_class) logits."""
    plan = params['plan']
    weights = params['arrays']
    kernel = _build_kernel(plan)
    mode = plan['mode']
    C = plan['C']

    @jax.jit
    def forward(x0, x1):
        B = x0.shape[0]
        x0_tm = jnp.transpose(x0, (1, 0, 2)).astype(jnp.float32)   # (T0, B, D0)
        x1_tm = jnp.transpose(x1, (1, 0, 2)).astype(jnp.float32)   # (T1, B, D1)

        if mode == 'solo':
            inputs = ((x0_tm if plan['stream'] == 0 else x1_tm),) + weights
        else:
            inputs = (x0_tm, x1_tm) + weights

        vmem = pl.BlockSpec(memory_space=pltpu.MemorySpace.VMEM)
        return pl.pallas_call(
            kernel,
            out_shape=jax.ShapeDtypeStruct((B, C), jnp.float32),
            in_specs=[vmem] * len(inputs),
            out_specs=vmem,
        )(*inputs)

    return forward


# ------------------------------------------------------------------
# parameter creation (PyTorch-layout, uniform init like torch defaults)
# ------------------------------------------------------------------
def init_lstm_params(key, input_size, hidden, num_layers):
    layers = []
    bound = 1.0 / (hidden ** 0.5)
    for l in range(num_layers):
        in_sz = input_size if l == 0 else hidden
        key, k1, k2, k3, k4 = jax.random.split(key, 5)
        w_ih = jax.random.uniform(k1, (4 * hidden, in_sz), jnp.float32, -bound, bound)
        w_hh = jax.random.uniform(k2, (4 * hidden, hidden), jnp.float32, -bound, bound)
        b_ih = jax.random.uniform(k3, (4 * hidden,), jnp.float32, -bound, bound)
        b_hh = jax.random.uniform(k4, (4 * hidden,), jnp.float32, -bound, bound)
        layers.append((w_ih, w_hh, b_ih, b_hh))
    return key, layers


def init_linear_params(key, in_features, out_features):
    bound = 1.0 / (in_features ** 0.5)
    key, k1, k2 = jax.random.split(key, 3)
    w = jax.random.uniform(k1, (out_features, in_features), jnp.float32, -bound, bound)
    b = jax.random.uniform(k2, (out_features,), jnp.float32, -bound, bound)
    return key, (w, b)


# ------------------------------------------------------------------
# pure-JAX reference (PyTorch-faithful, inference: dropout is a no-op)
# ------------------------------------------------------------------
def _ref_lstm_final_cell(x, layers):
    B = x.shape[0]
    h_in = x
    c = None
    for (w_ih, w_hh, b_ih, b_hh) in layers:
        H = w_hh.shape[1]
        h = jnp.zeros((B, H), jnp.float32)
        c = jnp.zeros((B, H), jnp.float32)
        outs = []
        for t in range(h_in.shape[1]):
            g = h_in[:, t] @ w_ih.T + b_ih + h @ w_hh.T + b_hh
            i = jax.nn.sigmoid(g[:, :H])
            f = jax.nn.sigmoid(g[:, H:2 * H])
            gg = jnp.tanh(g[:, 2 * H:3 * H])
            o = jax.nn.sigmoid(g[:, 3 * H:])
            c = f * c + i * gg
            h = o * jnp.tanh(c)
            outs.append(h)
        h_in = jnp.stack(outs, axis=1)
    return c


def _ref_forward(x0, x1, raw_params, fusion_type='mean', concat_score=0.5):
    c0 = _ref_lstm_final_cell(x0, raw_params['lstm0'])
    c1 = _ref_lstm_final_cell(x1, raw_params['lstm1'])
    w0, b0 = raw_params['lin0']
    w1, b1 = raw_params['lin1']
    y0 = c0 @ w0.T + b0
    y1 = c1 @ w1.T + b1
    if fusion_type == 'sum':
        return concat_score * y0 + (1.0 - concat_score) * y1
    if fusion_type == 'mean':
        return (y0 + y1) / 2.0
    if fusion_type == 'only_sk':
        return y1
    return y0


# ------------------------------------------------------------------
if __name__ == "__main__":
    # Module config: input_len=[8, 12], hidden_size=[32, 32], num_layers=[2, 2],
    # num_class=10, fusion_type='mean'.
    B, T0, T1 = 4, 8, 6
    INPUT_LEN = (8, 12)
    HIDDEN = (32, 32)
    NUM_LAYERS = (2, 2)
    NUM_CLASS = 10

    key = jax.random.PRNGKey(0)
    key, lstm0 = init_lstm_params(key, INPUT_LEN[0], HIDDEN[0], NUM_LAYERS[0])
    key, lstm1 = init_lstm_params(key, INPUT_LEN[1], HIDDEN[1], NUM_LAYERS[1])
    key, lin0 = init_linear_params(key, HIDDEN[0], NUM_CLASS)
    key, lin1 = init_linear_params(key, HIDDEN[1], NUM_CLASS)
    raw_params = {'lstm0': lstm0, 'lstm1': lstm1, 'lin0': lin0, 'lin1': lin1}

    key, kx0, kx1 = jax.random.split(key, 3)
    x0 = jax.random.normal(kx0, (B, T0, INPUT_LEN[0]), jnp.float32)  # batch_first
    x1 = jax.random.normal(kx1, (B, T1, INPUT_LEN[1]), jnp.float32)

    # --- fused two-stream path (module config: fusion_type='mean') ---
    params = prepare_params(raw_params, fusion_type='mean')
    forward = make_forward(params)
    y = jax.block_until_ready(forward(x0, x1))
    y_ref = _ref_forward(x0, x1, raw_params, fusion_type='mean')
    assert y.shape == (B, NUM_CLASS)
    assert jnp.allclose(y, y_ref, atol=1e-4, rtol=1e-4), \
        f"mean: max err {jnp.max(jnp.abs(y - y_ref))}"

    # --- statically-skipped-stream path (fusion_type='only_sk') ---
    params_sk = prepare_params(raw_params, fusion_type='only_sk')
    forward_sk = make_forward(params_sk)
    y_sk = jax.block_until_ready(forward_sk(x0, x1))
    y_sk_ref = _ref_forward(x0, x1, raw_params, fusion_type='only_sk')
    assert jnp.allclose(y_sk, y_sk_ref, atol=1e-4, rtol=1e-4), \
        f"only_sk: max err {jnp.max(jnp.abs(y_sk - y_sk_ref))}"

    print("KERNEL_OK")
</pallas_src>

<mosaic_0001>
module attributes {stable_mosaic.version = 11 : i64} {
  func.func @kernel(%arg0: memref<8x4x8xf32, #tpu.memory_space<vmem>>, %arg1: memref<6x4x12xf32, #tpu.memory_space<vmem>>, %arg2: memref<8x128xf32, #tpu.memory_space<vmem>>, %arg3: memref<1x128xf32, #tpu.memory_space<vmem>>, %arg4: memref<12x128xf32, #tpu.memory_space<vmem>>, %arg5: memref<1x128xf32, #tpu.memory_space<vmem>>, %arg6: memref<64x256xf32, #tpu.memory_space<vmem>>, %arg7: memref<128x256xf32, #tpu.memory_space<vmem>>, %arg8: memref<1x256xf32, #tpu.memory_space<vmem>>, %arg9: memref<1x256xf32, #tpu.memory_space<vmem>>, %arg10: memref<1x256xf32, #tpu.memory_space<vmem>>, %arg11: memref<64x10xf32, #tpu.memory_space<vmem>>, %arg12: memref<1x10xf32, #tpu.memory_space<vmem>>, %arg13: memref<4x10xf32, #tpu.memory_space<vmem>>) attributes {dimension_semantics = [], scalar_prefetch = 0 : i64, scratch_operands = 0 : i64, tpu.core_type = #tpu.core_type<tc>} {
    %c0 = arith.constant 0 : index
    %c0_0 = arith.constant 0 : index
    %c0_1 = arith.constant 0 : index
    %0 = vector.load %arg0[%c0, %c0_0, %c0_1] : memref<8x4x8xf32, #tpu.memory_space<vmem>>, vector<8x4x8xf32>
    %c0_2 = arith.constant 0 : index
    %c0_3 = arith.constant 0 : index
    %c0_4 = arith.constant 0 : index
    %1 = vector.load %arg1[%c0_2, %c0_3, %c0_4] : memref<6x4x12xf32, #tpu.memory_space<vmem>>, vector<6x4x12xf32>
    %c0_5 = arith.constant 0 : index
    %c0_6 = arith.constant 0 : index
    %2 = vector.load %arg2[%c0_5, %c0_6] : memref<8x128xf32, #tpu.memory_space<vmem>>, vector<8x128xf32>
    %c0_7 = arith.constant 0 : index
    %c0_8 = arith.constant 0 : index
    %3 = vector.load %arg3[%c0_7, %c0_8] : memref<1x128xf32, #tpu.memory_space<vmem>>, vector<1x128xf32>
    %c0_9 = arith.constant 0 : index
    %c0_10 = arith.constant 0 : index
    %4 = vector.load %arg4[%c0_9, %c0_10] : memref<12x128xf32, #tpu.memory_space<vmem>>, vector<12x128xf32>
    %c0_11 = arith.constant 0 : index
    %c0_12 = arith.constant 0 : index
    %5 = vector.load %arg5[%c0_11, %c0_12] : memref<1x128xf32, #tpu.memory_space<vmem>>, vector<1x128xf32>
    %c0_13 = arith.constant 0 : index
    %c0_14 = arith.constant 0 : index
    %6 = vector.load %arg6[%c0_13, %c0_14] : memref<64x256xf32, #tpu.memory_space<vmem>>, vector<64x256xf32>
    %c0_15 = arith.constant 0 : index
    %c0_16 = arith.constant 0 : index
    %7 = vector.load %arg7[%c0_15, %c0_16] : memref<128x256xf32, #tpu.memory_space<vmem>>, vector<128x256xf32>
    %c0_17 = arith.constant 0 : index
    %c0_18 = arith.constant 0 : index
    %8 = vector.load %arg8[%c0_17, %c0_18] : memref<1x256xf32, #tpu.memory_space<vmem>>, vector<1x256xf32>
    %c0_19 = arith.constant 0 : index
    %c0_20 = arith.constant 0 : index
    %9 = vector.load %arg9[%c0_19, %c0_20] : memref<1x256xf32, #tpu.memory_space<vmem>>, vector<1x256xf32>
    %c0_21 = arith.constant 0 : index
    %c0_22 = arith.constant 0 : index
    %10 = vector.load %arg10[%c0_21, %c0_22] : memref<1x256xf32, #tpu.memory_space<vmem>>, vector<1x256xf32>
    %c0_23 = arith.constant 0 : index
    %c0_24 = arith.constant 0 : index
    %11 = vector.load %arg11[%c0_23, %c0_24] : memref<64x10xf32, #tpu.memory_space<vmem>>, vector<64x10xf32>
    %c0_25 = arith.constant 0 : index
    %c0_26 = arith.constant 0 : index
    %12 = vector.load %arg12[%c0_25, %c0_26] : memref<1x10xf32, #tpu.memory_space<vmem>>, vector<1x10xf32>
    %13 = vector.shape_cast %0 : vector<8x4x8xf32> to vector<32x8xf32>
    %cst = arith.constant dense<0.000000e+00> : vector<32x128xf32>
    %14 = tpu.matmul %13, %2, %cst {dimension_numbers = #tpu.dot_dimension_numbers<[1], [0], [0], [1], [0, 0, 1, 1], [], []>} : vector<32x8xf32>, vector<8x128xf32>, vector<32x128xf32> -> vector<32x128xf32>
    %15 = vector.broadcast %3 : vector<1x128xf32> to vector<32x128xf32>
    %16 = arith.addf %14, %15 : vector<32x128xf32>
    %17 = vector.shape_cast %1 : vector<6x4x12xf32> to vector<24x12xf32>
    %cst_27 = arith.constant dense<0.000000e+00> : vector<24x128xf32>
    %18 = tpu.matmul %17, %4, %cst_27 {dimension_numbers = #tpu.dot_dimension_numbers<[1], [0], [0], [1], [0, 0, 1, 1], [], []>} : vector<24x12xf32>, vector<12x128xf32>, vector<24x128xf32> -> vector<24x128xf32>
    %19 = vector.broadcast %5 : vector<1x128xf32> to vector<24x128xf32>
    %20 = arith.addf %18, %19 : vector<24x128xf32>
    %21 = vector.extract_strided_slice %16 {offsets = [0, 0], sizes = [24, 128], strides = [1, 1]} : vector<32x128xf32> to vector<24x128xf32>
    %22 = tpu.concatenate %21, %20 in 1 : vector<24x128xf32>, vector<24x128xf32> -> vector<24x256xf32>
    %cst_28 = arith.constant 0.000000e+00 : f32
    %23 = vector.broadcast %cst_28 : f32 to vector<4x32xf32>
    %cst_29 = arith.constant 0.000000e+00 : f32
    %24 = vector.broadcast %cst_29 : f32 to vector<4x32xf32>
    %cst_30 = arith.constant 0.000000e+00 : f32
    %25 = vector.broadcast %cst_30 : f32 to vector<4x32xf32>
    %cst_31 = arith.constant 0.000000e+00 : f32
    %26 = vector.broadcast %cst_31 : f32 to vector<4x32xf32>
    %cst_32 = arith.constant 0.000000e+00 : f32
    %27 = vector.broadcast %cst_32 : f32 to vector<4x32xf32>
    %cst_33 = arith.constant 0.000000e+00 : f32
    %28 = vector.broadcast %cst_33 : f32 to vector<4x32xf32>
    %cst_34 = arith.constant 0.000000e+00 : f32
    %29 = vector.broadcast %cst_34 : f32 to vector<4x32xf32>
    %cst_35 = arith.constant 0.000000e+00 : f32
    %30 = vector.broadcast %cst_35 : f32 to vector<4x32xf32>
    %31 = tpu.concatenate %23, %27 in 1 : vector<4x32xf32>, vector<4x32xf32> -> vector<4x64xf32>
    %32 = vector.extract_strided_slice %22 {offsets = [0, 0], sizes = [4, 256], strides = [1, 1]} : vector<24x256xf32> to vector<4x256xf32>
    %cst_36 = arith.constant dense<0.000000e+00> : vector<4x256xf32>
    %33 = tpu.matmul %31, %6, %cst_36 {dimension_numbers = #tpu.dot_dimension_numbers<[1], [0], [0], [1], [0, 0, 1, 1], [], []>} : vector<4x64xf32>, vector<64x256xf32>, vector<4x256xf32> -> vector<4x256xf32>
    %34 = arith.addf %32, %33 : vector<4x256xf32>
    %35 = math.tanh %34 : vector<4x256xf32>
    %36 = vector.broadcast %9 : vector<1x256xf32> to vector<4x256xf32>
    %37 = arith.mulf %35, %36 : vector<4x256xf32>
    %38 = vector.broadcast %10 : vector<1x256xf32> to vector<4x256xf32>
    %39 = arith.addf %37, %38 : vector<4x256xf32>
    %40 = vector.extract_strided_slice %39 {offsets = [0, 0], sizes = [4, 32], strides = [1, 1]} : vector<4x256xf32> to vector<4x32xf32>
    %41 = vector.extract_strided_slice %39 {offsets = [0, 32], sizes = [4, 32], strides = [1, 1]} : vector<4x256xf32> to vector<4x32xf32>
    %42 = vector.extract_strided_slice %39 {offsets = [0, 64], sizes = [4, 32], strides = [1, 1]} : vector<4x256xf32> to vector<4x32xf32>
    %43 = vector.extract_strided_slice %39 {offsets = [0, 96], sizes = [4, 32], strides = [1, 1]} : vector<4x256xf32> to vector<4x32xf32>
    %44 = arith.mulf %41, %25 : vector<4x32xf32>
    %45 = arith.mulf %40, %42 : vector<4x32xf32>
    %46 = arith.addf %44, %45 : vector<4x32xf32>
    %47 = math.tanh %46 : vector<4x32xf32>
    %48 = arith.mulf %43, %47 : vector<4x32xf32>
    %49 = vector.extract_strided_slice %39 {offsets = [0, 128], sizes = [4, 32], strides = [1, 1]} : vector<4x256xf32> to vector<4x32xf32>
    %50 = vector.extract_strided_slice %39 {offsets = [0, 160], sizes = [4, 32], strides = [1, 1]} : vector<4x256xf32> to vector<4x32xf32>
    %51 = vector.extract_strided_slice %39 {offsets = [0, 192], sizes = [4, 32], strides = [1, 1]} : vector<4x256xf32> to vector<4x32xf32>
    %52 = vector.extract_strided_slice %39 {offsets = [0, 224], sizes = [4, 32], strides = [1, 1]} : vector<4x256xf32> to vector<4x32xf32>
    %53 = arith.mulf %50, %29 : vector<4x32xf32>
    %54 = arith.mulf %49, %51 : vector<4x32xf32>
    %55 = arith.addf %53, %54 : vector<4x32xf32>
    %56 = math.tanh %55 : vector<4x32xf32>
    %57 = arith.mulf %52, %56 : vector<4x32xf32>
    %58 = tpu.concatenate %48, %24, %57, %28 in 1 : vector<4x32xf32>, vector<4x32xf32>, vector<4x32xf32>, vector<4x32xf32> -> vector<4x128xf32>
    %cst_37 = arith.constant dense<0.000000e+00> : vector<4x256xf32>
    %59 = tpu.matmul %58, %7, %cst_37 {dimension_numbers = #tpu.dot_dimension_numbers<[1], [0], [0], [1], [0, 0, 1, 1], [], []>} : vector<4x128xf32>, vector<128x256xf32>, vector<4x256xf32> -> vector<4x256xf32>
    %60 = vector.broadcast %8 : vector<1x256xf32> to vector<4x256xf32>
    %61 = arith.addf %59, %60 : vector<4x256xf32>
    %62 = math.tanh %61 : vector<4x256xf32>
    %63 = vector.broadcast %9 : vector<1x256xf32> to vector<4x256xf32>
    %64 = arith.mulf %62, %63 : vector<4x256xf32>
    %65 = vector.broadcast %10 : vector<1x256xf32> to vector<4x256xf32>
    %66 = arith.addf %64, %65 : vector<4x256xf32>
    %67 = vector.extract_strided_slice %66 {offsets = [0, 0], sizes = [4, 32], strides = [1, 1]} : vector<4x256xf32> to vector<4x32xf32>
    %68 = vector.extract_strided_slice %66 {offsets = [0, 32], sizes = [4, 32], strides = [1, 1]} : vector<4x256xf32> to vector<4x32xf32>
    %69 = vector.extract_strided_slice %66 {offsets = [0, 64], sizes = [4, 32], strides = [1, 1]} : vector<4x256xf32> to vector<4x32xf32>
    %70 = vector.extract_strided_slice %66 {offsets = [0, 96], sizes = [4, 32], strides = [1, 1]} : vector<4x256xf32> to vector<4x32xf32>
    %71 = arith.mulf %68, %26 : vector<4x32xf32>
    %72 = arith.mulf %67, %69 : vector<4x32xf32>
    %73 = arith.addf %71, %72 : vector<4x32xf32>
    %74 = math.tanh %73 : vector<4x32xf32>
    %75 = arith.mulf %70, %74 : vector<4x32xf32>
    %76 = vector.extract_strided_slice %66 {offsets = [0, 128], sizes = [4, 32], strides = [1, 1]} : vector<4x256xf32> to vector<4x32xf32>
    %77 = vector.extract_strided_slice %66 {offsets = [0, 160], sizes = [4, 32], strides = [1, 1]} : vector<4x256xf32> to vector<4x32xf32>
    %78 = vector.extract_strided_slice %66 {offsets = [0, 192], sizes = [4, 32], strides = [1, 1]} : vector<4x256xf32> to vector<4x32xf32>
    %79 = vector.extract_strided_slice %66 {offsets = [0, 224], sizes = [4, 32], strides = [1, 1]} : vector<4x256xf32> to vector<4x32xf32>
    %80 = arith.mulf %77, %30 : vector<4x32xf32>
    %81 = arith.mulf %76, %78 : vector<4x32xf32>
    %82 = arith.addf %80, %81 : vector<4x32xf32>
    %83 = math.tanh %82 : vector<4x32xf32>
    %84 = arith.mulf %79, %83 : vector<4x32xf32>
    %85 = tpu.concatenate %48, %57 in 1 : vector<4x32xf32>, vector<4x32xf32> -> vector<4x64xf32>
    %86 = vector.extract_strided_slice %22 {offsets = [4, 0], sizes = [4, 256], strides = [1, 1]} : vector<24x256xf32> to vector<4x256xf32>
    %cst_38 = arith.constant dense<0.000000e+00> : vector<4x256xf32>
    %87 = tpu.matmul %85, %6, %cst_38 {dimension_numbers = #tpu.dot_dimension_numbers<[1], [0], [0], [1], [0, 0, 1, 1], [], []>} : vector<4x64xf32>, vector<64x256xf32>, vector<4x256xf32> -> vector<4x256xf32>
    %88 = arith.addf %86, %87 : vector<4x256xf32>
    %89 = math.tanh %88 : vector<4x256xf32>
    %90 = vector.broadcast %9 : vector<1x256xf32> to vector<4x256xf32>
    %91 = arith.mulf %89, %90 : vector<4x256xf32>
    %92 = vector.broadcast %10 : vector<1x256xf32> to vector<4x256xf32>
    %93 = arith.addf %91, %92 : vector<4x256xf32>
    %94 = vector.extract_strided_slice %93 {offsets = [0, 0], sizes = [4, 32], strides = [1, 1]} : vector<4x256xf32> to vector<4x32xf32>
    %95 = vector.extract_strided_slice %93 {offsets = [0, 32], sizes = [4, 32], strides = [1, 1]} : vector<4x256xf32> to vector<4x32xf32>
    %96 = vector.extract_strided_slice %93 {offsets = [0, 64], sizes = [4, 32], strides = [1, 1]} : vector<4x256xf32> to vector<4x32xf32>
    %97 = vector.extract_strided_slice %93 {offsets = [0, 96], sizes = [4, 32], strides = [1, 1]} : vector<4x256xf32> to vector<4x32xf32>
    %98 = arith.mulf %95, %46 : vector<4x32xf32>
    %99 = arith.mulf %94, %96 : vector<4x32xf32>
    %100 = arith.addf %98, %99 : vector<4x32xf32>
    %101 = math.tanh %100 : vector<4x32xf32>
    %102 = arith.mulf %97, %101 : vector<4x32xf32>
    %103 = vector.extract_strided_slice %93 {offsets = [0, 128], sizes = [4, 32], strides = [1, 1]} : vector<4x256xf32> to vector<4x32xf32>
    %104 = vector.extract_strided_slice %93 {offsets = [0, 160], sizes = [4, 32], strides = [1, 1]} : vector<4x256xf32> to vector<4x32xf32>
    %105 = vector.extract_strided_slice %93 {offsets = [0, 192], sizes = [4, 32], strides = [1, 1]} : vector<4x256xf32> to vector<4x32xf32>
    %106 = vector.extract_strided_slice %93 {offsets = [0, 224], sizes = [4, 32], strides = [1, 1]} : vector<4x256xf32> to vector<4x32xf32>
    %107 = arith.mulf %104, %55 : vector<4x32xf32>
    %108 = arith.mulf %103, %105 : vector<4x32xf32>
    %109 = arith.addf %107, %108 : vector<4x32xf32>
    %110 = math.tanh %109 : vector<4x32xf32>
    %111 = arith.mulf %106, %110 : vector<4x32xf32>
    %112 = tpu.concatenate %102, %75, %111, %84 in 1 : vector<4x32xf32>, vector<4x32xf32>, vector<4x32xf32>, vector<4x32xf32> -> vector<4x128xf32>
    %cst_39 = arith.constant dense<0.000000e+00> : vector<4x256xf32>
    %113 = tpu.matmul %112, %7, %cst_39 {dimension_numbers = #tpu.dot_dimension_numbers<[1], [0], [0], [1], [0, 0, 1, 1], [], []>} : vector<4x128xf32>, vector<128x256xf32>, vector<4x256xf32> -> vector<4x256xf32>
    %114 = vector.broadcast %8 : vector<1x256xf32> to vector<4x256xf32>
    %115 = arith.addf %113, %114 : vector<4x256xf32>
    %116 = math.tanh %115 : vector<4x256xf32>
    %117 = vector.broadcast %9 : vector<1x256xf32> to vector<4x256xf32>
    %118 = arith.mulf %116, %117 : vector<4x256xf32>
    %119 = vector.broadcast %10 : vector<1x256xf32> to vector<4x256xf32>
    %120 = arith.addf %118, %119 : vector<4x256xf32>
    %121 = vector.extract_strided_slice %120 {offsets = [0, 0], sizes = [4, 32], strides = [1, 1]} : vector<4x256xf32> to vector<4x32xf32>
    %122 = vector.extract_strided_slice %120 {offsets = [0, 32], sizes = [4, 32], strides = [1, 1]} : vector<4x256xf32> to vector<4x32xf32>
    %123 = vector.extract_strided_slice %120 {offsets = [0, 64], sizes = [4, 32], strides = [1, 1]} : vector<4x256xf32> to vector<4x32xf32>
    %124 = vector.extract_strided_slice %120 {offsets = [0, 96], sizes = [4, 32], strides = [1, 1]} : vector<4x256xf32> to vector<4x32xf32>
    %125 = arith.mulf %122, %73 : vector<4x32xf32>
    %126 = arith.mulf %121, %123 : vector<4x32xf32>
    %127 = arith.addf %125, %126 : vector<4x32xf32>
    %128 = math.tanh %127 : vector<4x32xf32>
    %129 = arith.mulf %124, %128 : vector<4x32xf32>
    %130 = vector.extract_strided_slice %120 {offsets = [0, 128], sizes = [4, 32], strides = [1, 1]} : vector<4x256xf32> to vector<4x32xf32>
    %131 = vector.extract_strided_slice %120 {offsets = [0, 160], sizes = [4, 32], strides = [1, 1]} : vector<4x256xf32> to vector<4x32xf32>
    %132 = vector.extract_strided_slice %120 {offsets = [0, 192], sizes = [4, 32], strides = [1, 1]} : vector<4x256xf32> to vector<4x32xf32>
    %133 = vector.extract_strided_slice %120 {offsets = [0, 224], sizes = [4, 32], strides = [1, 1]} : vector<4x256xf32> to vector<4x32xf32>
    %134 = arith.mulf %131, %82 : vector<4x32xf32>
    %135 = arith.mulf %130, %132 : vector<4x32xf32>
    %136 = arith.addf %134, %135 : vector<4x32xf32>
    %137 = math.tanh %136 : vector<4x32xf32>
    %138 = arith.mulf %133, %137 : vector<4x32xf32>
    %139 = tpu.concatenate %102, %111 in 1 : vector<4x32xf32>, vector<4x32xf32> -> vector<4x64xf32>
    %140 = vector.extract_strided_slice %22 {offsets = [8, 0], sizes = [4, 256], strides = [1, 1]} : vector<24x256xf32> to vector<4x256xf32>
    %cst_40 = arith.constant dense<0.000000e+00> : vector<4x256xf32>
    %141 = tpu.matmul %139, %6, %cst_40 {dimension_numbers = #tpu.dot_dimension_numbers<[1], [0], [0], [1], [0, 0, 1, 1], [], []>} : vector<4x64xf32>, vector<64x256xf32>, vector<4x256xf32> -> vector<4x256xf32>
    %142 = arith.addf %140, %141 : vector<4x256xf32>
    %143 = math.tanh %142 : vector<4x256xf32>
    %144 = vector.broadcast %9 : vector<1x256xf32> to vector<4x256xf32>
    %145 = arith.mulf %143, %144 : vector<4x256xf32>
    %146 = vector.broadcast %10 : vector<1x256xf32> to vector<4x256xf32>
    %147 = arith.addf %145, %146 : vector<4x256xf32>
    %148 = vector.extract_strided_slice %147 {offsets = [0, 0], sizes = [4, 32], strides = [1, 1]} : vector<4x256xf32> to vector<4x32xf32>
    %149 = vector.extract_strided_slice %147 {offsets = [0, 32], sizes = [4, 32], strides = [1, 1]} : vector<4x256xf32> to vector<4x32xf32>
    %150 = vector.extract_strided_slice %147 {offsets = [0, 64], sizes = [4, 32], strides = [1, 1]} : vector<4x256xf32> to vector<4x32xf32>
    %151 = vector.extract_strided_slice %147 {offsets = [0, 96], sizes = [4, 32], strides = [1, 1]} : vector<4x256xf32> to vector<4x32xf32>
    %152 = arith.mulf %149, %100 : vector<4x32xf32>
    %153 = arith.mulf %148, %150 : vector<4x32xf32>
    %154 = arith.addf %152, %153 : vector<4x32xf32>
    %155 = math.tanh %154 : vector<4x32xf32>
    %156 = arith.mulf %151, %155 : vector<4x32xf32>
    %157 = vector.extract_strided_slice %147 {offsets = [0, 128], sizes = [4, 32], strides = [1, 1]} : vector<4x256xf32> to vector<4x32xf32>
    %158 = vector.extract_strided_slice %147 {offsets = [0, 160], sizes = [4, 32], strides = [1, 1]} : vector<4x256xf32> to vector<4x32xf32>
    %159 = vector.extract_strided_slice %147 {offsets = [0, 192], sizes = [4, 32], strides = [1, 1]} : vector<4x256xf32> to vector<4x32xf32>
    %160 = vector.extract_strided_slice %147 {offsets = [0, 224], sizes = [4, 32], strides = [1, 1]} : vector<4x256xf32> to vector<4x32xf32>
    %161 = arith.mulf %158, %109 : vector<4x32xf32>
    %162 = arith.mulf %157, %159 : vector<4x32xf32>
    %163 = arith.addf %161, %162 : vector<4x32xf32>
    %164 = math.tanh %163 : vector<4x32xf32>
    %165 = arith.mulf %160, %164 : vector<4x32xf32>
    %166 = tpu.concatenate %156, %129, %165, %138 in 1 : vector<4x32xf32>, vector<4x32xf32>, vector<4x32xf32>, vector<4x32xf32> -> vector<4x128xf32>
    %cst_41 = arith.constant dense<0.000000e+00> : vector<4x256xf32>
    %167 = tpu.matmul %166, %7, %cst_41 {dimension_numbers = #tpu.dot_dimension_numbers<[1], [0], [0], [1], [0, 0, 1, 1], [], []>} : vector<4x128xf32>, vector<128x256xf32>, vector<4x256xf32> -> vector<4x256xf32>
    %168 = vector.broadcast %8 : vector<1x256xf32> to vector<4x256xf32>
    %169 = arith.addf %167, %168 : vector<4x256xf32>
    %170 = math.tanh %169 : vector<4x256xf32>
    %171 = vector.broadcast %9 : vector<1x256xf32> to vector<4x256xf32>
    %172 = arith.mulf %170, %171 : vector<4x256xf32>
    %173 = vector.broadcast %10 : vector<1x256xf32> to vector<4x256xf32>
    %174 = arith.addf %172, %173 : vector<4x256xf32>
    %175 = vector.extract_strided_slice %174 {offsets = [0, 0], sizes = [4, 32], strides = [1, 1]} : vector<4x256xf32> to vector<4x32xf32>
    %176 = vector.extract_strided_slice %174 {offsets = [0, 32], sizes = [4, 32], strides = [1, 1]} : vector<4x256xf32> to vector<4x32xf32>
    %177 = vector.extract_strided_slice %174 {offsets = [0, 64], sizes = [4, 32], strides = [1, 1]} : vector<4x256xf32> to vector<4x32xf32>
    %178 = vector.extract_strided_slice %174 {offsets = [0, 96], sizes = [4, 32], strides = [1, 1]} : vector<4x256xf32> to vector<4x32xf32>
    %179 = arith.mulf %176, %127 : vector<4x32xf32>
    %180 = arith.mulf %175, %177 : vector<4x32xf32>
    %181 = arith.addf %179, %180 : vector<4x32xf32>
    %182 = math.tanh %181 : vector<4x32xf32>
    %183 = arith.mulf %178, %182 : vector<4x32xf32>
    %184 = vector.extract_strided_slice %174 {offsets = [0, 128], sizes = [4, 32], strides = [1, 1]} : vector<4x256xf32> to vector<4x32xf32>
    %185 = vector.extract_strided_slice %174 {offsets = [0, 160], sizes = [4, 32], strides = [1, 1]} : vector<4x256xf32> to vector<4x32xf32>
    %186 = vector.extract_strided_slice %174 {offsets = [0, 192], sizes = [4, 32], strides = [1, 1]} : vector<4x256xf32> to vector<4x32xf32>
    %187 = vector.extract_strided_slice %174 {offsets = [0, 224], sizes = [4, 32], strides = [1, 1]} : vector<4x256xf32> to vector<4x32xf32>
    %188 = arith.mulf %185, %136 : vector<4x32xf32>
    %189 = arith.mulf %184, %186 : vector<4x32xf32>
    %190 = arith.addf %188, %189 : vector<4x32xf32>
    %191 = math.tanh %190 : vector<4x32xf32>
    %192 = arith.mulf %187, %191 : vector<4x32xf32>
    %193 = tpu.concatenate %156, %165 in 1 : vector<4x32xf32>, vector<4x32xf32> -> vector<4x64xf32>
    %194 = vector.extract_strided_slice %22 {offsets = [12, 0], sizes = [4, 256], strides = [1, 1]} : vector<24x256xf32> to vector<4x256xf32>
    %cst_42 = arith.constant dense<0.000000e+00> : vector<4x256xf32>
    %195 = tpu.matmul %193, %6, %cst_42 {dimension_numbers = #tpu.dot_dimension_numbers<[1], [0], [0], [1], [0, 0, 1, 1], [], []>} : vector<4x64xf32>, vector<64x256xf32>, vector<4x256xf32> -> vector<4x256xf32>
    %196 = arith.addf %194, %195 : vector<4x256xf32>
    %197 = math.tanh %196 : vector<4x256xf32>
    %198 = vector.broadcast %9 : vector<1x256xf32> to vector<4x256xf32>
    %199 = arith.mulf %197, %198 : vector<4x256xf32>
    %200 = vector.broadcast %10 : vector<1x256xf32> to vector<4x256xf32>
    %201 = arith.addf %199, %200 : vector<4x256xf32>
    %202 = vector.extract_strided_slice %201 {offsets = [0, 0], sizes = [4, 32], strides = [1, 1]} : vector<4x256xf32> to vector<4x32xf32>
    %203 = vector.extract_strided_slice %201 {offsets = [0, 32], sizes = [4, 32], strides = [1, 1]} : vector<4x256xf32> to vector<4x32xf32>
    %204 = vector.extract_strided_slice %201 {offsets = [0, 64], sizes = [4, 32], strides = [1, 1]} : vector<4x256xf32> to vector<4x32xf32>
    %205 = vector.extract_strided_slice %201 {offsets = [0, 96], sizes = [4, 32], strides = [1, 1]} : vector<4x256xf32> to vector<4x32xf32>
    %206 = arith.mulf %203, %154 : vector<4x32xf32>
    %207 = arith.mulf %202, %204 : vector<4x32xf32>
    %208 = arith.addf %206, %207 : vector<4x32xf32>
    %209 = math.tanh %208 : vector<4x32xf32>
    %210 = arith.mulf %205, %209 : vector<4x32xf32>
    %211 = vector.extract_strided_slice %201 {offsets = [0, 128], sizes = [4, 32], strides = [1, 1]} : vector<4x256xf32> to vector<4x32xf32>
    %212 = vector.extract_strided_slice %201 {offsets = [0, 160], sizes = [4, 32], strides = [1, 1]} : vector<4x256xf32> to vector<4x32xf32>
    %213 = vector.extract_strided_slice %201 {offsets = [0, 192], sizes = [4, 32], strides = [1, 1]} : vector<4x256xf32> to vector<4x32xf32>
    %214 = vector.extract_strided_slice %201 {offsets = [0, 224], sizes = [4, 32], strides = [1, 1]} : vector<4x256xf32> to vector<4x32xf32>
    %215 = arith.mulf %212, %163 : vector<4x32xf32>
    %216 = arith.mulf %211, %213 : vector<4x32xf32>
    %217 = arith.addf %215, %216 : vector<4x32xf32>
    %218 = math.tanh %217 : vector<4x32xf32>
    %219 = arith.mulf %214, %218 : vector<4x32xf32>
    %220 = tpu.concatenate %210, %183, %219, %192 in 1 : vector<4x32xf32>, vector<4x32xf32>, vector<4x32xf32>, vector<4x32xf32> -> vector<4x128xf32>
    %cst_43 = arith.constant dense<0.000000e+00> : vector<4x256xf32>
    %221 = tpu.matmul %220, %7, %cst_43 {dimension_numbers = #tpu.dot_dimension_numbers<[1], [0], [0], [1], [0, 0, 1, 1], [], []>} : vector<4x128xf32>, vector<128x256xf32>, vector<4x256xf32> -> vector<4x256xf32>
    %222 = vector.broadcast %8 : vector<1x256xf32> to vector<4x256xf32>
    %223 = arith.addf %221, %222 : vector<4x256xf32>
    %224 = math.tanh %223 : vector<4x256xf32>
    %225 = vector.broadcast %9 : vector<1x256xf32> to vector<4x256xf32>
    %226 = arith.mulf %224, %225 : vector<4x256xf32>
    %227 = vector.broadcast %10 : vector<1x256xf32> to vector<4x256xf32>
    %228 = arith.addf %226, %227 : vector<4x256xf32>
    %229 = vector.extract_strided_slice %228 {offsets = [0, 0], sizes = [4, 32], strides = [1, 1]} : vector<4x256xf32> to vector<4x32xf32>
    %230 = vector.extract_strided_slice %228 {offsets = [0, 32], sizes = [4, 32], strides = [1, 1]} : vector<4x256xf32> to vector<4x32xf32>
    %231 = vector.extract_strided_slice %228 {offsets = [0, 64], sizes = [4, 32], strides = [1, 1]} : vector<4x256xf32> to vector<4x32xf32>
    %232 = vector.extract_strided_slice %228 {offsets = [0, 96], sizes = [4, 32], strides = [1, 1]} : vector<4x256xf32> to vector<4x32xf32>
    %233 = arith.mulf %230, %181 : vector<4x32xf32>
    %234 = arith.mulf %229, %231 : vector<4x32xf32>
    %235 = arith.addf %233, %234 : vector<4x32xf32>
    %236 = math.tanh %235 : vector<4x32xf32>
    %237 = arith.mulf %232, %236 : vector<4x32xf32>
    %238 = vector.extract_strided_slice %228 {offsets = [0, 128], sizes = [4, 32], strides = [1, 1]} : vector<4x256xf32> to vector<4x32xf32>
    %239 = vector.extract_strided_slice %228 {offsets = [0, 160], sizes = [4, 32], strides = [1, 1]} : vector<4x256xf32> to vector<4x32xf32>
    %240 = vector.extract_strided_slice %228 {offsets = [0, 192], sizes = [4, 32], strides = [1, 1]} : vector<4x256xf32> to vector<4x32xf32>
    %241 = vector.extract_strided_slice %228 {offsets = [0, 224], sizes = [4, 32], strides = [1, 1]} : vector<4x256xf32> to vector<4x32xf32>
    %242 = arith.mulf %239, %190 : vector<4x32xf32>
    %243 = arith.mulf %238, %240 : vector<4x32xf32>
    %244 = arith.addf %242, %243 : vector<4x32xf32>
    %245 = math.tanh %244 : vector<4x32xf32>
    %246 = arith.mulf %241, %245 : vector<4x32xf32>
    %247 = tpu.concatenate %210, %219 in 1 : vector<4x32xf32>, vector<4x32xf32> -> vector<4x64xf32>
    %248 = vector.extract_strided_slice %22 {offsets = [16, 0], sizes = [4, 256], strides = [1, 1]} : vector<24x256xf32> to vector<4x256xf32>
    %cst_44 = arith.constant dense<0.000000e+00> : vector<4x256xf32>
    %249 = tpu.matmul %247, %6, %cst_44 {dimension_numbers = #tpu.dot_dimension_numbers<[1], [0], [0], [1], [0, 0, 1, 1], [], []>} : vector<4x64xf32>, vector<64x256xf32>, vector<4x256xf32> -> vector<4x256xf32>
    %250 = arith.addf %248, %249 : vector<4x256xf32>
    %251 = math.tanh %250 : vector<4x256xf32>
    %252 = vector.broadcast %9 : vector<1x256xf32> to vector<4x256xf32>
    %253 = arith.mulf %251, %252 : vector<4x256xf32>
    %254 = vector.broadcast %10 : vector<1x256xf32> to vector<4x256xf32>
    %255 = arith.addf %253, %254 : vector<4x256xf32>
    %256 = vector.extract_strided_slice %255 {offsets = [0, 0], sizes = [4, 32], strides = [1, 1]} : vector<4x256xf32> to vector<4x32xf32>
    %257 = vector.extract_strided_slice %255 {offsets = [0, 32], sizes = [4, 32], strides = [1, 1]} : vector<4x256xf32> to vector<4x32xf32>
    %258 = vector.extract_strided_slice %255 {offsets = [0, 64], sizes = [4, 32], strides = [1, 1]} : vector<4x256xf32> to vector<4x32xf32>
    %259 = vector.extract_strided_slice %255 {offsets = [0, 96], sizes = [4, 32], strides = [1, 1]} : vector<4x256xf32> to vector<4x32xf32>
    %260 = arith.mulf %257, %208 : vector<4x32xf32>
    %261 = arith.mulf %256, %258 : vector<4x32xf32>
    %262 = arith.addf %260, %261 : vector<4x32xf32>
    %263 = math.tanh %262 : vector<4x32xf32>
    %264 = arith.mulf %259, %263 : vector<4x32xf32>
    %265 = vector.extract_strided_slice %255 {offsets = [0, 128], sizes = [4, 32], strides = [1, 1]} : vector<4x256xf32> to vector<4x32xf32>
    %266 = vector.extract_strided_slice %255 {offsets = [0, 160], sizes = [4, 32], strides = [1, 1]} : vector<4x256xf32> to vector<4x32xf32>
    %267 = vector.extract_strided_slice %255 {offsets = [0, 192], sizes = [4, 32], strides = [1, 1]} : vector<4x256xf32> to vector<4x32xf32>
    %268 = vector.extract_strided_slice %255 {offsets = [0, 224], sizes = [4, 32], strides = [1, 1]} : vector<4x256xf32> to vector<4x32xf32>
    %269 = arith.mulf %266, %217 : vector<4x32xf32>
    %270 = arith.mulf %265, %267 : vector<4x32xf32>
    %271 = arith.addf %269, %270 : vector<4x32xf32>
    %272 = math.tanh %271 : vector<4x32xf32>
    %273 = arith.mulf %268, %272 : vector<4x32xf32>
    %274 = tpu.concatenate %264, %237, %273, %246 in 1 : vector<4x32xf32>, vector<4x32xf32>, vector<4x32xf32>, vector<4x32xf32> -> vector<4x128xf32>
    %cst_45 = arith.constant dense<0.000000e+00> : vector<4x256xf32>
    %275 = tpu.matmul %274, %7, %cst_45 {dimension_numbers = #tpu.dot_dimension_numbers<[1], [0], [0], [1], [0, 0, 1, 1], [], []>} : vector<4x128xf32>, vector<128x256xf32>, vector<4x256xf32> -> vector<4x256xf32>
    %276 = vector.broadcast %8 : vector<1x256xf32> to vector<4x256xf32>
    %277 = arith.addf %275, %276 : vector<4x256xf32>
    %278 = math.tanh %277 : vector<4x256xf32>
    %279 = vector.broadcast %9 : vector<1x256xf32> to vector<4x256xf32>
    %280 = arith.mulf %278, %279 : vector<4x256xf32>
    %281 = vector.broadcast %10 : vector<1x256xf32> to vector<4x256xf32>
    %282 = arith.addf %280, %281 : vector<4x256xf32>
    %283 = vector.extract_strided_slice %282 {offsets = [0, 0], sizes = [4, 32], strides = [1, 1]} : vector<4x256xf32> to vector<4x32xf32>
    %284 = vector.extract_strided_slice %282 {offsets = [0, 32], sizes = [4, 32], strides = [1, 1]} : vector<4x256xf32> to vector<4x32xf32>
    %285 = vector.extract_strided_slice %282 {offsets = [0, 64], sizes = [4, 32], strides = [1, 1]} : vector<4x256xf32> to vector<4x32xf32>
    %286 = vector.extract_strided_slice %282 {offsets = [0, 96], sizes = [4, 32], strides = [1, 1]} : vector<4x256xf32> to vector<4x32xf32>
    %287 = arith.mulf %284, %235 : vector<4x32xf32>
    %288 = arith.mulf %283, %285 : vector<4x32xf32>
    %289 = arith.addf %287, %288 : vector<4x32xf32>
    %290 = math.tanh %289 : vector<4x32xf32>
    %291 = arith.mulf %286, %290 : vector<4x32xf32>
    %292 = vector.extract_strided_slice %282 {offsets = [0, 128], sizes = [4, 32], strides = [1, 1]} : vector<4x256xf32> to vector<4x32xf32>
    %293 = vector.extract_strided_slice %282 {offsets = [0, 160], sizes = [4, 32], strides = [1, 1]} : vector<4x256xf32> to vector<4x32xf32>
    %294 = vector.extract_strided_slice %282 {offsets = [0, 192], sizes = [4, 32], strides = [1, 1]} : vector<4x256xf32> to vector<4x32xf32>
    %295 = vector.extract_strided_slice %282 {offsets = [0, 224], sizes = [4, 32], strides = [1, 1]} : vector<4x256xf32> to vector<4x32xf32>
    %296 = arith.mulf %293, %244 : vector<4x32xf32>
    %297 = arith.mulf %292, %294 : vector<4x32xf32>
    %298 = arith.addf %296, %297 : vector<4x32xf32>
    %299 = math.tanh %298 : vector<4x32xf32>
    %300 = arith.mulf %295, %299 : vector<4x32xf32>
    %301 = tpu.concatenate %264, %273 in 1 : vector<4x32xf32>, vector<4x32xf32> -> vector<4x64xf32>
    %302 = vector.extract_strided_slice %22 {offsets = [20, 0], sizes = [4, 256], strides = [1, 1]} : vector<24x256xf32> to vector<4x256xf32>
    %cst_46 = arith.constant dense<0.000000e+00> : vector<4x256xf32>
    %303 = tpu.matmul %301, %6, %cst_46 {dimension_numbers = #tpu.dot_dimension_numbers<[1], [0], [0], [1], [0, 0, 1, 1], [], []>} : vector<4x64xf32>, vector<64x256xf32>, vector<4x256xf32> -> vector<4x256xf32>
    %304 = arith.addf %302, %303 : vector<4x256xf32>
    %305 = math.tanh %304 : vector<4x256xf32>
    %306 = vector.broadcast %9 : vector<1x256xf32> to vector<4x256xf32>
    %307 = arith.mulf %305, %306 : vector<4x256xf32>
    %308 = vector.broadcast %10 : vector<1x256xf32> to vector<4x256xf32>
    %309 = arith.addf %307, %308 : vector<4x256xf32>
    %310 = vector.extract_strided_slice %309 {offsets = [0, 0], sizes = [4, 32], strides = [1, 1]} : vector<4x256xf32> to vector<4x32xf32>
    %311 = vector.extract_strided_slice %309 {offsets = [0, 32], sizes = [4, 32], strides = [1, 1]} : vector<4x256xf32> to vector<4x32xf32>
    %312 = vector.extract_strided_slice %309 {offsets = [0, 64], sizes = [4, 32], strides = [1, 1]} : vector<4x256xf32> to vector<4x32xf32>
    %313 = vector.extract_strided_slice %309 {offsets = [0, 96], sizes = [4, 32], strides = [1, 1]} : vector<4x256xf32> to vector<4x32xf32>
    %314 = arith.mulf %311, %262 : vector<4x32xf32>
    %315 = arith.mulf %310, %312 : vector<4x32xf32>
    %316 = arith.addf %314, %315 : vector<4x32xf32>
    %317 = math.tanh %316 : vector<4x32xf32>
    %318 = arith.mulf %313, %317 : vector<4x32xf32>
    %319 = vector.extract_strided_slice %309 {offsets = [0, 128], sizes = [4, 32], strides = [1, 1]} : vector<4x256xf32> to vector<4x32xf32>
    %320 = vector.extract_strided_slice %309 {offsets = [0, 160], sizes = [4, 32], strides = [1, 1]} : vector<4x256xf32> to vector<4x32xf32>
    %321 = vector.extract_strided_slice %309 {offsets = [0, 192], sizes = [4, 32], strides = [1, 1]} : vector<4x256xf32> to vector<4x32xf32>
    %322 = vector.extract_strided_slice %309 {offsets = [0, 224], sizes = [4, 32], strides = [1, 1]} : vector<4x256xf32> to vector<4x32xf32>
    %323 = arith.mulf %320, %271 : vector<4x32xf32>
    %324 = arith.mulf %319, %321 : vector<4x32xf32>
    %325 = arith.addf %323, %324 : vector<4x32xf32>
    %326 = math.tanh %325 : vector<4x32xf32>
    %327 = arith.mulf %322, %326 : vector<4x32xf32>
    %328 = tpu.concatenate %318, %291, %327, %300 in 1 : vector<4x32xf32>, vector<4x32xf32>, vector<4x32xf32>, vector<4x32xf32> -> vector<4x128xf32>
    %cst_47 = arith.constant dense<0.000000e+00> : vector<4x256xf32>
    %329 = tpu.matmul %328, %7, %cst_47 {dimension_numbers = #tpu.dot_dimension_numbers<[1], [0], [0], [1], [0, 0, 1, 1], [], []>} : vector<4x128xf32>, vector<128x256xf32>, vector<4x256xf32> -> vector<4x256xf32>
    %330 = vector.broadcast %8 : vector<1x256xf32> to vector<4x256xf32>
    %331 = arith.addf %329, %330 : vector<4x256xf32>
    %332 = math.tanh %331 : vector<4x256xf32>
    %333 = vector.broadcast %9 : vector<1x256xf32> to vector<4x256xf32>
    %334 = arith.mulf %332, %333 : vector<4x256xf32>
    %335 = vector.broadcast %10 : vector<1x256xf32> to vector<4x256xf32>
    %336 = arith.addf %334, %335 : vector<4x256xf32>
    %337 = vector.extract_strided_slice %336 {offsets = [0, 0], sizes = [4, 32], strides = [1, 1]} : vector<4x256xf32> to vector<4x32xf32>
    %338 = vector.extract_strided_slice %336 {offsets = [0, 32], sizes = [4, 32], strides = [1, 1]} : vector<4x256xf32> to vector<4x32xf32>
    %339 = vector.extract_strided_slice %336 {offsets = [0, 64], sizes = [4, 32], strides = [1, 1]} : vector<4x256xf32> to vector<4x32xf32>
    %340 = vector.extract_strided_slice %336 {offsets = [0, 96], sizes = [4, 32], strides = [1, 1]} : vector<4x256xf32> to vector<4x32xf32>
    %341 = arith.mulf %338, %289 : vector<4x32xf32>
    %342 = arith.mulf %337, %339 : vector<4x32xf32>
    %343 = arith.addf %341, %342 : vector<4x32xf32>
    %344 = math.tanh %343 : vector<4x32xf32>
    %345 = arith.mulf %340, %344 : vector<4x32xf32>
    %346 = vector.extract_strided_slice %336 {offsets = [0, 128], sizes = [4, 32], strides = [1, 1]} : vector<4x256xf32> to vector<4x32xf32>
    %347 = vector.extract_strided_slice %336 {offsets = [0, 160], sizes = [4, 32], strides = [1, 1]} : vector<4x256xf32> to vector<4x32xf32>
    %348 = vector.extract_strided_slice %336 {offsets = [0, 192], sizes = [4, 32], strides = [1, 1]} : vector<4x256xf32> to vector<4x32xf32>
    %349 = arith.mulf %347, %298 : vector<4x32xf32>
    %350 = arith.mulf %346, %348 : vector<4x32xf32>
    %351 = arith.addf %349, %350 : vector<4x32xf32>
    %352 = vector.extract_strided_slice %6 {offsets = [0, 0], sizes = [32, 128], strides = [1, 1]} : vector<64x256xf32> to vector<32x128xf32>
    %353 = vector.extract_strided_slice %9 {offsets = [0, 0], sizes = [1, 128], strides = [1, 1]} : vector<1x256xf32> to vector<1x128xf32>
    %354 = vector.extract_strided_slice %10 {offsets = [0, 0], sizes = [1, 128], strides = [1, 1]} : vector<1x256xf32> to vector<1x128xf32>
    %355 = vector.extract_strided_slice %7 {offsets = [0, 0], sizes = [64, 128], strides = [1, 1]} : vector<128x256xf32> to vector<64x128xf32>
    %356 = vector.extract_strided_slice %8 {offsets = [0, 0], sizes = [1, 128], strides = [1, 1]} : vector<1x256xf32> to vector<1x128xf32>
    %357 = vector.extract_strided_slice %16 {offsets = [24, 0], sizes = [4, 128], strides = [1, 1]} : vector<32x128xf32> to vector<4x128xf32>
    %cst_48 = arith.constant dense<0.000000e+00> : vector<4x128xf32>
    %358 = tpu.matmul %318, %352, %cst_48 {dimension_numbers = #tpu.dot_dimension_numbers<[1], [0], [0], [1], [0, 0, 1, 1], [], []>} : vector<4x32xf32>, vector<32x128xf32>, vector<4x128xf32> -> vector<4x128xf32>
    %359 = arith.addf %357, %358 : vector<4x128xf32>
    %360 = math.tanh %359 : vector<4x128xf32>
    %361 = vector.broadcast %353 : vector<1x128xf32> to vector<4x128xf32>
    %362 = arith.mulf %360, %361 : vector<4x128xf32>
    %363 = vector.broadcast %354 : vector<1x128xf32> to vector<4x128xf32>
    %364 = arith.addf %362, %363 : vector<4x128xf32>
    %365 = vector.extract_strided_slice %364 {offsets = [0, 0], sizes = [4, 32], strides = [1, 1]} : vector<4x128xf32> to vector<4x32xf32>
    %366 = vector.extract_strided_slice %364 {offsets = [0, 32], sizes = [4, 32], strides = [1, 1]} : vector<4x128xf32> to vector<4x32xf32>
    %367 = vector.extract_strided_slice %364 {offsets = [0, 64], sizes = [4, 32], strides = [1, 1]} : vector<4x128xf32> to vector<4x32xf32>
    %368 = vector.extract_strided_slice %364 {offsets = [0, 96], sizes = [4, 32], strides = [1, 1]} : vector<4x128xf32> to vector<4x32xf32>
    %369 = arith.mulf %366, %316 : vector<4x32xf32>
    %370 = arith.mulf %365, %367 : vector<4x32xf32>
    %371 = arith.addf %369, %370 : vector<4x32xf32>
    %372 = math.tanh %371 : vector<4x32xf32>
    %373 = arith.mulf %368, %372 : vector<4x32xf32>
    %374 = tpu.concatenate %373, %345 in 1 : vector<4x32xf32>, vector<4x32xf32> -> vector<4x64xf32>
    %cst_49 = arith.constant dense<0.000000e+00> : vector<4x128xf32>
    %375 = tpu.matmul %374, %355, %cst_49 {dimension_numbers = #tpu.dot_dimension_numbers<[1], [0], [0], [1], [0, 0, 1, 1], [], []>} : vector<4x64xf32>, vector<64x128xf32>, vector<4x128xf32> -> vector<4x128xf32>
    %376 = vector.broadcast %356 : vector<1x128xf32> to vector<4x128xf32>
    %377 = arith.addf %375, %376 : vector<4x128xf32>
    %378 = math.tanh %377 : vector<4x128xf32>
    %379 = vector.broadcast %353 : vector<1x128xf32> to vector<4x128xf32>
    %380 = arith.mulf %378, %379 : vector<4x128xf32>
    %381 = vector.broadcast %354 : vector<1x128xf32> to vector<4x128xf32>
    %382 = arith.addf %380, %381 : vector<4x128xf32>
    %383 = vector.extract_strided_slice %382 {offsets = [0, 0], sizes = [4, 32], strides = [1, 1]} : vector<4x128xf32> to vector<4x32xf32>
    %384 = vector.extract_strided_slice %382 {offsets = [0, 32], sizes = [4, 32], strides = [1, 1]} : vector<4x128xf32> to vector<4x32xf32>
    %385 = vector.extract_strided_slice %382 {offsets = [0, 64], sizes = [4, 32], strides = [1, 1]} : vector<4x128xf32> to vector<4x32xf32>
    %386 = vector.extract_strided_slice %382 {offsets = [0, 96], sizes = [4, 32], strides = [1, 1]} : vector<4x128xf32> to vector<4x32xf32>
    %387 = arith.mulf %384, %343 : vector<4x32xf32>
    %388 = arith.mulf %383, %385 : vector<4x32xf32>
    %389 = arith.addf %387, %388 : vector<4x32xf32>
    %390 = math.tanh %389 : vector<4x32xf32>
    %391 = arith.mulf %386, %390 : vector<4x32xf32>
    %392 = vector.extract_strided_slice %16 {offsets = [28, 0], sizes = [4, 128], strides = [1, 1]} : vector<32x128xf32> to vector<4x128xf32>
    %cst_50 = arith.constant dense<0.000000e+00> : vector<4x128xf32>
    %393 = tpu.matmul %373, %352, %cst_50 {dimension_numbers = #tpu.dot_dimension_numbers<[1], [0], [0], [1], [0, 0, 1, 1], [], []>} : vector<4x32xf32>, vector<32x128xf32>, vector<4x128xf32> -> vector<4x128xf32>
    %394 = arith.addf %392, %393 : vector<4x128xf32>
    %395 = math.tanh %394 : vector<4x128xf32>
    %396 = vector.broadcast %353 : vector<1x128xf32> to vector<4x128xf32>
    %397 = arith.mulf %395, %396 : vector<4x128xf32>
    %398 = vector.broadcast %354 : vector<1x128xf32> to vector<4x128xf32>
    %399 = arith.addf %397, %398 : vector<4x128xf32>
    %400 = vector.extract_strided_slice %399 {offsets = [0, 0], sizes = [4, 32], strides = [1, 1]} : vector<4x128xf32> to vector<4x32xf32>
    %401 = vector.extract_strided_slice %399 {offsets = [0, 32], sizes = [4, 32], strides = [1, 1]} : vector<4x128xf32> to vector<4x32xf32>
    %402 = vector.extract_strided_slice %399 {offsets = [0, 64], sizes = [4, 32], strides = [1, 1]} : vector<4x128xf32> to vector<4x32xf32>
    %403 = vector.extract_strided_slice %399 {offsets = [0, 96], sizes = [4, 32], strides = [1, 1]} : vector<4x128xf32> to vector<4x32xf32>
    %404 = arith.mulf %401, %371 : vector<4x32xf32>
    %405 = arith.mulf %400, %402 : vector<4x32xf32>
    %406 = arith.addf %404, %405 : vector<4x32xf32>
    %407 = math.tanh %406 : vector<4x32xf32>
    %408 = arith.mulf %403, %407 : vector<4x32xf32>
    %409 = tpu.concatenate %408, %391 in 1 : vector<4x32xf32>, vector<4x32xf32> -> vector<4x64xf32>
    %cst_51 = arith.constant dense<0.000000e+00> : vector<4x128xf32>
    %410 = tpu.matmul %409, %355, %cst_51 {dimension_numbers = #tpu.dot_dimension_numbers<[1], [0], [0], [1], [0, 0, 1, 1], [], []>} : vector<4x64xf32>, vector<64x128xf32>, vector<4x128xf32> -> vector<4x128xf32>
    %411 = vector.broadcast %356 : vector<1x128xf32> to vector<4x128xf32>
    %412 = arith.addf %410, %411 : vector<4x128xf32>
    %413 = math.tanh %412 : vector<4x128xf32>
    %414 = vector.broadcast %353 : vector<1x128xf32> to vector<4x128xf32>
    %415 = arith.mulf %413, %414 : vector<4x128xf32>
    %416 = vector.broadcast %354 : vector<1x128xf32> to vector<4x128xf32>
    %417 = arith.addf %415, %416 : vector<4x128xf32>
    %418 = vector.extract_strided_slice %417 {offsets = [0, 0], sizes = [4, 32], strides = [1, 1]} : vector<4x128xf32> to vector<4x32xf32>
    %419 = vector.extract_strided_slice %417 {offsets = [0, 32], sizes = [4, 32], strides = [1, 1]} : vector<4x128xf32> to vector<4x32xf32>
    %420 = vector.extract_strided_slice %417 {offsets = [0, 64], sizes = [4, 32], strides = [1, 1]} : vector<4x128xf32> to vector<4x32xf32>
    %421 = arith.mulf %419, %389 : vector<4x32xf32>
    %422 = arith.mulf %418, %420 : vector<4x32xf32>
    %423 = arith.addf %421, %422 : vector<4x32xf32>
    %424 = tpu.concatenate %423, %351 in 1 : vector<4x32xf32>, vector<4x32xf32> -> vector<4x64xf32>
    %cst_52 = arith.constant dense<0.000000e+00> : vector<4x10xf32>
    %425 = tpu.matmul %424, %11, %cst_52 {dimension_numbers = #tpu.dot_dimension_numbers<[1], [0], [0], [1], [0, 0, 1, 1], [], []>} : vector<4x64xf32>, vector<64x10xf32>, vector<4x10xf32> -> vector<4x10xf32>
    %426 = vector.broadcast %12 : vector<1x10xf32> to vector<4x10xf32>
    %427 = arith.addf %425, %426 : vector<4x10xf32>
    %c0_53 = arith.constant 0 : index
    %c0_54 = arith.constant 0 : index
    %428 = vector.load %arg13[%c0_53, %c0_54] : memref<4x10xf32, #tpu.memory_space<vmem>>, vector<4x10xf32>
    tpu.vector_store %arg13[%c0_53, %c0_54], %427 {strides = array<i32>} : memref<4x10xf32, #tpu.memory_space<vmem>>, vector<4x10xf32>,
    return
  }
}

</mosaic_0001>

<llo_original>
// kernel: forward.1
$region0: #{forward.1}
  #allocation0 [shape = 'u32[]', space=smem, size = 0x4, offset = 0x4, fixed_abs, tag = 'smem constant byte address 0x4 - core index']
  #allocation1 [shape = 'u32[144,128]{1,0:T(1,128)}', space=vmem, size = 0x12000, scoped, tag = 'internal scratch']
  %s0 = inlined_call_operand.vmem [shape: f32[8,4,8], index: 0, kind: input, shape index: {}]
  %s1 = inlined_call_operand.vmem [shape: f32[6,4,12], index: 1, kind: input, shape index: {}]
  %s2 = inlined_call_operand.hbm [shape: f32[8,128], index: 2, kind: input, shape index: {}]
  %s3 = inlined_call_operand.hbm [shape: f32[1,128], index: 3, kind: input, shape index: {}]
  %s4 = inlined_call_operand.vmem [shape: f32[12,128], index: 4, kind: input, shape index: {}]
  %s5 = inlined_call_operand.hbm [shape: f32[1,128], index: 5, kind: input, shape index: {}]
  %s6 = inlined_call_operand.hbm [shape: f32[64,256], index: 6, kind: input, shape index: {}]
  %s7 = inlined_call_operand.hbm [shape: f32[128,256], index: 7, kind: input, shape index: {}]
  %s8 = inlined_call_operand.hbm [shape: f32[1,256], index: 8, kind: input, shape index: {}]
  %s9 = inlined_call_operand.vmem [shape: f32[1,256], index: 9, kind: input, shape index: {}]
  %s10 = inlined_call_operand.vmem [shape: f32[1,256], index: 10, kind: input, shape index: {}]
  %s11 = inlined_call_operand.vmem [shape: f32[64,10], index: 11, kind: input, shape index: {}]
  %s12 = inlined_call_operand.vmem [shape: f32[1,10], index: 12, kind: input, shape index: {}]
  %s13 = inlined_call_operand.hbm [shape: f32[4,10], index: 13, kind: output, shape index: {}]
  %s14 = sld [smem:[#allocation0]]
  $region86: #{forward.1} parent=0
    _
  %s16 = ssub.s32 1, %s14
  %s17 = scalar_select 0, %s16, %s14
  $region1: #{forward.1} parent=0
    #allocation2 [shape = 'u8[4096]{0}', space=vmem, size = 0x1000, scoped, tag = 'input window, operand 2, single buffered']
    #allocation3 [shape = 's32[1]{0}', space=sflag, size = 0x4, scoped, tag = 'scoped memory for forward.1']
    #allocation4 [shape = 's32[1]{0}', space=sflag, size = 0x4, scoped, tag = 'scoped memory for forward.1']
    #allocation5 [shape = 'u8[512]{0}', space=vmem, size = 0x400, scoped, tag = 'input window, operand 3, single buffered']
    #allocation6 [shape = 's32[1]{0}', space=sflag, size = 0x4, scoped, tag = 'scoped memory for forward.1']
    #allocation7 [shape = 'u8[512]{0}', space=vmem, size = 0x400, scoped, tag = 'input window, operand 5, single buffered']
    #allocation8 [shape = 'u8[65536]{0}', space=vmem, size = 0x10000, scoped, tag = 'input window, operand 6, single buffered']
    #allocation9 [shape = 's32[1]{0}', space=sflag, size = 0x4, scoped, tag = 'scoped memory for forward.1']
    #allocation10 [shape = 'u8[131072]{0}', space=vmem, size = 0x20000, scoped, tag = 'input window, operand 7, single buffered']
    #allocation11 [shape = 'u8[1024]{0}', space=vmem, size = 0x400, scoped, tag = 'input window, operand 8, single buffered']
    #allocation12 [shape = 's32[1]{0}', space=sflag, size = 0x4, scoped, tag = 'scoped memory for forward.1']
    #allocation13 [shape = 'u8[2048]{0}', space=vmem, size = 0x800, scoped, tag = 'output window, operand 0, single buffered']
    %18 = vsyncpa [#allocation3], 0
    %19 = vsyncpa [#allocation6], 0
    %20 = vsyncpa [#allocation9], 0
    %21 = vsyncpa [#allocation12], 0
    %22 = vsyncpa [#allocation4], 0
    // Predicated region
    $region2: #{forward.1} parent=1 // pred_check
      _
    $region3: #{forward.1} parent=1 // pred_check_branch
      %24 = sbr.rel (0) target = $region5
    $region4: #{forward.1} parent=1 // pred_region
      _
    $region5: #{forward.1} parent=1 // pred_fallthru
      _
    // Predicated region
    $region6: #{forward.1} parent=1 // pred_check
      _
    $region7: #{forward.1} parent=1 // pred_check_branch
      %26 = sbr.rel (0) target = $region9
    $region8: #{forward.1} parent=1 // pred_region
      _
    $region9: #{forward.1} parent=1 // pred_fallthru
      _
    // Predicated region
    $region10: #{forward.1} parent=1 // pred_check
      _
    $region11: #{forward.1} parent=1 // pred_check_branch
      %28 = sbr.rel (0) target = $region13
    $region12: #{forward.1} parent=1 // pred_region
      %s30 = ssub.s32 128, 128
      %31 = vsyncadd [#allocation3], %s30
      %s33 = sshll.u32 [#allocation2], 4
      %s34 = int_to_ptr.vmem [resolvable:$true] %s33
      %36 = dma.hbm_to_vmem [thread:$0]  %s2, 128, %s34, [#allocation3]
    $region13: #{forward.1} parent=1 // pred_fallthru
      _
    // Predicated region
    $region14: #{forward.1} parent=1 // pred_check
      _
    $region15: #{forward.1} parent=1 // pred_check_branch
      %38 = sbr.rel (0) target = $region17
    $region16: #{forward.1} parent=1 // pred_region
      %s40 = ssub.s32 16, 16
      %41 = vsyncadd [#allocation6], %s40
      %s43 = sshll.u32 [#allocation5], 4
      %s44 = int_to_ptr.vmem [resolvable:$true] %s43
      %46 = dma.hbm_to_vmem [thread:$0]  %s3, 16, %s44, [#allocation6]
    $region17: #{forward.1} parent=1 // pred_fallthru
      _
    // Predicated region
    $region18: #{forward.1} parent=1 // pred_check
      _
    $region19: #{forward.1} parent=1 // pred_check_branch
      %48 = sbr.rel (0) target = $region21
    $region20: #{forward.1} parent=1 // pred_region
      _
    $region21: #{forward.1} parent=1 // pred_fallthru
      _
    // Predicated region
    $region22: #{forward.1} parent=1 // pred_check
      _
    $region23: #{forward.1} parent=1 // pred_check_branch
      %50 = sbr.rel (0) target = $region25
    $region24: #{forward.1} parent=1 // pred_region
      %s52 = ssub.s32 16, 16
      %53 = vsyncadd [#allocation6], %s52
      %s55 = sshll.u32 [#allocation7], 4
      %s56 = int_to_ptr.vmem [resolvable:$true] %s55
      %58 = dma.hbm_to_vmem [thread:$0]  %s5, 16, %s56, [#allocation6]
    $region25: #{forward.1} parent=1 // pred_fallthru
      _
    // Predicated region
    $region26: #{forward.1} parent=1 // pred_check
      _
    $region27: #{forward.1} parent=1 // pred_check_branch
      %60 = sbr.rel (0) target = $region29
    $region28: #{forward.1} parent=1 // pred_region
      %s62 = ssub.s32 2048, 2048
      %63 = vsyncadd [#allocation9], %s62
      %s64 = sshll.u32 [#allocation8], 4
      %s65 = int_to_ptr.vmem [resolvable:$true] %s64
      %70 = dma.hbm_to_vmem [thread:$0]  %s6, 2048, %s65, [#allocation9], 256, 256, 16
    $region29: #{forward.1} parent=1 // pred_fallthru
      _
    // Predicated region
    $region30: #{forward.1} parent=1 // pred_check
      _
    $region31: #{forward.1} parent=1 // pred_check_branch
      %72 = sbr.rel (0) target = $region33
    $region32: #{forward.1} parent=1 // pred_region
      %s74 = ssub.s32 4096, 4096
      %75 = vsyncadd [#allocation9], %s74
      %s76 = sshll.u32 [#allocation10], 4
      %s77 = int_to_ptr.vmem [resolvable:$true] %s76
      %82 = dma.hbm_to_vmem [thread:$0]  %s7, 4096, %s77, [#allocation9], 256, 256, 16
    $region33: #{forward.1} parent=1 // pred_fallthru
      _
    // Predicated region
    $region34: #{forward.1} parent=1 // pred_check
      _
    $region35: #{forward.1} parent=1 // pred_check_branch
      %84 = sbr.rel (0) target = $region37
    $region36: #{forward.1} parent=1 // pred_region
      %s86 = ssub.s32 32, 32
      %87 = vsyncadd [#allocation12], %s86
      %s89 = sshll.u32 [#allocation11], 4
      %s90 = int_to_ptr.vmem [resolvable:$true] %s89
      %92 = dma.hbm_to_vmem [thread:$0]  %s8, 32, %s90, [#allocation12]
    $region37: #{forward.1} parent=1 // pred_fallthru
      _
    // Predicated region
    $region38: #{forward.1} parent=1 // pred_check
      _
    $region39: #{forward.1} parent=1 // pred_check_branch
      %94 = sbr.rel (0) target = $region41
    $region40: #{forward.1} parent=1 // pred_region
      _
    $region41: #{forward.1} parent=1 // pred_fallthru
      _
    // Predicated region
    $region42: #{forward.1} parent=1 // pred_check
      _
    $region43: #{forward.1} parent=1 // pred_check_branch
      %96 = sbr.rel (0) target = $region45
    $region44: #{forward.1} parent=1 // pred_region
      _
    $region45: #{forward.1} parent=1 // pred_fallthru
      _
    // Predicated region
    $region46: #{forward.1} parent=1 // pred_check
      _
    $region47: #{forward.1} parent=1 // pred_check_branch
      %98 = sbr.rel (0) target = $region49
    $region48: #{forward.1} parent=1 // pred_region
      _
    $region49: #{forward.1} parent=1 // pred_fallthru
      _
    // Predicated region
    $region50: #{forward.1} parent=1 // pred_check
      _
    $region51: #{forward.1} parent=1 // pred_check_branch
      %100 = sbr.rel (0) target = $region53
    $region52: #{forward.1} parent=1 // pred_region
      _
    $region53: #{forward.1} parent=1 // pred_fallthru
      _
    // Predicated region
    $region54: #{forward.1} parent=1 // pred_check
      _
    $region55: #{forward.1} parent=1 // pred_check_branch
      %102 = sbr.rel (0) target = $region57
    $region56: #{forward.1} parent=1 // pred_region
      %103 = dma.done [#allocation3], 128
    $region57: #{forward.1} parent=1 // pred_fallthru
      _
    // Predicated region
    $region58: #{forward.1} parent=1 // pred_check
      _
    $region59: #{forward.1} parent=1 // pred_check_branch
      %105 = sbr.rel (0) target = $region61
    $region60: #{forward.1} parent=1 // pred_region
      %106 = dma.done [#allocation6], 16
    $region61: #{forward.1} parent=1 // pred_fallthru
      _
    // Predicated region
    $region62: #{forward.1} parent=1 // pred_check
      _
    $region63: #{forward.1} parent=1 // pred_check_branch
      %108 = sbr.rel (0) target = $region65
    $region64: #{forward.1} parent=1 // pred_region
      %109 = dma.done [#allocation6], 16
    $region65: #{forward.1} parent=1 // pred_fallthru
      _
    // Predicated region
    $region66: #{forward.1} parent=1 // pred_check
      _
    $region67: #{forward.1} parent=1 // pred_check_branch
      %111 = sbr.rel (0) target = $region69
    $region68: #{forward.1} parent=1 // pred_region
      %112 = dma.done [#allocation9], 2048
    $region69: #{forward.1} parent=1 // pred_fallthru
      _
    // Predicated region
    $region70: #{forward.1} parent=1 // pred_check
      _
    $region71: #{forward.1} parent=1 // pred_check_branch
      %114 = sbr.rel (0) target = $region73
    $region72: #{forward.1} parent=1 // pred_region
      %115 = dma.done [#allocation9], 4096
    $region73: #{forward.1} parent=1 // pred_fallthru
      _
    // Predicated region
    $region74: #{forward.1} parent=1 // pred_check
      _
    $region75: #{forward.1} parent=1 // pred_check_branch
      %117 = sbr.rel (0) target = $region77
    $region76: #{forward.1} parent=1 // pred_region
      %118 = dma.done [#allocation12], 32
    $region77: #{forward.1} parent=1 // pred_fallthru
      _
    %v119 = vld [vmem:[%s0] sm:$0xf]
    %v120 = vld [vmem:[%s0 + $0x4] sm:$0xf]
    %v121 = vld [vmem:[%s0 + $0x8] sm:$0xf]
    %v122 = vld [vmem:[%s0 + $0xc] sm:$0xf]
    %v123 = vld [vmem:[%s0 + $0x10] sm:$0xf]
    %v124 = vld [vmem:[%s0 + $0x14] sm:$0xf]
    %v125 = vld [vmem:[%s0 + $0x18] sm:$0xf]
    %v126 = vld [vmem:[%s0 + $0x1c] sm:$0xf]
    %v127 = vld [vmem:[%s1] sm:$0xf]
    %v128 = vld [vmem:[%s1 + $0x4] sm:$0xf]
    %v129 = vld [vmem:[%s1 + $0x8] sm:$0xf]
    %v130 = vld [vmem:[%s1 + $0xc] sm:$0xf]
    %v131 = vld [vmem:[%s1 + $0x10] sm:$0xf]
    %v132 = vld [vmem:[%s1 + $0x14] sm:$0xf]
    %v133 = vld [vmem:[#allocation2] sm:$0xff]
    %v134 = vld [vmem:[#allocation5] sm:$0x1]
    %v135 = vld [vmem:[%s4] sm:$0xff]
    %v136 = vld [vmem:[%s4 + $0x8] sm:$0xf]
    %v137 = vld [vmem:[#allocation7] sm:$0x1]
    %v138 = vld [vmem:[#allocation8] sm:$0xff]
    %v139 = vld [vmem:[#allocation8 + $0x8] sm:$0xff]
    %v140 = vld [vmem:[#allocation8 + $0x10] sm:$0xff]
    %v141 = vld [vmem:[#allocation8 + $0x18] sm:$0xff]
    %v142 = vld [vmem:[#allocation8 + $0x20] sm:$0xff]
    %v143 = vld [vmem:[#allocation8 + $0x28] sm:$0xff]
    %v144 = vld [vmem:[#allocation8 + $0x30] sm:$0xff]
    %v145 = vld [vmem:[#allocation8 + $0x38] sm:$0xff]
    %v146 = vld [vmem:[#allocation8 + $0x40] sm:$0xff]
    %v147 = vld [vmem:[#allocation8 + $0x48] sm:$0xff]
    %v148 = vld [vmem:[#allocation8 + $0x50] sm:$0xff]
    %v149 = vld [vmem:[#allocation8 + $0x58] sm:$0xff]
    %v150 = vld [vmem:[#allocation8 + $0x60] sm:$0xff]
    %v151 = vld [vmem:[#allocation8 + $0x68] sm:$0xff]
    %v152 = vld [vmem:[#allocation8 + $0x70] sm:$0xff]
    %v153 = vld [vmem:[#allocation8 + $0x78] sm:$0xff]
    %v154 = vld [vmem:[#allocation10] sm:$0xff]
    %v155 = vld [vmem:[#allocation10 + $0x8] sm:$0xff]
    %v156 = vld [vmem:[#allocation10 + $0x10] sm:$0xff]
    %v157 = vld [vmem:[#allocation10 + $0x18] sm:$0xff]
    %v158 = vld [vmem:[#allocation10 + $0x20] sm:$0xff]
    %v159 = vld [vmem:[#allocation10 + $0x28] sm:$0xff]
    %v160 = vld [vmem:[#allocation10 + $0x30] sm:$0xff]
    %v161 = vld [vmem:[#allocation10 + $0x38] sm:$0xff]
    %v162 = vld [vmem:[#allocation10 + $0x40] sm:$0xff]
    %v163 = vld [vmem:[#allocation10 + $0x48] sm:$0xff]
    %v164 = vld [vmem:[#allocation10 + $0x50] sm:$0xff]
    %v165 = vld [vmem:[#allocation10 + $0x58] sm:$0xff]
    %v166 = vld [vmem:[#allocation10 + $0x60] sm:$0xff]
    %v167 = vld [vmem:[#allocation10 + $0x68] sm:$0xff]
    %v168 = vld [vmem:[#allocation10 + $0x70] sm:$0xff]
    %v169 = vld [vmem:[#allocation10 + $0x78] sm:$0xff]
    %v170 = vld [vmem:[#allocation10 + $0x80] sm:$0xff]
    %v171 = vld [vmem:[#allocation10 + $0x88] sm:$0xff]
    %v172 = vld [vmem:[#allocation10 + $0x90] sm:$0xff]
    %v173 = vld [vmem:[#allocation10 + $0x98] sm:$0xff]
    %v174 = vld [vmem:[#allocation10 + $0xa0] sm:$0xff]
    %v175 = vld [vmem:[#allocation10 + $0xa8] sm:$0xff]
    %v176 = vld [vmem:[#allocation10 + $0xb0] sm:$0xff]
    %v177 = vld [vmem:[#allocation10 + $0xb8] sm:$0xff]
    %v178 = vld [vmem:[#allocation10 + $0xc0] sm:$0xff]
    %v179 = vld [vmem:[#allocation10 + $0xc8] sm:$0xff]
    %v180 = vld [vmem:[#allocation10 + $0xd0] sm:$0xff]
    %v181 = vld [vmem:[#allocation10 + $0xd8] sm:$0xff]
    %v182 = vld [vmem:[#allocation10 + $0xe0] sm:$0xff]
    %v183 = vld [vmem:[#allocation10 + $0xe8] sm:$0xff]
    %v184 = vld [vmem:[#allocation10 + $0xf0] sm:$0xff]
    %v185 = vld [vmem:[#allocation10 + $0xf8] sm:$0xff]
    %v186 = vld [vmem:[#allocation11] sm:$0x3]
    %v187 = vld [vmem:[%s9] sm:$0x3]
    %v188 = vld [vmem:[%s10] sm:$0x3]
    %v189 = vld [vmem:[%s11] sm:$0xff]
    %v190 = vld [vmem:[%s11 + $0x8] sm:$0xff]
    %v191 = vld [vmem:[%s11 + $0x10] sm:$0xff]
    %v192 = vld [vmem:[%s11 + $0x18] sm:$0xff]
    %v193 = vld [vmem:[%s11 + $0x20] sm:$0xff]
    %v194 = vld [vmem:[%s11 + $0x28] sm:$0xff]
    %v195 = vld [vmem:[%s11 + $0x30] sm:$0xff]
    %v196 = vld [vmem:[%s11 + $0x38] sm:$0xff]
    %v197 = vld [vmem:[%s12] sm:$0x1]
    %v199 = vlaneseq
    %v200 = vshrl.u32 %v199, 7
    %v201 = vsub.s32 0, %v200
    %v202 = vrot.slane %v134, %v201
    %v212 = vcombine.low %v119, %v120
    %v213 = vcombine.low %v121, %v122
    %v214 = vcombine.low %v123, %v124
    %v215 = vcombine.low %v125, %v126
    %vm216 = vcmask 64512
    %v217 = vsel %vm216, %v212, 0
    %v219 = vsel %vm216, %v213, 0
    %v221 = vsel %vm216, %v214, 0
    %v223 = vsel %vm216, %v215, 0
    %225 = vmatprep.subr.mxu0 0.0
    %226 = vmatpush1.msra.mxu0 %v133
    %227 = vmatprep.subr.mxu0 0.0
    %228 = vmatpush1.msra.mxu0 0.0
    %229 = vmatprep.subr.mxu0 0.0
    %230 = vmatpush1.msra.mxu0 0.0
    %231 = vmatprep.subr.mxu0 0.0
    %232 = vmatpush1.msra.mxu0 0.0
    %233 = vmatprep.subr.mxu0 0.0
    %234 = vmatpush1.msra.mxu0 0.0
    %235 = vmatprep.subr.mxu0 0.0
    %236 = vmatpush1.msra.mxu0 0.0
    %237 = vmatprep.subr.mxu0 0.0
    %238 = vmatpush1.msra.mxu0 0.0
    %239 = vmatprep.subr.mxu0 0.0
    %240 = vmatpush1.msra.mxu0 0.0
    %241 = vmatprep.subr.mxu0 0.0
    %242 = vmatpush1.msra.mxu0 0.0
    %243 = vmatprep.subr.mxu0 0.0
    %244 = vmatpush1.msra.mxu0 0.0
    %245 = vmatprep.subr.mxu0 0.0
    %246 = vmatpush1.msra.mxu0 0.0
    %247 = vmatprep.subr.mxu0 0.0
    %248 = vmatpush1.msra.mxu0 0.0
    %249 = vmatprep.subr.mxu0 0.0
    %250 = vmatpush1.msra.mxu0 0.0
    %251 = vmatprep.subr.mxu0 0.0
    %252 = vmatpush1.msra.mxu0 0.0
    %253 = vmatprep.subr.mxu0 0.0
    %254 = vmatpush1.msra.mxu0 0.0
    %255 = vmatprep.subr.mxu0 0.0
    %256 = vmatpush1.msra.mxu0 0.0
    %257 = vmatprep.subr.mxu0 0.0
    %258 = vmatpush1.msra.mxu0 0.0
    %259 = vmatprep.subr.mxu0 0.0
    %260 = vmatpush1.msra.mxu0 0.0
    %261 = vmatprep.subr.mxu0 0.0
    %262 = vmatpush1.msra.mxu0 0.0
    %263 = vmatprep.subr.mxu0 0.0
    %264 = vmatpush1.msra.mxu0 0.0
    %265 = vmatprep.subr.mxu0 0.0
    %266 = vmatpush1.msra.mxu0 0.0
    %267 = vmatprep.subr.mxu0 0.0
    %268 = vmatpush1.msra.mxu0 0.0
    %269 = vmatprep.subr.mxu0 0.0
    %270 = vmatpush1.msra.mxu0 0.0
    %271 = vmatprep.subr.mxu0 0.0
    %272 = vmatpush1.msra.mxu0 0.0
    %273 = vmatprep.subr.mxu0 0.0
    %274 = vmatpush1.msra.mxu0 0.0
    %275 = vmatprep.subr.mxu0 0.0
    %276 = vmatpush1.msra.mxu0 0.0
    %277 = vmatprep.subr.mxu0 0.0
    %278 = vmatpush1.msra.mxu0 0.0
    %279 = vmatprep.subr.mxu0 0.0
    %280 = vmatpush1.msra.mxu0 0.0
    %281 = vmatprep.subr.mxu0 0.0
    %282 = vmatpush1.msra.mxu0 0.0
    %283 = vmatprep.subr.mxu0 0.0
    %284 = vmatpush1.msra.mxu0 0.0
    %285 = vmatprep.subr.mxu0 0.0
    %286 = vmatpush1.msra.mxu0 0.0
    %287 = vmatprep.subr.mxu0 0.0
    %288 = vmatpush1.msra.mxu0 0.0
    %289 = vmatprep.mubr.f32.mxu0 0.0
    %290 = vmatmul.mubr.f32.gmra.mrb[0].mxu0 %v217
    %v291 = vpop.f32.mrb[0].mxu0
    %v292 = vadd.f32 %v202, %v291
    %v293 = vpop.f32.mrb[0].mxu0
    %294 = vmatprep.mubr.f32.mxu0 0.0
    %295 = vmatmul.mubr.f32.gmra.mrb[0].mxu0 %v219
    %v296 = vpop.f32.mrb[0].mxu0
    %v297 = vadd.f32 %v202, %v296
    %v298 = vpop.f32.mrb[0].mxu0
    %299 = vmatprep.mubr.f32.mxu0 0.0
    %300 = vmatmul.mubr.f32.gmra.mrb[0].mxu0 %v221
    %v301 = vpop.f32.mrb[0].mxu0
    %v302 = vadd.f32 %v202, %v301
    %v303 = vpop.f32.mrb[0].mxu0
    %304 = vmatprep.mubr.f32.mxu0 0.0
    %305 = vmatmul.mubr.f32.gmra.mrb[0].mxu0 %v223
    %v306 = vpop.f32.mrb[0].mxu0
    %v307 = vadd.f32 %v202, %v306
    %v308 = vpop.f32.mrb[0].mxu0
    %309 = vdwg.mxu0
    %v311 = vlaneseq
    %v312 = vshrl.u32 %v311, 7
    %v313 = vsub.s32 0, %v312
    %v314 = vrot.slane %v137, %v313
    %v322 = vcombine.low %v127, %v128
    %v323 = vcombine.low %v129, %v130
    %v324 = vcombine.low %v131, %v132
    %vm325 = vcmask 97280
    %v326 = vsel %vm325, %v322, 0
    %v328 = vsel %vm325, %v323, 0
    %v330 = vsel %vm325, %v324, 0
    %vm332 = vcmask 1043456
    %v334 = vsel %vm332, %v136, 0
    %336 = vmatprep.subr.mxu0 0.0
    %337 = vmatpush1.msra.mxu0 %v135
    %338 = vmatprep.subr.mxu0 0.0
    %339 = vmatpush1.msra.mxu0 %v334
    %340 = vmatprep.subr.mxu0 0.0
    %341 = vmatpush1.msra.mxu0 0.0
    %342 = vmatprep.subr.mxu0 0.0
    %343 = vmatpush1.msra.mxu0 0.0
    %344 = vmatprep.subr.mxu0 0.0
    %345 = vmatpush1.msra.mxu0 0.0
    %346 = vmatprep.subr.mxu0 0.0
    %347 = vmatpush1.msra.mxu0 0.0
    %348 = vmatprep.subr.mxu0 0.0
    %349 = vmatpush1.msra.mxu0 0.0
    %350 = vmatprep.subr.mxu0 0.0
    %351 = vmatpush1.msra.mxu0 0.0
    %352 = vmatprep.subr.mxu0 0.0
    %353 = vmatpush1.msra.mxu0 0.0
    %354 = vmatprep.subr.mxu0 0.0
    %355 = vmatpush1.msra.mxu0 0.0
    %356 = vmatprep.subr.mxu0 0.0
    %357 = vmatpush1.msra.mxu0 0.0
    %358 = vmatprep.subr.mxu0 0.0
    %359 = vmatpush1.msra.mxu0 0.0
    %360 = vmatprep.subr.mxu0 0.0
    %361 = vmatpush1.msra.mxu0 0.0
    %362 = vmatprep.subr.mxu0 0.0
    %363 = vmatpush1.msra.mxu0 0.0
    %364 = vmatprep.subr.mxu0 0.0
    %365 = vmatpush1.msra.mxu0 0.0
    %366 = vmatprep.subr.mxu0 0.0
    %367 = vmatpush1.msra.mxu0 0.0
    %368 = vmatprep.subr.mxu0 0.0
    %369 = vmatpush1.msra.mxu0 0.0
    %370 = vmatprep.subr.mxu0 0.0
    %371 = vmatpush1.msra.mxu0 0.0
    %372 = vmatprep.subr.mxu0 0.0
    %373 = vmatpush1.msra.mxu0 0.0
    %374 = vmatprep.subr.mxu0 0.0
    %375 = vmatpush1.msra.mxu0 0.0
    %376 = vmatprep.subr.mxu0 0.0
    %377 = vmatpush1.msra.mxu0 0.0
    %378 = vmatprep.subr.mxu0 0.0
    %379 = vmatpush1.msra.mxu0 0.0
    %380 = vmatprep.subr.mxu0 0.0
    %381 = vmatpush1.msra.mxu0 0.0
    %382 = vmatprep.subr.mxu0 0.0
    %383 = vmatpush1.msra.mxu0 0.0
    %384 = vmatprep.subr.mxu0 0.0
    %385 = vmatpush1.msra.mxu0 0.0
    %386 = vmatprep.subr.mxu0 0.0
    %387 = vmatpush1.msra.mxu0 0.0
    %388 = vmatprep.subr.mxu0 0.0
    %389 = vmatpush1.msra.mxu0 0.0
    %390 = vmatprep.subr.mxu0 0.0
    %391 = vmatpush1.msra.mxu0 0.0
    %392 = vmatprep.subr.mxu0 0.0
    %393 = vmatpush1.msra.mxu0 0.0
    %394 = vmatprep.subr.mxu0 0.0
    %395 = vmatpush1.msra.mxu0 0.0
    %396 = vmatprep.subr.mxu0 0.0
    %397 = vmatpush1.msra.mxu0 0.0
    %398 = vmatprep.subr.mxu0 0.0
    %399 = vmatpush1.msra.mxu0 0.0
    %400 = vmatprep.mubr.f32.mxu0 0.0
    %401 = vmatmul.mubr.f32.gmra.mrb[0].mxu0 %v326
    %v402 = vpop.f32.mrb[0].mxu0
    %v403 = vadd.f32 %v314, %v402
    %v404 = vpop.f32.mrb[0].mxu0
    %405 = vmatprep.mubr.f32.mxu0 0.0
    %406 = vmatmul.mubr.f32.gmra.mrb[0].mxu0 %v328
    %v407 = vpop.f32.mrb[0].mxu0
    %v408 = vadd.f32 %v314, %v407
    %v409 = vpop.f32.mrb[0].mxu0
    %410 = vmatprep.mubr.f32.mxu0 0.0
    %411 = vmatmul.mubr.f32.gmra.mrb[0].mxu0 %v330
    %v412 = vpop.f32.mrb[0].mxu0
    %v413 = vadd.f32 %v314, %v412
    %v414 = vpop.f32.mrb[0].mxu0
    %415 = vdwg.mxu0
    %vm416 = vcmask 523264
    %v418 = vsel %vm416, 0.0, 0
    %420 = vmatprep.subr.mxu0 %v139
    %421 = vmatpush1.msra.mxu0 %v138
    %422 = vmatprep.subr.mxu0 %v141
    %423 = vmatpush1.msra.mxu0 %v140
    %424 = vmatprep.subr.mxu0 %v143
    %425 = vmatpush1.msra.mxu0 %v142
    %426 = vmatprep.subr.mxu0 %v145
    %427 = vmatpush1.msra.mxu0 %v144
    %428 = vmatprep.subr.mxu0 %v147
    %429 = vmatpush1.msra.mxu0 %v146
    %430 = vmatprep.subr.mxu0 %v149
    %431 = vmatpush1.msra.mxu0 %v148
    %432 = vmatprep.subr.mxu0 %v151
    %433 = vmatpush1.msra.mxu0 %v150
    %434 = vmatprep.subr.mxu0 %v153
    %435 = vmatpush1.msra.mxu0 %v152
    %436 = vmatprep.subr.mxu0 0.0
    %437 = vmatpush1.msra.mxu0 0.0
    %438 = vmatprep.subr.mxu0 0.0
    %439 = vmatpush1.msra.mxu0 0.0
    %440 = vmatprep.subr.mxu0 0.0
    %441 = vmatpush1.msra.mxu0 0.0
    %442 = vmatprep.subr.mxu0 0.0
    %443 = vmatpush1.msra.mxu0 0.0
    %444 = vmatprep.subr.mxu0 0.0
    %445 = vmatpush1.msra.mxu0 0.0
    %446 = vmatprep.subr.mxu0 0.0
    %447 = vmatpush1.msra.mxu0 0.0
    %448 = vmatprep.subr.mxu0 0.0
    %449 = vmatpush1.msra.mxu0 0.0
    %450 = vmatprep.subr.mxu0 0.0
    %451 = vmatpush1.msra.mxu0 0.0
    %452 = vmatprep.subr.mxu0 0.0
    %453 = vmatpush1.msra.mxu0 0.0
    %454 = vmatprep.subr.mxu0 0.0
    %455 = vmatpush1.msra.mxu0 0.0
    %456 = vmatprep.subr.mxu0 0.0
    %457 = vmatpush1.msra.mxu0 0.0
    %458 = vmatprep.subr.mxu0 0.0
    %459 = vmatpush1.msra.mxu0 0.0
    %460 = vmatprep.subr.mxu0 0.0
    %461 = vmatpush1.msra.mxu0 0.0
    %462 = vmatprep.subr.mxu0 0.0
    %463 = vmatpush1.msra.mxu0 0.0
    %464 = vmatprep.subr.mxu0 0.0
    %465 = vmatpush1.msra.mxu0 0.0
    %466 = vmatprep.subr.mxu0 0.0
    %467 = vmatpush1.msra.mxu0 0.0
    %468 = vmatprep.subr.mxu0 0.0
    %469 = vmatpush1.msra.mxu0 0.0
    %470 = vmatprep.subr.mxu0 0.0
    %471 = vmatpush1.msra.mxu0 0.0
    %472 = vmatprep.subr.mxu0 0.0
    %473 = vmatpush1.msra.mxu0 0.0
    %474 = vmatprep.subr.mxu0 0.0
    %475 = vmatpush1.msra.mxu0 0.0
    %476 = vmatprep.subr.mxu0 0.0
    %477 = vmatpush1.msra.mxu0 0.0
    %478 = vmatprep.subr.mxu0 0.0
    %479 = vmatpush1.msra.mxu0 0.0
    %480 = vmatprep.subr.mxu0 0.0
    %481 = vmatpush1.msra.mxu0 0.0
    %482 = vmatprep.subr.mxu0 0.0
    %483 = vmatpush1.msra.mxu0 0.0
    %484 = vmatprep.mubr.f32.mxu0 0.0
    %485 = vmatmul.mubr.f32.gmra.mrb[0].mxu0 %v418
    %v486 = vpop.f32.mrb[0].mxu0
    %v487 = vadd.f32 0.0, %v486
    %v488 = vpop.f32.mrb[0].mxu0
    %v489 = vadd.f32 0.0, %v488
    %490 = vdwg.mxu0
    %v491 = vadd.f32 %v292, %v487
    %v492 = vadd.f32 %v403, %v489
    %v493 = vtanh.pop %v491
    %v494 = vtanh.pop %v492
    %v496 = vlaneseq
    %v497 = vshrl.u32 %v496, 7
    %v498 = vsub.s32 0, %v497
    %v499 = vrot.slane %v187, %v498
    %v500 = vlaneseq
    %v501 = vshrl.u32 %v500, 7
    %v502 = vsub.s32 1, %v501
    %v503 = vrot.slane %v187, %v502
    %v506 = vmul.f32 %v493, %v499
    %v507 = vmul.f32 %v494, %v503
    %v509 = vlaneseq
    %v510 = vshrl.u32 %v509, 7
    %v511 = vsub.s32 0, %v510
    %v512 = vrot.slane %v188, %v511
    %v513 = vlaneseq
    %v514 = vshrl.u32 %v513, 7
    %v515 = vsub.s32 1, %v514
    %v516 = vrot.slane %v188, %v515
    %v519 = vadd.f32 %v506, %v512
    %v520 = vadd.f32 %v507, %v516
    %v521 = vmul.f32 %v519, 0.0
    %523 = vrot.lane.b32.xlu0 %v519, 64
    %v524 = vpop.permute.xlu0 %523
    %v526 = vmul.f32 %v519, %v524
    %528 = vrot.lane.b32.xlu0 %v526, 32
    %v529 = vpop.permute.xlu0 %528
    %v531 = vadd.f32 %v521, %v529
    %v532 = vtanh.pop %v531
    %534 = vrot.lane.b32.xlu0 %v532, 64
    %v535 = vpop.permute.xlu0 %534
    %v537 = vmul.f32 %v519, %v535
    %v538 = vmul.f32 %v520, 0.0
    %540 = vrot.lane.b32.xlu0 %v520, 64
    %v541 = vpop.permute.xlu0 %540
    %v543 = vmul.f32 %v520, %v541
    %545 = vrot.lane.b32.xlu0 %v543, 32
    %v546 = vpop.permute.xlu0 %545
    %v548 = vadd.f32 %v538, %v546
    %v549 = vtanh.pop %v548
    %551 = vrot.lane.b32.xlu0 %v549, 64
    %v552 = vpop.permute.xlu0 %551
    %v554 = vmul.f32 %v520, %v552
    %556 = vrot.lane.b32.xlu0 %v537, 32
    %v557 = vpop.permute.xlu0 %556
    %560 = vrot.lane.b32.xlu0 %v554, 96
    %v561 = vpop.permute.xlu0 %560
    %vm563 = vcmask 261120
    %v564 = vsel %vm563, %v557, 0.0
    %v565 = vsel %vm416, %v564, %v561
    %vm566 = vcmask 785408
    %v567 = vsel %vm566, %v565, 0.0
    %v569 = vlaneseq
    %v570 = vshrl.u32 %v569, 7
    %v571 = vsub.s32 0, %v570
    %v572 = vrot.slane %v186, %v571
    %v573 = vlaneseq
    %v574 = vshrl.u32 %v573, 7
    %v575 = vsub.s32 1, %v574
    %v576 = vrot.slane %v186, %v575
    %579 = vmatprep.subr.mxu0 %v155
    %580 = vmatpush1.msra.mxu0 %v154
    %581 = vmatprep.subr.mxu0 %v157
    %582 = vmatpush1.msra.mxu0 %v156
    %583 = vmatprep.subr.mxu0 %v159
    %584 = vmatpush1.msra.mxu0 %v158
    %585 = vmatprep.subr.mxu0 %v161
    %586 = vmatpush1.msra.mxu0 %v160
    %587 = vmatprep.subr.mxu0 %v163
    %588 = vmatpush1.msra.mxu0 %v162
    %589 = vmatprep.subr.mxu0 %v165
    %590 = vmatpush1.msra.mxu0 %v164
    %591 = vmatprep.subr.mxu0 %v167
    %592 = vmatpush1.msra.mxu0 %v166
    %593 = vmatprep.subr.mxu0 %v169
    %594 = vmatpush1.msra.mxu0 %v168
    %595 = vmatprep.subr.mxu0 %v171
    %596 = vmatpush1.msra.mxu0 %v170
    %597 = vmatprep.subr.mxu0 %v173
    %598 = vmatpush1.msra.mxu0 %v172
    %599 = vmatprep.subr.mxu0 %v175
    %600 = vmatpush1.msra.mxu0 %v174
    %601 = vmatprep.subr.mxu0 %v177
    %602 = vmatpush1.msra.mxu0 %v176
    %603 = vmatprep.subr.mxu0 %v179
    %604 = vmatpush1.msra.mxu0 %v178
    %605 = vmatprep.subr.mxu0 %v181
    %606 = vmatpush1.msra.mxu0 %v180
    %607 = vmatprep.subr.mxu0 %v183
    %608 = vmatpush1.msra.mxu0 %v182
    %609 = vmatprep.subr.mxu0 %v185
    %610 = vmatpush1.msra.mxu0 %v184
    %611 = vmatprep.subr.mxu0 0.0
    %612 = vmatpush1.msra.mxu0 0.0
    %613 = vmatprep.subr.mxu0 0.0
    %614 = vmatpush1.msra.mxu0 0.0
    %615 = vmatprep.subr.mxu0 0.0
    %616 = vmatpush1.msra.mxu0 0.0
    %617 = vmatprep.subr.mxu0 0.0
    %618 = vmatpush1.msra.mxu0 0.0
    %619 = vmatprep.subr.mxu0 0.0
    %620 = vmatpush1.msra.mxu0 0.0
    %621 = vmatprep.subr.mxu0 0.0
    %622 = vmatpush1.msra.mxu0 0.0
    %623 = vmatprep.subr.mxu0 0.0
    %624 = vmatpush1.msra.mxu0 0.0
    %625 = vmatprep.subr.mxu0 0.0
    %626 = vmatpush1.msra.mxu0 0.0
    %627 = vmatprep.subr.mxu0 0.0
    %628 = vmatpush1.msra.mxu0 0.0
    %629 = vmatprep.subr.mxu0 0.0
    %630 = vmatpush1.msra.mxu0 0.0
    %631 = vmatprep.subr.mxu0 0.0
    %632 = vmatpush1.msra.mxu0 0.0
    %633 = vmatprep.subr.mxu0 0.0
    %634 = vmatpush1.msra.mxu0 0.0
    %635 = vmatprep.subr.mxu0 0.0
    %636 = vmatpush1.msra.mxu0 0.0
    %637 = vmatprep.subr.mxu0 0.0
    %638 = vmatpush1.msra.mxu0 0.0
    %639 = vmatprep.subr.mxu0 0.0
    %640 = vmatpush1.msra.mxu0 0.0
    %641 = vmatprep.subr.mxu0 0.0
    %642 = vmatpush1.msra.mxu0 0.0
    %643 = vmatprep.mubr.f32.mxu0 0.0
    %644 = vmatmul.mubr.f32.gmra.mrb[0].mxu0 %v567
    %v645 = vpop.f32.mrb[0].mxu0
    %v646 = vadd.f32 %v572, %v645
    %v647 = vpop.f32.mrb[0].mxu0
    %v648 = vadd.f32 %v576, %v647
    %649 = vdwg.mxu0
    %v650 = vtanh.pop %v646
    %v651 = vtanh.pop %v648
    %v652 = vmul.f32 %v650, %v499
    %v653 = vmul.f32 %v651, %v503
    %v654 = vadd.f32 %v652, %v512
    %v655 = vadd.f32 %v653, %v516
    %v656 = vmul.f32 %v654, 0.0
    %658 = vrot.lane.b32.xlu0 %v654, 64
    %v659 = vpop.permute.xlu0 %658
    %v661 = vmul.f32 %v654, %v659
    %663 = vrot.lane.b32.xlu0 %v661, 32
    %v664 = vpop.permute.xlu0 %663
    %v666 = vadd.f32 %v656, %v664
    %v667 = vtanh.pop %v666
    %669 = vrot.lane.b32.xlu0 %v667, 64
    %v670 = vpop.permute.xlu0 %669
    %v672 = vmul.f32 %v654, %v670
    %v673 = vmul.f32 %v655, 0.0
    %675 = vrot.lane.b32.xlu0 %v655, 64
    %v676 = vpop.permute.xlu0 %675
    %v678 = vmul.f32 %v655, %v676
    %680 = vrot.lane.b32.xlu0 %v678, 32
    %v681 = vpop.permute.xlu0 %680
    %v683 = vadd.f32 %v673, %v681
    %v684 = vtanh.pop %v683
    %686 = vrot.lane.b32.xlu0 %v684, 64
    %v687 = vpop.permute.xlu0 %686
    %v689 = vmul.f32 %v655, %v687
    %690 = vrot.lane.b32.xlu0 %v554, 64
    %v691 = vpop.permute.xlu0 %690
    %v693 = vsel %vm563, %v557, %v691
    %v695 = vsel %vm416, %v693, 0
    %697 = vmatprep.subr.mxu0 %v139
    %698 = vmatpush1.msra.mxu0 %v138
    %699 = vmatprep.subr.mxu0 %v141
    %700 = vmatpush1.msra.mxu0 %v140
    %701 = vmatprep.subr.mxu0 %v143
    %702 = vmatpush1.msra.mxu0 %v142
    %703 = vmatprep.subr.mxu0 %v145
    %704 = vmatpush1.msra.mxu0 %v144
    %705 = vmatprep.subr.mxu0 %v147
    %706 = vmatpush1.msra.mxu0 %v146
    %707 = vmatprep.subr.mxu0 %v149
    %708 = vmatpush1.msra.mxu0 %v148
    %709 = vmatprep.subr.mxu0 %v151
    %710 = vmatpush1.msra.mxu0 %v150
    %711 = vmatprep.subr.mxu0 %v153
    %712 = vmatpush1.msra.mxu0 %v152
    %713 = vmatprep.subr.mxu0 0.0
    %714 = vmatpush1.msra.mxu0 0.0
    %715 = vmatprep.subr.mxu0 0.0
    %716 = vmatpush1.msra.mxu0 0.0
    %717 = vmatprep.subr.mxu0 0.0
    %718 = vmatpush1.msra.mxu0 0.0
    %719 = vmatprep.subr.mxu0 0.0
    %720 = vmatpush1.msra.mxu0 0.0
    %721 = vmatprep.subr.mxu0 0.0
    %722 = vmatpush1.msra.mxu0 0.0
    %723 = vmatprep.subr.mxu0 0.0
    %724 = vmatpush1.msra.mxu0 0.0
    %725 = vmatprep.subr.mxu0 0.0
    %726 = vmatpush1.msra.mxu0 0.0
    %727 = vmatprep.subr.mxu0 0.0
    %728 = vmatpush1.msra.mxu0 0.0
    %729 = vmatprep.subr.mxu0 0.0
    %730 = vmatpush1.msra.mxu0 0.0
    %731 = vmatprep.subr.mxu0 0.0
    %732 = vmatpush1.msra.mxu0 0.0
    %733 = vmatprep.subr.mxu0 0.0
    %734 = vmatpush1.msra.mxu0 0.0
    %735 = vmatprep.subr.mxu0 0.0
    %736 = vmatpush1.msra.mxu0 0.0
    %737 = vmatprep.subr.mxu0 0.0
    %738 = vmatpush1.msra.mxu0 0.0
    %739 = vmatprep.subr.mxu0 0.0
    %740 = vmatpush1.msra.mxu0 0.0
    %741 = vmatprep.subr.mxu0 0.0
    %742 = vmatpush1.msra.mxu0 0.0
    %743 = vmatprep.subr.mxu0 0.0
    %744 = vmatpush1.msra.mxu0 0.0
    %745 = vmatprep.subr.mxu0 0.0
    %746 = vmatpush1.msra.mxu0 0.0
    %747 = vmatprep.subr.mxu0 0.0
    %748 = vmatpush1.msra.mxu0 0.0
    %749 = vmatprep.subr.mxu0 0.0
    %750 = vmatpush1.msra.mxu0 0.0
    %751 = vmatprep.subr.mxu0 0.0
    %752 = vmatpush1.msra.mxu0 0.0
    %753 = vmatprep.subr.mxu0 0.0
    %754 = vmatpush1.msra.mxu0 0.0
    %755 = vmatprep.subr.mxu0 0.0
    %756 = vmatpush1.msra.mxu0 0.0
    %757 = vmatprep.subr.mxu0 0.0
    %758 = vmatpush1.msra.mxu0 0.0
    %759 = vmatprep.subr.mxu0 0.0
    %760 = vmatpush1.msra.mxu0 0.0
    %761 = vmatprep.mubr.f32.mxu0 0.0
    %762 = vmatmul.mubr.f32.gmra.mrb[0].mxu0 %v695
    %v763 = vpop.f32.mrb[0].mxu0
    %v764 = vadd.f32 0.0, %v763
    %v765 = vpop.f32.mrb[0].mxu0
    %v766 = vadd.f32 0.0, %v765
    %767 = vdwg.mxu0
    %v770 = vrot.slane %v764, 4
    %v771 = vrot.slane %v766, 4
    %v774 = vadd.f32 %v292, %v770
    %v775 = vadd.f32 %v403, %v771
    %v776 = vtanh.pop %v774
    %v777 = vtanh.pop %v775
    %v778 = vmul.f32 %v776, %v499
    %v779 = vmul.f32 %v777, %v503
    %v780 = vadd.f32 %v778, %v512
    %v781 = vadd.f32 %v779, %v516
    %v783 = vrot.slane %v531, 4
    %v785 = vmul.f32 %v780, %v783
    %787 = vrot.lane.b32.xlu0 %v780, 64
    %v788 = vpop.permute.xlu0 %787
    %v790 = vmul.f32 %v780, %v788
    %792 = vrot.lane.b32.xlu0 %v790, 32
    %v793 = vpop.permute.xlu0 %792
    %v795 = vadd.f32 %v785, %v793
    %v796 = vtanh.pop %v795
    %798 = vrot.lane.b32.xlu0 %v796, 64
    %v799 = vpop.permute.xlu0 %798
    %v801 = vmul.f32 %v780, %v799
    %v803 = vrot.slane %v548, 4
    %v805 = vmul.f32 %v781, %v803
    %807 = vrot.lane.b32.xlu0 %v781, 64
    %v808 = vpop.permute.xlu0 %807
    %v810 = vmul.f32 %v781, %v808
    %812 = vrot.lane.b32.xlu0 %v810, 32
    %v813 = vpop.permute.xlu0 %812
    %v815 = vadd.f32 %v805, %v813
    %v816 = vtanh.pop %v815
    %818 = vrot.lane.b32.xlu0 %v816, 64
    %v819 = vpop.permute.xlu0 %818
    %v821 = vmul.f32 %v781, %v819
    %823 = vrot.lane.b32.xlu0 %v801, 32
    %v824 = vpop.permute.xlu0 %823
    %v827 = vrot.slane %v672, 4
    %828 = vrot.lane.b32.xlu0 %v827, 64
    %v829 = vpop.permute.xlu0 %828
    %832 = vrot.lane.b32.xlu0 %v821, 96
    %v833 = vpop.permute.xlu0 %832
    %v836 = vrot.slane %v689, 4
    %v838 = vsel %vm563, %v824, %v829
    %v839 = vsel %vm416, %v838, %v833
    %v840 = vsel %vm566, %v839, %v836
    %v842 = vrot.slane %v840, 4
    %844 = vmatprep.subr.mxu0 %v155
    %845 = vmatpush1.msra.mxu0 %v154
    %846 = vmatprep.subr.mxu0 %v157
    %847 = vmatpush1.msra.mxu0 %v156
    %848 = vmatprep.subr.mxu0 %v159
    %849 = vmatpush1.msra.mxu0 %v158
    %850 = vmatprep.subr.mxu0 %v161
    %851 = vmatpush1.msra.mxu0 %v160
    %852 = vmatprep.subr.mxu0 %v163
    %853 = vmatpush1.msra.mxu0 %v162
    %854 = vmatprep.subr.mxu0 %v165
    %855 = vmatpush1.msra.mxu0 %v164
    %856 = vmatprep.subr.mxu0 %v167
    %857 = vmatpush1.msra.mxu0 %v166
    %858 = vmatprep.subr.mxu0 %v169
    %859 = vmatpush1.msra.mxu0 %v168
    %860 = vmatprep.subr.mxu0 %v171
    %861 = vmatpush1.msra.mxu0 %v170
    %862 = vmatprep.subr.mxu0 %v173
    %863 = vmatpush1.msra.mxu0 %v172
    %864 = vmatprep.subr.mxu0 %v175
    %865 = vmatpush1.msra.mxu0 %v174
    %866 = vmatprep.subr.mxu0 %v177
    %867 = vmatpush1.msra.mxu0 %v176
    %868 = vmatprep.subr.mxu0 %v179
    %869 = vmatpush1.msra.mxu0 %v178
    %870 = vmatprep.subr.mxu0 %v181
    %871 = vmatpush1.msra.mxu0 %v180
    %872 = vmatprep.subr.mxu0 %v183
    %873 = vmatpush1.msra.mxu0 %v182
    %874 = vmatprep.subr.mxu0 %v185
    %875 = vmatpush1.msra.mxu0 %v184
    %876 = vmatprep.subr.mxu0 0.0
    %877 = vmatpush1.msra.mxu0 0.0
    %878 = vmatprep.subr.mxu0 0.0
    %879 = vmatpush1.msra.mxu0 0.0
    %880 = vmatprep.subr.mxu0 0.0
    %881 = vmatpush1.msra.mxu0 0.0
    %882 = vmatprep.subr.mxu0 0.0
    %883 = vmatpush1.msra.mxu0 0.0
    %884 = vmatprep.subr.mxu0 0.0
    %885 = vmatpush1.msra.mxu0 0.0
    %886 = vmatprep.subr.mxu0 0.0
    %887 = vmatpush1.msra.mxu0 0.0
    %888 = vmatprep.subr.mxu0 0.0
    %889 = vmatpush1.msra.mxu0 0.0
    %890 = vmatprep.subr.mxu0 0.0
    %891 = vmatpush1.msra.mxu0 0.0
    %892 = vmatprep.subr.mxu0 0.0
    %893 = vmatpush1.msra.mxu0 0.0
    %894 = vmatprep.subr.mxu0 0.0
    %895 = vmatpush1.msra.mxu0 0.0
    %896 = vmatprep.subr.mxu0 0.0
    %897 = vmatpush1.msra.mxu0 0.0
    %898 = vmatprep.subr.mxu0 0.0
    %899 = vmatpush1.msra.mxu0 0.0
    %900 = vmatprep.subr.mxu0 0.0
    %901 = vmatpush1.msra.mxu0 0.0
    %902 = vmatprep.subr.mxu0 0.0
    %903 = vmatpush1.msra.mxu0 0.0
    %904 = vmatprep.subr.mxu0 0.0
    %905 = vmatpush1.msra.mxu0 0.0
    %906 = vmatprep.subr.mxu0 0.0
    %907 = vmatpush1.msra.mxu0 0.0
    %908 = vmatprep.mubr.f32.mxu0 0.0
    %909 = vmatmul.mubr.f32.gmra.mrb[0].mxu0 %v842
    %v910 = vpop.f32.mrb[0].mxu0
    %v911 = vadd.f32 %v572, %v910
    %v912 = vpop.f32.mrb[0].mxu0
    %v913 = vadd.f32 %v576, %v912
    %914 = vdwg.mxu0
    %v915 = vtanh.pop %v911
    %v916 = vtanh.pop %v913
    %v917 = vmul.f32 %v915, %v499
    %v918 = vmul.f32 %v916, %v503
    %v919 = vadd.f32 %v917, %v512
    %v920 = vadd.f32 %v918, %v516
    %v921 = vmul.f32 %v919, %v666
    %923 = vrot.lane.b32.xlu0 %v919, 64
    %v924 = vpop.permute.xlu0 %923
    %v926 = vmul.f32 %v919, %v924
    %928 = vrot.lane.b32.xlu0 %v926, 32
    %v929 = vpop.permute.xlu0 %928
    %v931 = vadd.f32 %v921, %v929
    %v932 = vtanh.pop %v931
    %934 = vrot.lane.b32.xlu0 %v932, 64
    %v935 = vpop.permute.xlu0 %934
    %v937 = vmul.f32 %v919, %v935
    %v938 = vmul.f32 %v920, %v683
    %940 = vrot.lane.b32.xlu0 %v920, 64
    %v941 = vpop.permute.xlu0 %940
    %v943 = vmul.f32 %v920, %v941
    %945 = vrot.lane.b32.xlu0 %v943, 32
    %v946 = vpop.permute.xlu0 %945
    %v948 = vadd.f32 %v938, %v946
    %v949 = vtanh.pop %v948
    %951 = vrot.lane.b32.xlu0 %v949, 64
    %v952 = vpop.permute.xlu0 %951
    %v954 = vmul.f32 %v920, %v952
    %955 = vrot.lane.b32.xlu0 %v821, 64
    %v956 = vpop.permute.xlu0 %955
    %v958 = vsel %vm563, %v824, %v956
    %v960 = vrot.slane %v958, 4
    %v961 = vsel %vm416, %v960, 0
    %963 = vmatprep.subr.mxu0 %v139
    %964 = vmatpush1.msra.mxu0 %v138
    %965 = vmatprep.subr.mxu0 %v141
    %966 = vmatpush1.msra.mxu0 %v140
    %967 = vmatprep.subr.mxu0 %v143
    %968 = vmatpush1.msra.mxu0 %v142
    %969 = vmatprep.subr.mxu0 %v145
    %970 = vmatpush1.msra.mxu0 %v144
    %971 = vmatprep.subr.mxu0 %v147
    %972 = vmatpush1.msra.mxu0 %v146
    %973 = vmatprep.subr.mxu0 %v149
    %974 = vmatpush1.msra.mxu0 %v148
    %975 = vmatprep.subr.mxu0 %v151
    %976 = vmatpush1.msra.mxu0 %v150
    %977 = vmatprep.subr.mxu0 %v153
    %978 = vmatpush1.msra.mxu0 %v152
    %979 = vmatprep.subr.mxu0 0.0
    %980 = vmatpush1.msra.mxu0 0.0
    %981 = vmatprep.subr.mxu0 0.0
    %982 = vmatpush1.msra.mxu0 0.0
    %983 = vmatprep.subr.mxu0 0.0
    %984 = vmatpush1.msra.mxu0 0.0
    %985 = vmatprep.subr.mxu0 0.0
    %986 = vmatpush1.msra.mxu0 0.0
    %987 = vmatprep.subr.mxu0 0.0
    %988 = vmatpush1.msra.mxu0 0.0
    %989 = vmatprep.subr.mxu0 0.0
    %990 = vmatpush1.msra.mxu0 0.0
    %991 = vmatprep.subr.mxu0 0.0
    %992 = vmatpush1.msra.mxu0 0.0
    %993 = vmatprep.subr.mxu0 0.0
    %994 = vmatpush1.msra.mxu0 0.0
    %995 = vmatprep.subr.mxu0 0.0
    %996 = vmatpush1.msra.mxu0 0.0
    %997 = vmatprep.subr.mxu0 0.0
    %998 = vmatpush1.msra.mxu0 0.0
    %999 = vmatprep.subr.mxu0 0.0
    %1000 = vmatpush1.msra.mxu0 0.0
    %1001 = vmatprep.subr.mxu0 0.0
    %1002 = vmatpush1.msra.mxu0 0.0
    %1003 = vmatprep.subr.mxu0 0.0
    %1004 = vmatpush1.msra.mxu0 0.0
    %1005 = vmatprep.subr.mxu0 0.0
    %1006 = vmatpush1.msra.mxu0 0.0
    %1007 = vmatprep.subr.mxu0 0.0
    %1008 = vmatpush1.msra.mxu0 0.0
    %1009 = vmatprep.subr.mxu0 0.0
    %1010 = vmatpush1.msra.mxu0 0.0
    %1011 = vmatprep.subr.mxu0 0.0
    %1012 = vmatpush1.msra.mxu0 0.0
    %1013 = vmatprep.subr.mxu0 0.0
    %1014 = vmatpush1.msra.mxu0 0.0
    %1015 = vmatprep.subr.mxu0 0.0
    %1016 = vmatpush1.msra.mxu0 0.0
    %1017 = vmatprep.subr.mxu0 0.0
    %1018 = vmatpush1.msra.mxu0 0.0
    %1019 = vmatprep.subr.mxu0 0.0
    %1020 = vmatpush1.msra.mxu0 0.0
    %1021 = vmatprep.subr.mxu0 0.0
    %1022 = vmatpush1.msra.mxu0 0.0
    %1023 = vmatprep.subr.mxu0 0.0
    %1024 = vmatpush1.msra.mxu0 0.0
    %1025 = vmatprep.subr.mxu0 0.0
    %1026 = vmatpush1.msra.mxu0 0.0
    %1027 = vmatprep.mubr.f32.mxu0 0.0
    %1028 = vmatmul.mubr.f32.gmra.mrb[0].mxu0 %v961
    %v1029 = vpop.f32.mrb[0].mxu0
    %v1030 = vadd.f32 0.0, %v1029
    %v1031 = vpop.f32.mrb[0].mxu0
    %v1032 = vadd.f32 0.0, %v1031
    %1033 = vdwg.mxu0
    %v1034 = vadd.f32 %v297, %v1030
    %v1035 = vadd.f32 %v408, %v1032
    %v1036 = vtanh.pop %v1034
    %v1037 = vtanh.pop %v1035
    %v1038 = vmul.f32 %v1036, %v499
    %v1039 = vmul.f32 %v1037, %v503
    %v1040 = vadd.f32 %v1038, %v512
    %v1041 = vadd.f32 %v1039, %v516
    %v1043 = vrot.slane %v795, 4
    %v1045 = vmul.f32 %v1040, %v1043
    %1047 = vrot.lane.b32.xlu0 %v1040, 64
    %v1048 = vpop.permute.xlu0 %1047
    %v1050 = vmul.f32 %v1040, %v1048
    %1052 = vrot.lane.b32.xlu0 %v1050, 32
    %v1053 = vpop.permute.xlu0 %1052
    %v1055 = vadd.f32 %v1045, %v1053
    %v1056 = vtanh.pop %v1055
    %1058 = vrot.lane.b32.xlu0 %v1056, 64
    %v1059 = vpop.permute.xlu0 %1058
    %v1061 = vmul.f32 %v1040, %v1059
    %v1063 = vrot.slane %v815, 4
    %v1065 = vmul.f32 %v1041, %v1063
    %1067 = vrot.lane.b32.xlu0 %v1041, 64
    %v1068 = vpop.permute.xlu0 %1067
    %v1070 = vmul.f32 %v1041, %v1068
    %1072 = vrot.lane.b32.xlu0 %v1070, 32
    %v1073 = vpop.permute.xlu0 %1072
    %v1075 = vadd.f32 %v1065, %v1073
    %v1076 = vtanh.pop %v1075
    %1078 = vrot.lane.b32.xlu0 %v1076, 64
    %v1079 = vpop.permute.xlu0 %1078
    %v1081 = vmul.f32 %v1041, %v1079
    %1083 = vrot.lane.b32.xlu0 %v1061, 32
    %v1084 = vpop.permute.xlu0 %1083
    %1087 = vrot.lane.b32.xlu0 %v937, 64
    %v1088 = vpop.permute.xlu0 %1087
    %1091 = vrot.lane.b32.xlu0 %v1081, 96
    %v1092 = vpop.permute.xlu0 %1091
    %v1094 = vsel %vm563, %v1084, %v1088
    %v1095 = vsel %vm416, %v1094, %v1092
    %v1096 = vsel %vm566, %v1095, %v954
    %1097 = vmatprep.subr.mxu0 %v155
    %1098 = vmatpush1.msra.mxu0 %v154
    %1099 = vmatprep.subr.mxu0 %v157
    %1100 = vmatpush1.msra.mxu0 %v156
    %1101 = vmatprep.subr.mxu0 %v159
    %1102 = vmatpush1.msra.mxu0 %v158
    %1103 = vmatprep.subr.mxu0 %v161
    %1104 = vmatpush1.msra.mxu0 %v160
    %1105 = vmatprep.subr.mxu0 %v163
    %1106 = vmatpush1.msra.mxu0 %v162
    %1107 = vmatprep.subr.mxu0 %v165
    %1108 = vmatpush1.msra.mxu0 %v164
    %1109 = vmatprep.subr.mxu0 %v167
    %1110 = vmatpush1.msra.mxu0 %v166
    %1111 = vmatprep.subr.mxu0 %v169
    %1112 = vmatpush1.msra.mxu0 %v168
    %1113 = vmatprep.subr.mxu0 %v171
    %1114 = vmatpush1.msra.mxu0 %v170
    %1115 = vmatprep.subr.mxu0 %v173
    %1116 = vmatpush1.msra.mxu0 %v172
    %1117 = vmatprep.subr.mxu0 %v175
    %1118 = vmatpush1.msra.mxu0 %v174
    %1119 = vmatprep.subr.mxu0 %v177
    %1120 = vmatpush1.msra.mxu0 %v176
    %1121 = vmatprep.subr.mxu0 %v179
    %1122 = vmatpush1.msra.mxu0 %v178
    %1123 = vmatprep.subr.mxu0 %v181
    %1124 = vmatpush1.msra.mxu0 %v180
    %1125 = vmatprep.subr.mxu0 %v183
    %1126 = vmatpush1.msra.mxu0 %v182
    %1127 = vmatprep.subr.mxu0 %v185
    %1128 = vmatpush1.msra.mxu0 %v184
    %1129 = vmatprep.subr.mxu0 0.0
    %1130 = vmatpush1.msra.mxu0 0.0
    %1131 = vmatprep.subr.mxu0 0.0
    %1132 = vmatpush1.msra.mxu0 0.0
    %1133 = vmatprep.subr.mxu0 0.0
    %1134 = vmatpush1.msra.mxu0 0.0
    %1135 = vmatprep.subr.mxu0 0.0
    %1136 = vmatpush1.msra.mxu0 0.0
    %1137 = vmatprep.subr.mxu0 0.0
    %1138 = vmatpush1.msra.mxu0 0.0
    %1139 = vmatprep.subr.mxu0 0.0
    %1140 = vmatpush1.msra.mxu0 0.0
    %1141 = vmatprep.subr.mxu0 0.0
    %1142 = vmatpush1.msra.mxu0 0.0
    %1143 = vmatprep.subr.mxu0 0.0
    %1144 = vmatpush1.msra.mxu0 0.0
    %1145 = vmatprep.subr.mxu0 0.0
    %1146 = vmatpush1.msra.mxu0 0.0
    %1147 = vmatprep.subr.mxu0 0.0
    %1148 = vmatpush1.msra.mxu0 0.0
    %1149 = vmatprep.subr.mxu0 0.0
    %1150 = vmatpush1.msra.mxu0 0.0
    %1151 = vmatprep.subr.mxu0 0.0
    %1152 = vmatpush1.msra.mxu0 0.0
    %1153 = vmatprep.subr.mxu0 0.0
    %1154 = vmatpush1.msra.mxu0 0.0
    %1155 = vmatprep.subr.mxu0 0.0
    %1156 = vmatpush1.msra.mxu0 0.0
    %1157 = vmatprep.subr.mxu0 0.0
    %1158 = vmatpush1.msra.mxu0 0.0
    %1159 = vmatprep.subr.mxu0 0.0
    %1160 = vmatpush1.msra.mxu0 0.0
    %1161 = vmatprep.mubr.f32.mxu0 0.0
    %1162 = vmatmul.mubr.f32.gmra.mrb[0].mxu0 %v1096
    %v1163 = vpop.f32.mrb[0].mxu0
    %v1164 = vadd.f32 %v572, %v1163
    %v1165 = vpop.f32.mrb[0].mxu0
    %v1166 = vadd.f32 %v576, %v1165
    %1167 = vdwg.mxu0
    %v1168 = vtanh.pop %v1164
    %v1169 = vtanh.pop %v1166
    %v1170 = vmul.f32 %v1168, %v499
    %v1171 = vmul.f32 %v1169, %v503
    %v1172 = vadd.f32 %v1170, %v512
    %v1173 = vadd.f32 %v1171, %v516
    %v1174 = vmul.f32 %v1172, %v931
    %1176 = vrot.lane.b32.xlu0 %v1172, 64
    %v1177 = vpop.permute.xlu0 %1176
    %v1179 = vmul.f32 %v1172, %v1177
    %1181 = vrot.lane.b32.xlu0 %v1179, 32
    %v1182 = vpop.permute.xlu0 %1181
    %v1184 = vadd.f32 %v1174, %v1182
    %v1185 = vtanh.pop %v1184
    %1187 = vrot.lane.b32.xlu0 %v1185, 64
    %v1188 = vpop.permute.xlu0 %1187
    %v1190 = vmul.f32 %v1172, %v1188
    %v1191 = vmul.f32 %v1173, %v948
    %1193 = vrot.lane.b32.xlu0 %v1173, 64
    %v1194 = vpop.permute.xlu0 %1193
    %v1196 = vmul.f32 %v1173, %v1194
    %1198 = vrot.lane.b32.xlu0 %v1196, 32
    %v1199 = vpop.permute.xlu0 %1198
    %v1201 = vadd.f32 %v1191, %v1199
    %v1202 = vtanh.pop %v1201
    %1204 = vrot.lane.b32.xlu0 %v1202, 64
    %v1205 = vpop.permute.xlu0 %1204
    %v1207 = vmul.f32 %v1173, %v1205
    %1208 = vrot.lane.b32.xlu0 %v1081, 64
    %v1209 = vpop.permute.xlu0 %1208
    %v1211 = vsel %vm563, %v1084, %v1209
    %v1213 = vsel %vm416, %v1211, 0
    %1215 = vmatprep.subr.mxu0 %v139
    %1216 = vmatpush1.msra.mxu0 %v138
    %1217 = vmatprep.subr.mxu0 %v141
    %1218 = vmatpush1.msra.mxu0 %v140
    %1219 = vmatprep.subr.mxu0 %v143
    %1220 = vmatpush1.msra.mxu0 %v142
    %1221 = vmatprep.subr.mxu0 %v145
    %1222 = vmatpush1.msra.mxu0 %v144
    %1223 = vmatprep.subr.mxu0 %v147
    %1224 = vmatpush1.msra.mxu0 %v146
    %1225 = vmatprep.subr.mxu0 %v149
    %1226 = vmatpush1.msra.mxu0 %v148
    %1227 = vmatprep.subr.mxu0 %v151
    %1228 = vmatpush1.msra.mxu0 %v150
    %1229 = vmatprep.subr.mxu0 %v153
    %1230 = vmatpush1.msra.mxu0 %v152
    %1231 = vmatprep.subr.mxu0 0.0
    %1232 = vmatpush1.msra.mxu0 0.0
    %1233 = vmatprep.subr.mxu0 0.0
    %1234 = vmatpush1.msra.mxu0 0.0
    %1235 = vmatprep.subr.mxu0 0.0
    %1236 = vmatpush1.msra.mxu0 0.0
    %1237 = vmatprep.subr.mxu0 0.0
    %1238 = vmatpush1.msra.mxu0 0.0
    %1239 = vmatprep.subr.mxu0 0.0
    %1240 = vmatpush1.msra.mxu0 0.0
    %1241 = vmatprep.subr.mxu0 0.0
    %1242 = vmatpush1.msra.mxu0 0.0
    %1243 = vmatprep.subr.mxu0 0.0
    %1244 = vmatpush1.msra.mxu0 0.0
    %1245 = vmatprep.subr.mxu0 0.0
    %1246 = vmatpush1.msra.mxu0 0.0
    %1247 = vmatprep.subr.mxu0 0.0
    %1248 = vmatpush1.msra.mxu0 0.0
    %1249 = vmatprep.subr.mxu0 0.0
    %1250 = vmatpush1.msra.mxu0 0.0
    %1251 = vmatprep.subr.mxu0 0.0
    %1252 = vmatpush1.msra.mxu0 0.0
    %1253 = vmatprep.subr.mxu0 0.0
    %1254 = vmatpush1.msra.mxu0 0.0
    %1255 = vmatprep.subr.mxu0 0.0
    %1256 = vmatpush1.msra.mxu0 0.0
    %1257 = vmatprep.subr.mxu0 0.0
    %1258 = vmatpush1.msra.mxu0 0.0
    %1259 = vmatprep.subr.mxu0 0.0
    %1260 = vmatpush1.msra.mxu0 0.0
    %1261 = vmatprep.subr.mxu0 0.0
    %1262 = vmatpush1.msra.mxu0 0.0
    %1263 = vmatprep.subr.mxu0 0.0
    %1264 = vmatpush1.msra.mxu0 0.0
    %1265 = vmatprep.subr.mxu0 0.0
    %1266 = vmatpush1.msra.mxu0 0.0
    %1267 = vmatprep.subr.mxu0 0.0
    %1268 = vmatpush1.msra.mxu0 0.0
    %1269 = vmatprep.subr.mxu0 0.0
    %1270 = vmatpush1.msra.mxu0 0.0
    %1271 = vmatprep.subr.mxu0 0.0
    %1272 = vmatpush1.msra.mxu0 0.0
    %1273 = vmatprep.subr.mxu0 0.0
    %1274 = vmatpush1.msra.mxu0 0.0
    %1275 = vmatprep.subr.mxu0 0.0
    %1276 = vmatpush1.msra.mxu0 0.0
    %1277 = vmatprep.subr.mxu0 0.0
    %1278 = vmatpush1.msra.mxu0 0.0
    %1279 = vmatprep.mubr.f32.mxu0 0.0
    %1280 = vmatmul.mubr.f32.gmra.mrb[0].mxu0 %v1213
    %v1281 = vpop.f32.mrb[0].mxu0
    %v1282 = vadd.f32 0.0, %v1281
    %v1283 = vpop.f32.mrb[0].mxu0
    %v1284 = vadd.f32 0.0, %v1283
    %1285 = vdwg.mxu0
    %v1288 = vrot.slane %v1282, 4
    %v1289 = vrot.slane %v1284, 4
    %v1292 = vadd.f32 %v297, %v1288
    %v1293 = vadd.f32 %v408, %v1289
    %v1294 = vtanh.pop %v1292
    %v1295 = vtanh.pop %v1293
    %v1296 = vmul.f32 %v1294, %v499
    %v1297 = vmul.f32 %v1295, %v503
    %v1298 = vadd.f32 %v1296, %v512
    %v1299 = vadd.f32 %v1297, %v516
    %v1301 = vrot.slane %v1055, 4
    %v1303 = vmul.f32 %v1298, %v1301
    %1305 = vrot.lane.b32.xlu0 %v1298, 64
    %v1306 = vpop.permute.xlu0 %1305
    %v1308 = vmul.f32 %v1298, %v1306
    %1310 = vrot.lane.b32.xlu0 %v1308, 32
    %v1311 = vpop.permute.xlu0 %1310
    %v1313 = vadd.f32 %v1303, %v1311
    %v1314 = vtanh.pop %v1313
    %1316 = vrot.lane.b32.xlu0 %v1314, 64
    %v1317 = vpop.permute.xlu0 %1316
    %v1319 = vmul.f32 %v1298, %v1317
    %v1321 = vrot.slane %v1075, 4
    %v1323 = vmul.f32 %v1299, %v1321
    %1325 = vrot.lane.b32.xlu0 %v1299, 64
    %v1326 = vpop.permute.xlu0 %1325
    %v1328 = vmul.f32 %v1299, %v1326
    %1330 = vrot.lane.b32.xlu0 %v1328, 32
    %v1331 = vpop.permute.xlu0 %1330
    %v1333 = vadd.f32 %v1323, %v1331
    %v1334 = vtanh.pop %v1333
    %1336 = vrot.lane.b32.xlu0 %v1334, 64
    %v1337 = vpop.permute.xlu0 %1336
    %v1339 = vmul.f32 %v1299, %v1337
    %1341 = vrot.lane.b32.xlu0 %v1319, 32
    %v1342 = vpop.permute.xlu0 %1341
    %v1345 = vrot.slane %v1190, 4
    %1346 = vrot.lane.b32.xlu0 %v1345, 64
    %v1347 = vpop.permute.xlu0 %1346
    %1350 = vrot.lane.b32.xlu0 %v1339, 96
    %v1351 = vpop.permute.xlu0 %1350
    %v1354 = vrot.slane %v1207, 4
    %v1356 = vsel %vm563, %v1342, %v1347
    %v1357 = vsel %vm416, %v1356, %v1351
    %v1358 = vsel %vm566, %v1357, %v1354
    %v1360 = vrot.slane %v1358, 4
    %1362 = vmatprep.subr.mxu0 %v155
    %1363 = vmatpush1.msra.mxu0 %v154
    %1364 = vmatprep.subr.mxu0 %v157
    %1365 = vmatpush1.msra.mxu0 %v156
    %1366 = vmatprep.subr.mxu0 %v159
    %1367 = vmatpush1.msra.mxu0 %v158
    %1368 = vmatprep.subr.mxu0 %v161
    %1369 = vmatpush1.msra.mxu0 %v160
    %1370 = vmatprep.subr.mxu0 %v163
    %1371 = vmatpush1.msra.mxu0 %v162
    %1372 = vmatprep.subr.mxu0 %v165
    %1373 = vmatpush1.msra.mxu0 %v164
    %1374 = vmatprep.subr.mxu0 %v167
    %1375 = vmatpush1.msra.mxu0 %v166
    %1376 = vmatprep.subr.mxu0 %v169
    %1377 = vmatpush1.msra.mxu0 %v168
    %1378 = vmatprep.subr.mxu0 %v171
    %1379 = vmatpush1.msra.mxu0 %v170
    %1380 = vmatprep.subr.mxu0 %v173
    %1381 = vmatpush1.msra.mxu0 %v172
    %1382 = vmatprep.subr.mxu0 %v175
    %1383 = vmatpush1.msra.mxu0 %v174
    %1384 = vmatprep.subr.mxu0 %v177
    %1385 = vmatpush1.msra.mxu0 %v176
    %1386 = vmatprep.subr.mxu0 %v179
    %1387 = vmatpush1.msra.mxu0 %v178
    %1388 = vmatprep.subr.mxu0 %v181
    %1389 = vmatpush1.msra.mxu0 %v180
    %1390 = vmatprep.subr.mxu0 %v183
    %1391 = vmatpush1.msra.mxu0 %v182
    %1392 = vmatprep.subr.mxu0 %v185
    %1393 = vmatpush1.msra.mxu0 %v184
    %1394 = vmatprep.subr.mxu0 0.0
    %1395 = vmatpush1.msra.mxu0 0.0
    %1396 = vmatprep.subr.mxu0 0.0
    %1397 = vmatpush1.msra.mxu0 0.0
    %1398 = vmatprep.subr.mxu0 0.0
    %1399 = vmatpush1.msra.mxu0 0.0
    %1400 = vmatprep.subr.mxu0 0.0
    %1401 = vmatpush1.msra.mxu0 0.0
    %1402 = vmatprep.subr.mxu0 0.0
    %1403 = vmatpush1.msra.mxu0 0.0
    %1404 = vmatprep.subr.mxu0 0.0
    %1405 = vmatpush1.msra.mxu0 0.0
    %1406 = vmatprep.subr.mxu0 0.0
    %1407 = vmatpush1.msra.mxu0 0.0
    %1408 = vmatprep.subr.mxu0 0.0
    %1409 = vmatpush1.msra.mxu0 0.0
    %1410 = vmatprep.subr.mxu0 0.0
    %1411 = vmatpush1.msra.mxu0 0.0
    %1412 = vmatprep.subr.mxu0 0.0
    %1413 = vmatpush1.msra.mxu0 0.0
    %1414 = vmatprep.subr.mxu0 0.0
    %1415 = vmatpush1.msra.mxu0 0.0
    %1416 = vmatprep.subr.mxu0 0.0
    %1417 = vmatpush1.msra.mxu0 0.0
    %1418 = vmatprep.subr.mxu0 0.0
    %1419 = vmatpush1.msra.mxu0 0.0
    %1420 = vmatprep.subr.mxu0 0.0
    %1421 = vmatpush1.msra.mxu0 0.0
    %1422 = vmatprep.subr.mxu0 0.0
    %1423 = vmatpush1.msra.mxu0 0.0
    %1424 = vmatprep.subr.mxu0 0.0
    %1425 = vmatpush1.msra.mxu0 0.0
    %1426 = vmatprep.mubr.f32.mxu0 0.0
    %1427 = vmatmul.mubr.f32.gmra.mrb[0].mxu0 %v1360
    %v1428 = vpop.f32.mrb[0].mxu0
    %v1429 = vadd.f32 %v572, %v1428
    %v1430 = vpop.f32.mrb[0].mxu0
    %v1431 = vadd.f32 %v576, %v1430
    %1432 = vdwg.mxu0
    %v1433 = vtanh.pop %v1429
    %v1434 = vtanh.pop %v1431
    %v1435 = vmul.f32 %v1433, %v499
    %v1436 = vmul.f32 %v1434, %v503
    %v1437 = vadd.f32 %v1435, %v512
    %v1438 = vadd.f32 %v1436, %v516
    %v1439 = vmul.f32 %v1437, %v1184
    %1441 = vrot.lane.b32.xlu0 %v1437, 64
    %v1442 = vpop.permute.xlu0 %1441
    %v1444 = vmul.f32 %v1437, %v1442
    %1446 = vrot.lane.b32.xlu0 %v1444, 32
    %v1447 = vpop.permute.xlu0 %1446
    %v1449 = vadd.f32 %v1439, %v1447
    %v1450 = vtanh.pop %v1449
    %1452 = vrot.lane.b32.xlu0 %v1450, 64
    %v1453 = vpop.permute.xlu0 %1452
    %v1455 = vmul.f32 %v1437, %v1453
    %v1456 = vmul.f32 %v1438, %v1201
    %1458 = vrot.lane.b32.xlu0 %v1438, 64
    %v1459 = vpop.permute.xlu0 %1458
    %v1461 = vmul.f32 %v1438, %v1459
    %1463 = vrot.lane.b32.xlu0 %v1461, 32
    %v1464 = vpop.permute.xlu0 %1463
    %v1466 = vadd.f32 %v1456, %v1464
    %v1467 = vtanh.pop %v1466
    %1469 = vrot.lane.b32.xlu0 %v1467, 64
    %v1470 = vpop.permute.xlu0 %1469
    %v1472 = vmul.f32 %v1438, %v1470
    %1473 = vrot.lane.b32.xlu0 %v1339, 64
    %v1474 = vpop.permute.xlu0 %1473
    %v1476 = vsel %vm563, %v1342, %v1474
    %v1478 = vrot.slane %v1476, 4
    %v1479 = vsel %vm416, %v1478, 0
    %1481 = vmatprep.subr.mxu0 %v139
    %1482 = vmatpush1.msra.mxu0 %v138
    %1483 = vmatprep.subr.mxu0 %v141
    %1484 = vmatpush1.msra.mxu0 %v140
    %1485 = vmatprep.subr.mxu0 %v143
    %1486 = vmatpush1.msra.mxu0 %v142
    %1487 = vmatprep.subr.mxu0 %v145
    %1488 = vmatpush1.msra.mxu0 %v144
    %1489 = vmatprep.subr.mxu0 %v147
    %1490 = vmatpush1.msra.mxu0 %v146
    %1491 = vmatprep.subr.mxu0 %v149
    %1492 = vmatpush1.msra.mxu0 %v148
    %1493 = vmatprep.subr.mxu0 %v151
    %1494 = vmatpush1.msra.mxu0 %v150
    %1495 = vmatprep.subr.mxu0 %v153
    %1496 = vmatpush1.msra.mxu0 %v152
    %1497 = vmatprep.subr.mxu0 0.0
    %1498 = vmatpush1.msra.mxu0 0.0
    %1499 = vmatprep.subr.mxu0 0.0
    %1500 = vmatpush1.msra.mxu0 0.0
    %1501 = vmatprep.subr.mxu0 0.0
    %1502 = vmatpush1.msra.mxu0 0.0
    %1503 = vmatprep.subr.mxu0 0.0
    %1504 = vmatpush1.msra.mxu0 0.0
    %1505 = vmatprep.subr.mxu0 0.0
    %1506 = vmatpush1.msra.mxu0 0.0
    %1507 = vmatprep.subr.mxu0 0.0
    %1508 = vmatpush1.msra.mxu0 0.0
    %1509 = vmatprep.subr.mxu0 0.0
    %1510 = vmatpush1.msra.mxu0 0.0
    %1511 = vmatprep.subr.mxu0 0.0
    %1512 = vmatpush1.msra.mxu0 0.0
    %1513 = vmatprep.subr.mxu0 0.0
    %1514 = vmatpush1.msra.mxu0 0.0
    %1515 = vmatprep.subr.mxu0 0.0
    %1516 = vmatpush1.msra.mxu0 0.0
    %1517 = vmatprep.subr.mxu0 0.0
    %1518 = vmatpush1.msra.mxu0 0.0
    %1519 = vmatprep.subr.mxu0 0.0
    %1520 = vmatpush1.msra.mxu0 0.0
    %1521 = vmatprep.subr.mxu0 0.0
    %1522 = vmatpush1.msra.mxu0 0.0
    %1523 = vmatprep.subr.mxu0 0.0
    %1524 = vmatpush1.msra.mxu0 0.0
    %1525 = vmatprep.subr.mxu0 0.0
    %1526 = vmatpush1.msra.mxu0 0.0
    %1527 = vmatprep.subr.mxu0 0.0
    %1528 = vmatpush1.msra.mxu0 0.0
    %1529 = vmatprep.subr.mxu0 0.0
    %1530 = vmatpush1.msra.mxu0 0.0
    %1531 = vmatprep.subr.mxu0 0.0
    %1532 = vmatpush1.msra.mxu0 0.0
    %1533 = vmatprep.subr.mxu0 0.0
    %1534 = vmatpush1.msra.mxu0 0.0
    %1535 = vmatprep.subr.mxu0 0.0
    %1536 = vmatpush1.msra.mxu0 0.0
    %1537 = vmatprep.subr.mxu0 0.0
    %1538 = vmatpush1.msra.mxu0 0.0
    %1539 = vmatprep.subr.mxu0 0.0
    %1540 = vmatpush1.msra.mxu0 0.0
    %1541 = vmatprep.subr.mxu0 0.0
    %1542 = vmatpush1.msra.mxu0 0.0
    %1543 = vmatprep.subr.mxu0 0.0
    %1544 = vmatpush1.msra.mxu0 0.0
    %1545 = vmatprep.mubr.f32.mxu0 0.0
    %1546 = vmatmul.mubr.f32.gmra.mrb[0].mxu0 %v1479
    %v1547 = vpop.f32.mrb[0].mxu0
    %v1548 = vadd.f32 0.0, %v1547
    %v1549 = vpop.f32.mrb[0].mxu0
    %v1550 = vadd.f32 0.0, %v1549
    %1551 = vdwg.mxu0
    %v1552 = vadd.f32 %v302, %v1548
    %v1553 = vadd.f32 %v413, %v1550
    %v1554 = vtanh.pop %v1552
    %v1555 = vtanh.pop %v1553
    %v1556 = vmul.f32 %v1554, %v499
    %v1557 = vmul.f32 %v1555, %v503
    %v1558 = vadd.f32 %v1556, %v512
    %v1559 = vadd.f32 %v1557, %v516
    %v1561 = vrot.slane %v1313, 4
    %v1563 = vmul.f32 %v1558, %v1561
    %1565 = vrot.lane.b32.xlu0 %v1558, 64
    %v1566 = vpop.permute.xlu0 %1565
    %v1568 = vmul.f32 %v1558, %v1566
    %1570 = vrot.lane.b32.xlu0 %v1568, 32
    %v1571 = vpop.permute.xlu0 %1570
    %v1573 = vadd.f32 %v1563, %v1571
    %v1574 = vtanh.pop %v1573
    %1576 = vrot.lane.b32.xlu0 %v1574, 64
    %v1577 = vpop.permute.xlu0 %1576
    %v1579 = vmul.f32 %v1558, %v1577
    %v1581 = vrot.slane %v1333, 4
    %v1583 = vmul.f32 %v1559, %v1581
    %1585 = vrot.lane.b32.xlu0 %v1559, 64
    %v1586 = vpop.permute.xlu0 %1585
    %v1588 = vmul.f32 %v1559, %v1586
    %1590 = vrot.lane.b32.xlu0 %v1588, 32
    %v1591 = vpop.permute.xlu0 %1590
    %v1593 = vadd.f32 %v1583, %v1591
    %v1594 = vtanh.pop %v1593
    %1596 = vrot.lane.b32.xlu0 %v1594, 64
    %v1597 = vpop.permute.xlu0 %1596
    %v1599 = vmul.f32 %v1559, %v1597
    %1601 = vrot.lane.b32.xlu0 %v1579, 32
    %v1602 = vpop.permute.xlu0 %1601
    %1605 = vrot.lane.b32.xlu0 %v1455, 64
    %v1606 = vpop.permute.xlu0 %1605
    %1609 = vrot.lane.b32.xlu0 %v1599, 96
    %v1610 = vpop.permute.xlu0 %1609
    %v1612 = vsel %vm563, %v1602, %v1606
    %v1613 = vsel %vm416, %v1612, %v1610
    %v1614 = vsel %vm566, %v1613, %v1472
    %1615 = vmatprep.subr.mxu0 %v155
    %1616 = vmatpush1.msra.mxu0 %v154
    %1617 = vmatprep.subr.mxu0 %v157
    %1618 = vmatpush1.msra.mxu0 %v156
    %1619 = vmatprep.subr.mxu0 %v159
    %1620 = vmatpush1.msra.mxu0 %v158
    %1621 = vmatprep.subr.mxu0 %v161
    %1622 = vmatpush1.msra.mxu0 %v160
    %1623 = vmatprep.subr.mxu0 %v163
    %1624 = vmatpush1.msra.mxu0 %v162
    %1625 = vmatprep.subr.mxu0 %v165
    %1626 = vmatpush1.msra.mxu0 %v164
    %1627 = vmatprep.subr.mxu0 %v167
    %1628 = vmatpush1.msra.mxu0 %v166
    %1629 = vmatprep.subr.mxu0 %v169
    %1630 = vmatpush1.msra.mxu0 %v168
    %1631 = vmatprep.subr.mxu0 %v171
    %1632 = vmatpush1.msra.mxu0 %v170
    %1633 = vmatprep.subr.mxu0 %v173
    %1634 = vmatpush1.msra.mxu0 %v172
    %1635 = vmatprep.subr.mxu0 %v175
    %1636 = vmatpush1.msra.mxu0 %v174
    %1637 = vmatprep.subr.mxu0 %v177
    %1638 = vmatpush1.msra.mxu0 %v176
    %1639 = vmatprep.subr.mxu0 %v179
    %1640 = vmatpush1.msra.mxu0 %v178
    %1641 = vmatprep.subr.mxu0 %v181
    %1642 = vmatpush1.msra.mxu0 %v180
    %1643 = vmatprep.subr.mxu0 %v183
    %1644 = vmatpush1.msra.mxu0 %v182
    %1645 = vmatprep.subr.mxu0 %v185
    %1646 = vmatpush1.msra.mxu0 %v184
    %1647 = vmatprep.subr.mxu0 0.0
    %1648 = vmatpush1.msra.mxu0 0.0
    %1649 = vmatprep.subr.mxu0 0.0
    %1650 = vmatpush1.msra.mxu0 0.0
    %1651 = vmatprep.subr.mxu0 0.0
    %1652 = vmatpush1.msra.mxu0 0.0
    %1653 = vmatprep.subr.mxu0 0.0
    %1654 = vmatpush1.msra.mxu0 0.0
    %1655 = vmatprep.subr.mxu0 0.0
    %1656 = vmatpush1.msra.mxu0 0.0
    %1657 = vmatprep.subr.mxu0 0.0
    %1658 = vmatpush1.msra.mxu0 0.0
    %1659 = vmatprep.subr.mxu0 0.0
    %1660 = vmatpush1.msra.mxu0 0.0
    %1661 = vmatprep.subr.mxu0 0.0
    %1662 = vmatpush1.msra.mxu0 0.0
    %1663 = vmatprep.subr.mxu0 0.0
    %1664 = vmatpush1.msra.mxu0 0.0
    %1665 = vmatprep.subr.mxu0 0.0
    %1666 = vmatpush1.msra.mxu0 0.0
    %1667 = vmatprep.subr.mxu0 0.0
    %1668 = vmatpush1.msra.mxu0 0.0
    %1669 = vmatprep.subr.mxu0 0.0
    %1670 = vmatpush1.msra.mxu0 0.0
    %1671 = vmatprep.subr.mxu0 0.0
    %1672 = vmatpush1.msra.mxu0 0.0
    %1673 = vmatprep.subr.mxu0 0.0
    %1674 = vmatpush1.msra.mxu0 0.0
    %1675 = vmatprep.subr.mxu0 0.0
    %1676 = vmatpush1.msra.mxu0 0.0
    %1677 = vmatprep.subr.mxu0 0.0
    %1678 = vmatpush1.msra.mxu0 0.0
    %1679 = vmatprep.mubr.f32.mxu0 0.0
    %1680 = vmatmul.mubr.f32.gmra.mrb[0].mxu0 %v1614
    %v1681 = vpop.f32.mrb[0].mxu0
    %v1682 = vadd.f32 %v572, %v1681
    %v1683 = vpop.f32.mrb[0].mxu0
    %v1684 = vadd.f32 %v576, %v1683
    %1685 = vdwg.mxu0
    %v1686 = vtanh.pop %v1682
    %v1687 = vtanh.pop %v1684
    %v1688 = vmul.f32 %v1686, %v499
    %v1689 = vmul.f32 %v1687, %v503
    %v1690 = vadd.f32 %v1688, %v512
    %v1691 = vadd.f32 %v1689, %v516
    %v1692 = vmul.f32 %v1690, %v1449
    %1694 = vrot.lane.b32.xlu0 %v1690, 64
    %v1695 = vpop.permute.xlu0 %1694
    %v1697 = vmul.f32 %v1690, %v1695
    %1699 = vrot.lane.b32.xlu0 %v1697, 32
    %v1700 = vpop.permute.xlu0 %1699
    %v1702 = vadd.f32 %v1692, %v1700
    %v1703 = vtanh.pop %v1702
    %1705 = vrot.lane.b32.xlu0 %v1703, 64
    %v1706 = vpop.permute.xlu0 %1705
    %v1708 = vmul.f32 %v1690, %v1706
    %v1709 = vmul.f32 %v1691, %v1466
    %1711 = vrot.lane.b32.xlu0 %v1691, 64
    %v1712 = vpop.permute.xlu0 %1711
    %v1714 = vmul.f32 %v1691, %v1712
    %1716 = vrot.lane.b32.xlu0 %v1714, 32
    %v1717 = vpop.permute.xlu0 %1716
    %v1719 = vadd.f32 %v1709, %v1717
    %v1720 = vtanh.pop %v1719
    %1722 = vrot.lane.b32.xlu0 %v1720, 64
    %v1723 = vpop.permute.xlu0 %1722
    %v1725 = vmul.f32 %v1691, %v1723
    %1726 = vrot.lane.b32.xlu0 %v1599, 64
    %v1727 = vpop.permute.xlu0 %1726
    %v1729 = vsel %vm563, %v1602, %v1727
    %v1731 = vsel %vm416, %v1729, 0
    %1733 = vmatprep.subr.mxu0 %v139
    %1734 = vmatpush1.msra.mxu0 %v138
    %1735 = vmatprep.subr.mxu0 %v141
    %1736 = vmatpush1.msra.mxu0 %v140
    %1737 = vmatprep.subr.mxu0 %v143
    %1738 = vmatpush1.msra.mxu0 %v142
    %1739 = vmatprep.subr.mxu0 %v145
    %1740 = vmatpush1.msra.mxu0 %v144
    %1741 = vmatprep.subr.mxu0 %v147
    %1742 = vmatpush1.msra.mxu0 %v146
    %1743 = vmatprep.subr.mxu0 %v149
    %1744 = vmatpush1.msra.mxu0 %v148
    %1745 = vmatprep.subr.mxu0 %v151
    %1746 = vmatpush1.msra.mxu0 %v150
    %1747 = vmatprep.subr.mxu0 %v153
    %1748 = vmatpush1.msra.mxu0 %v152
    %1749 = vmatprep.subr.mxu0 0.0
    %1750 = vmatpush1.msra.mxu0 0.0
    %1751 = vmatprep.subr.mxu0 0.0
    %1752 = vmatpush1.msra.mxu0 0.0
    %1753 = vmatprep.subr.mxu0 0.0
    %1754 = vmatpush1.msra.mxu0 0.0
    %1755 = vmatprep.subr.mxu0 0.0
    %1756 = vmatpush1.msra.mxu0 0.0
    %1757 = vmatprep.subr.mxu0 0.0
    %1758 = vmatpush1.msra.mxu0 0.0
    %1759 = vmatprep.subr.mxu0 0.0
    %1760 = vmatpush1.msra.mxu0 0.0
    %1761 = vmatprep.subr.mxu0 0.0
    %1762 = vmatpush1.msra.mxu0 0.0
    %1763 = vmatprep.subr.mxu0 0.0
    %1764 = vmatpush1.msra.mxu0 0.0
    %1765 = vmatprep.subr.mxu0 0.0
    %1766 = vmatpush1.msra.mxu0 0.0
    %1767 = vmatprep.subr.mxu0 0.0
    %1768 = vmatpush1.msra.mxu0 0.0
    %1769 = vmatprep.subr.mxu0 0.0
    %1770 = vmatpush1.msra.mxu0 0.0
    %1771 = vmatprep.subr.mxu0 0.0
    %1772 = vmatpush1.msra.mxu0 0.0
    %1773 = vmatprep.subr.mxu0 0.0
    %1774 = vmatpush1.msra.mxu0 0.0
    %1775 = vmatprep.subr.mxu0 0.0
    %1776 = vmatpush1.msra.mxu0 0.0
    %1777 = vmatprep.subr.mxu0 0.0
    %1778 = vmatpush1.msra.mxu0 0.0
    %1779 = vmatprep.subr.mxu0 0.0
    %1780 = vmatpush1.msra.mxu0 0.0
    %1781 = vmatprep.subr.mxu0 0.0
    %1782 = vmatpush1.msra.mxu0 0.0
    %1783 = vmatprep.subr.mxu0 0.0
    %1784 = vmatpush1.msra.mxu0 0.0
    %1785 = vmatprep.subr.mxu0 0.0
    %1786 = vmatpush1.msra.mxu0 0.0
    %1787 = vmatprep.subr.mxu0 0.0
    %1788 = vmatpush1.msra.mxu0 0.0
    %1789 = vmatprep.subr.mxu0 0.0
    %1790 = vmatpush1.msra.mxu0 0.0
    %1791 = vmatprep.subr.mxu0 0.0
    %1792 = vmatpush1.msra.mxu0 0.0
    %1793 = vmatprep.subr.mxu0 0.0
    %1794 = vmatpush1.msra.mxu0 0.0
    %1795 = vmatprep.subr.mxu0 0.0
    %1796 = vmatpush1.msra.mxu0 0.0
    %1797 = vmatprep.mubr.f32.mxu0 0.0
    %1798 = vmatmul.mubr.f32.gmra.mrb[0].mxu0 %v1731
    %v1799 = vpop.f32.mrb[0].mxu0
    %v1800 = vadd.f32 0.0, %v1799
    %v1801 = vpop.f32.mrb[0].mxu0
    %v1802 = vadd.f32 0.0, %v1801
    %1803 = vdwg.mxu0
    %v1806 = vrot.slane %v1800, 4
    %v1807 = vrot.slane %v1802, 4
    %v1810 = vadd.f32 %v302, %v1806
    %v1811 = vadd.f32 %v413, %v1807
    %v1812 = vtanh.pop %v1810
    %v1813 = vtanh.pop %v1811
    %v1814 = vmul.f32 %v1812, %v499
    %v1815 = vmul.f32 %v1813, %v503
    %v1816 = vadd.f32 %v1814, %v512
    %v1817 = vadd.f32 %v1815, %v516
    %v1819 = vrot.slane %v1573, 4
    %v1821 = vmul.f32 %v1816, %v1819
    %1823 = vrot.lane.b32.xlu0 %v1816, 64
    %v1824 = vpop.permute.xlu0 %1823
    %v1826 = vmul.f32 %v1816, %v1824
    %1828 = vrot.lane.b32.xlu0 %v1826, 32
    %v1829 = vpop.permute.xlu0 %1828
    %v1831 = vadd.f32 %v1821, %v1829
    %v1832 = vtanh.pop %v1831
    %1834 = vrot.lane.b32.xlu0 %v1832, 64
    %v1835 = vpop.permute.xlu0 %1834
    %v1837 = vmul.f32 %v1816, %v1835
    %v1839 = vrot.slane %v1593, 4
    %v1841 = vmul.f32 %v1817, %v1839
    %1843 = vrot.lane.b32.xlu0 %v1817, 64
    %v1844 = vpop.permute.xlu0 %1843
    %v1846 = vmul.f32 %v1817, %v1844
    %1848 = vrot.lane.b32.xlu0 %v1846, 32
    %v1849 = vpop.permute.xlu0 %1848
    %v1851 = vadd.f32 %v1841, %v1849
    %v1852 = vtanh.pop %v1851
    %1854 = vrot.lane.b32.xlu0 %v1852, 64
    %v1855 = vpop.permute.xlu0 %1854
    %v1857 = vmul.f32 %v1817, %v1855
    %1859 = vrot.lane.b32.xlu0 %v1837, 32
    %v1860 = vpop.permute.xlu0 %1859
    %v1863 = vrot.slane %v1708, 4
    %1864 = vrot.lane.b32.xlu0 %v1863, 64
    %v1865 = vpop.permute.xlu0 %1864
    %1868 = vrot.lane.b32.xlu0 %v1857, 96
    %v1869 = vpop.permute.xlu0 %1868
    %v1872 = vrot.slane %v1725, 4
    %v1874 = vsel %vm563, %v1860, %v1865
    %v1875 = vsel %vm416, %v1874, %v1869
    %v1876 = vsel %vm566, %v1875, %v1872
    %v1878 = vrot.slane %v1876, 4
    %1880 = vmatprep.subr.mxu0 %v155
    %1881 = vmatpush1.msra.mxu0 %v154
    %1882 = vmatprep.subr.mxu0 %v157
    %1883 = vmatpush1.msra.mxu0 %v156
    %1884 = vmatprep.subr.mxu0 %v159
    %1885 = vmatpush1.msra.mxu0 %v158
    %1886 = vmatprep.subr.mxu0 %v161
    %1887 = vmatpush1.msra.mxu0 %v160
    %1888 = vmatprep.subr.mxu0 %v163
    %1889 = vmatpush1.msra.mxu0 %v162
    %1890 = vmatprep.subr.mxu0 %v165
    %1891 = vmatpush1.msra.mxu0 %v164
    %1892 = vmatprep.subr.mxu0 %v167
    %1893 = vmatpush1.msra.mxu0 %v166
    %1894 = vmatprep.subr.mxu0 %v169
    %1895 = vmatpush1.msra.mxu0 %v168
    %1896 = vmatprep.subr.mxu0 %v171
    %1897 = vmatpush1.msra.mxu0 %v170
    %1898 = vmatprep.subr.mxu0 %v173
    %1899 = vmatpush1.msra.mxu0 %v172
    %1900 = vmatprep.subr.mxu0 %v175
    %1901 = vmatpush1.msra.mxu0 %v174
    %1902 = vmatprep.subr.mxu0 %v177
    %1903 = vmatpush1.msra.mxu0 %v176
    %1904 = vmatprep.subr.mxu0 %v179
    %1905 = vmatpush1.msra.mxu0 %v178
    %1906 = vmatprep.subr.mxu0 %v181
    %1907 = vmatpush1.msra.mxu0 %v180
    %1908 = vmatprep.subr.mxu0 %v183
    %1909 = vmatpush1.msra.mxu0 %v182
    %1910 = vmatprep.subr.mxu0 %v185
    %1911 = vmatpush1.msra.mxu0 %v184
    %1912 = vmatprep.subr.mxu0 0.0
    %1913 = vmatpush1.msra.mxu0 0.0
    %1914 = vmatprep.subr.mxu0 0.0
    %1915 = vmatpush1.msra.mxu0 0.0
    %1916 = vmatprep.subr.mxu0 0.0
    %1917 = vmatpush1.msra.mxu0 0.0
    %1918 = vmatprep.subr.mxu0 0.0
    %1919 = vmatpush1.msra.mxu0 0.0
    %1920 = vmatprep.subr.mxu0 0.0
    %1921 = vmatpush1.msra.mxu0 0.0
    %1922 = vmatprep.subr.mxu0 0.0
    %1923 = vmatpush1.msra.mxu0 0.0
    %1924 = vmatprep.subr.mxu0 0.0
    %1925 = vmatpush1.msra.mxu0 0.0
    %1926 = vmatprep.subr.mxu0 0.0
    %1927 = vmatpush1.msra.mxu0 0.0
    %1928 = vmatprep.subr.mxu0 0.0
    %1929 = vmatpush1.msra.mxu0 0.0
    %1930 = vmatprep.subr.mxu0 0.0
    %1931 = vmatpush1.msra.mxu0 0.0
    %1932 = vmatprep.subr.mxu0 0.0
    %1933 = vmatpush1.msra.mxu0 0.0
    %1934 = vmatprep.subr.mxu0 0.0
    %1935 = vmatpush1.msra.mxu0 0.0
    %1936 = vmatprep.subr.mxu0 0.0
    %1937 = vmatpush1.msra.mxu0 0.0
    %1938 = vmatprep.subr.mxu0 0.0
    %1939 = vmatpush1.msra.mxu0 0.0
    %1940 = vmatprep.subr.mxu0 0.0
    %1941 = vmatpush1.msra.mxu0 0.0
    %1942 = vmatprep.subr.mxu0 0.0
    %1943 = vmatpush1.msra.mxu0 0.0
    %1944 = vmatprep.mubr.f32.mxu0 0.0
    %1945 = vmatmul.mubr.f32.gmra.mrb[0].mxu0 %v1878
    %v1946 = vpop.f32.mrb[0].mxu0
    %v1947 = vadd.f32 %v572, %v1946
    %v1948 = vpop.f32.mrb[0].mxu0
    %v1949 = vadd.f32 %v576, %v1948
    %1950 = vdwg.mxu0
    %v1951 = vtanh.pop %v1947
    %v1952 = vtanh.pop %v1949
    %v1953 = vmul.f32 %v1951, %v499
    %v1954 = vmul.f32 %v1952, %v503
    %v1955 = vadd.f32 %v1953, %v512
    %v1956 = vadd.f32 %v1954, %v516
    %v1957 = vmul.f32 %v1955, %v1702
    %1959 = vrot.lane.b32.xlu0 %v1955, 64
    %v1960 = vpop.permute.xlu0 %1959
    %v1962 = vmul.f32 %v1955, %v1960
    %1964 = vrot.lane.b32.xlu0 %v1962, 32
    %v1965 = vpop.permute.xlu0 %1964
    %v1967 = vadd.f32 %v1957, %v1965
    %v1968 = vtanh.pop %v1967
    %1970 = vrot.lane.b32.xlu0 %v1968, 64
    %v1971 = vpop.permute.xlu0 %1970
    %v1973 = vmul.f32 %v1955, %v1971
    %v1974 = vmul.f32 %v1956, %v1719
    %1976 = vrot.lane.b32.xlu0 %v1956, 64
    %v1977 = vpop.permute.xlu0 %1976
    %v1979 = vmul.f32 %v1956, %v1977
    %1981 = vrot.lane.b32.xlu0 %v1979, 32
    %v1982 = vpop.permute.xlu0 %1981
    %v1984 = vadd.f32 %v1974, %v1982
    %v1985 = vrot.slane %v1837, 4
    %1986 = vrot.lane.b32.xlu0 %v1985, 32
    %v1987 = vpop.permute.xlu0 %1986
    %v1988 = vsel %vm563, %v1987, 0
    %1990 = vmatprep.subr.mxu0 0.0
    %1991 = vmatpush1.msra.mxu0 %v138
    %1992 = vmatprep.subr.mxu0 0.0
    %1993 = vmatpush1.msra.mxu0 %v140
    %1994 = vmatprep.subr.mxu0 0.0
    %1995 = vmatpush1.msra.mxu0 %v142
    %1996 = vmatprep.subr.mxu0 0.0
    %1997 = vmatpush1.msra.mxu0 %v144
    %1998 = vmatprep.subr.mxu0 0.0
    %1999 = vmatpush1.msra.mxu0 0.0
    %2000 = vmatprep.subr.mxu0 0.0
    %2001 = vmatpush1.msra.mxu0 0.0
    %2002 = vmatprep.subr.mxu0 0.0
    %2003 = vmatpush1.msra.mxu0 0.0
    %2004 = vmatprep.subr.mxu0 0.0
    %2005 = vmatpush1.msra.mxu0 0.0
    %2006 = vmatprep.subr.mxu0 0.0
    %2007 = vmatpush1.msra.mxu0 0.0
    %2008 = vmatprep.subr.mxu0 0.0
    %2009 = vmatpush1.msra.mxu0 0.0
    %2010 = vmatprep.subr.mxu0 0.0
    %2011 = vmatpush1.msra.mxu0 0.0
    %2012 = vmatprep.subr.mxu0 0.0
    %2013 = vmatpush1.msra.mxu0 0.0
    %2014 = vmatprep.subr.mxu0 0.0
    %2015 = vmatpush1.msra.mxu0 0.0
    %2016 = vmatprep.subr.mxu0 0.0
    %2017 = vmatpush1.msra.mxu0 0.0
    %2018 = vmatprep.subr.mxu0 0.0
    %2019 = vmatpush1.msra.mxu0 0.0
    %2020 = vmatprep.subr.mxu0 0.0
    %2021 = vmatpush1.msra.mxu0 0.0
    %2022 = vmatprep.subr.mxu0 0.0
    %2023 = vmatpush1.msra.mxu0 0.0
    %2024 = vmatprep.subr.mxu0 0.0
    %2025 = vmatpush1.msra.mxu0 0.0
    %2026 = vmatprep.subr.mxu0 0.0
    %2027 = vmatpush1.msra.mxu0 0.0
    %2028 = vmatprep.subr.mxu0 0.0
    %2029 = vmatpush1.msra.mxu0 0.0
    %2030 = vmatprep.subr.mxu0 0.0
    %2031 = vmatpush1.msra.mxu0 0.0
    %2032 = vmatprep.subr.mxu0 0.0
    %2033 = vmatpush1.msra.mxu0 0.0
    %2034 = vmatprep.subr.mxu0 0.0
    %2035 = vmatpush1.msra.mxu0 0.0
    %2036 = vmatprep.subr.mxu0 0.0
    %2037 = vmatpush1.msra.mxu0 0.0
    %2038 = vmatprep.subr.mxu0 0.0
    %2039 = vmatpush1.msra.mxu0 0.0
    %2040 = vmatprep.subr.mxu0 0.0
    %2041 = vmatpush1.msra.mxu0 0.0
    %2042 = vmatprep.subr.mxu0 0.0
    %2043 = vmatpush1.msra.mxu0 0.0
    %2044 = vmatprep.subr.mxu0 0.0
    %2045 = vmatpush1.msra.mxu0 0.0
    %2046 = vmatprep.subr.mxu0 0.0
    %2047 = vmatpush1.msra.mxu0 0.0
    %2048 = vmatprep.subr.mxu0 0.0
    %2049 = vmatpush1.msra.mxu0 0.0
    %2050 = vmatprep.subr.mxu0 0.0
    %2051 = vmatpush1.msra.mxu0 0.0
    %2052 = vmatprep.subr.mxu0 0.0
    %2053 = vmatpush1.msra.mxu0 0.0
    %2054 = vmatprep.mubr.f32.mxu0 0.0
    %2055 = vmatmul.mubr.f32.gmra.mrb[0].mxu0 %v1988
    %v2056 = vpop.f32.mrb[0].mxu0
    %v2057 = vadd.f32 0.0, %v2056
    %v2058 = vpop.f32.mrb[0].mxu0
    %2059 = vdwg.mxu0
    %v2060 = vadd.f32 %v307, %v2057
    %v2061 = vtanh.pop %v2060
    %v2062 = vmul.f32 %v2061, %v499
    %v2063 = vadd.f32 %v2062, %v512
    %v2065 = vrot.slane %v1831, 4
    %v2067 = vmul.f32 %v2063, %v2065
    %2069 = vrot.lane.b32.xlu0 %v2063, 64
    %v2070 = vpop.permute.xlu0 %2069
    %v2072 = vmul.f32 %v2063, %v2070
    %2074 = vrot.lane.b32.xlu0 %v2072, 32
    %v2075 = vpop.permute.xlu0 %2074
    %v2077 = vadd.f32 %v2067, %v2075
    %v2078 = vtanh.pop %v2077
    %2080 = vrot.lane.b32.xlu0 %v2078, 64
    %v2081 = vpop.permute.xlu0 %2080
    %v2083 = vmul.f32 %v2063, %v2081
    %2085 = vrot.lane.b32.xlu0 %v2083, 32
    %v2086 = vpop.permute.xlu0 %2085
    %2089 = vrot.lane.b32.xlu0 %v1973, 64
    %v2090 = vpop.permute.xlu0 %2089
    %v2092 = vsel %vm563, %v2086, %v2090
    %v2094 = vsel %vm416, %v2092, 0
    %2096 = vmatprep.subr.mxu0 0.0
    %2097 = vmatpush1.msra.mxu0 %v154
    %2098 = vmatprep.subr.mxu0 0.0
    %2099 = vmatpush1.msra.mxu0 %v156
    %2100 = vmatprep.subr.mxu0 0.0
    %2101 = vmatpush1.msra.mxu0 %v158
    %2102 = vmatprep.subr.mxu0 0.0
    %2103 = vmatpush1.msra.mxu0 %v160
    %2104 = vmatprep.subr.mxu0 0.0
    %2105 = vmatpush1.msra.mxu0 %v162
    %2106 = vmatprep.subr.mxu0 0.0
    %2107 = vmatpush1.msra.mxu0 %v164
    %2108 = vmatprep.subr.mxu0 0.0
    %2109 = vmatpush1.msra.mxu0 %v166
    %2110 = vmatprep.subr.mxu0 0.0
    %2111 = vmatpush1.msra.mxu0 %v168
    %2112 = vmatprep.subr.mxu0 0.0
    %2113 = vmatpush1.msra.mxu0 0.0
    %2114 = vmatprep.subr.mxu0 0.0
    %2115 = vmatpush1.msra.mxu0 0.0
    %2116 = vmatprep.subr.mxu0 0.0
    %2117 = vmatpush1.msra.mxu0 0.0
    %2118 = vmatprep.subr.mxu0 0.0
    %2119 = vmatpush1.msra.mxu0 0.0
    %2120 = vmatprep.subr.mxu0 0.0
    %2121 = vmatpush1.msra.mxu0 0.0
    %2122 = vmatprep.subr.mxu0 0.0
    %2123 = vmatpush1.msra.mxu0 0.0
    %2124 = vmatprep.subr.mxu0 0.0
    %2125 = vmatpush1.msra.mxu0 0.0
    %2126 = vmatprep.subr.mxu0 0.0
    %2127 = vmatpush1.msra.mxu0 0.0
    %2128 = vmatprep.subr.mxu0 0.0
    %2129 = vmatpush1.msra.mxu0 0.0
    %2130 = vmatprep.subr.mxu0 0.0
    %2131 = vmatpush1.msra.mxu0 0.0
    %2132 = vmatprep.subr.mxu0 0.0
    %2133 = vmatpush1.msra.mxu0 0.0
    %2134 = vmatprep.subr.mxu0 0.0
    %2135 = vmatpush1.msra.mxu0 0.0
    %2136 = vmatprep.subr.mxu0 0.0
    %2137 = vmatpush1.msra.mxu0 0.0
    %2138 = vmatprep.subr.mxu0 0.0
    %2139 = vmatpush1.msra.mxu0 0.0
    %2140 = vmatprep.subr.mxu0 0.0
    %2141 = vmatpush1.msra.mxu0 0.0
    %2142 = vmatprep.subr.mxu0 0.0
    %2143 = vmatpush1.msra.mxu0 0.0
    %2144 = vmatprep.subr.mxu0 0.0
    %2145 = vmatpush1.msra.mxu0 0.0
    %2146 = vmatprep.subr.mxu0 0.0
    %2147 = vmatpush1.msra.mxu0 0.0
    %2148 = vmatprep.subr.mxu0 0.0
    %2149 = vmatpush1.msra.mxu0 0.0
    %2150 = vmatprep.subr.mxu0 0.0
    %2151 = vmatpush1.msra.mxu0 0.0
    %2152 = vmatprep.subr.mxu0 0.0
    %2153 = vmatpush1.msra.mxu0 0.0
    %2154 = vmatprep.subr.mxu0 0.0
    %2155 = vmatpush1.msra.mxu0 0.0
    %2156 = vmatprep.subr.mxu0 0.0
    %2157 = vmatpush1.msra.mxu0 0.0
    %2158 = vmatprep.subr.mxu0 0.0
    %2159 = vmatpush1.msra.mxu0 0.0
    %2160 = vmatprep.mubr.f32.mxu0 0.0
    %2161 = vmatmul.mubr.f32.gmra.mrb[0].mxu0 %v2094
    %v2162 = vpop.f32.mrb[0].mxu0
    %v2163 = vadd.f32 %v572, %v2162
    %v2164 = vpop.f32.mrb[0].mxu0
    %2165 = vdwg.mxu0
    %v2166 = vtanh.pop %v2163
    %v2167 = vmul.f32 %v2166, %v499
    %v2168 = vadd.f32 %v2167, %v512
    %v2169 = vmul.f32 %v2168, %v1967
    %2171 = vrot.lane.b32.xlu0 %v2168, 64
    %v2172 = vpop.permute.xlu0 %2171
    %v2174 = vmul.f32 %v2168, %v2172
    %2176 = vrot.lane.b32.xlu0 %v2174, 32
    %v2177 = vpop.permute.xlu0 %2176
    %v2179 = vadd.f32 %v2169, %v2177
    %v2180 = vtanh.pop %v2179
    %2182 = vrot.lane.b32.xlu0 %v2180, 64
    %v2183 = vpop.permute.xlu0 %2182
    %v2185 = vmul.f32 %v2168, %v2183
    %v2186 = vsel %vm563, %v2086, 0
    %2188 = vmatprep.subr.mxu0 0.0
    %2189 = vmatpush1.msra.mxu0 %v138
    %2190 = vmatprep.subr.mxu0 0.0
    %2191 = vmatpush1.msra.mxu0 %v140
    %2192 = vmatprep.subr.mxu0 0.0
    %2193 = vmatpush1.msra.mxu0 %v142
    %2194 = vmatprep.subr.mxu0 0.0
    %2195 = vmatpush1.msra.mxu0 %v144
    %2196 = vmatprep.subr.mxu0 0.0
    %2197 = vmatpush1.msra.mxu0 0.0
    %2198 = vmatprep.subr.mxu0 0.0
    %2199 = vmatpush1.msra.mxu0 0.0
    %2200 = vmatprep.subr.mxu0 0.0
    %2201 = vmatpush1.msra.mxu0 0.0
    %2202 = vmatprep.subr.mxu0 0.0
    %2203 = vmatpush1.msra.mxu0 0.0
    %2204 = vmatprep.subr.mxu0 0.0
    %2205 = vmatpush1.msra.mxu0 0.0
    %2206 = vmatprep.subr.mxu0 0.0
    %2207 = vmatpush1.msra.mxu0 0.0
    %2208 = vmatprep.subr.mxu0 0.0
    %2209 = vmatpush1.msra.mxu0 0.0
    %2210 = vmatprep.subr.mxu0 0.0
    %2211 = vmatpush1.msra.mxu0 0.0
    %2212 = vmatprep.subr.mxu0 0.0
    %2213 = vmatpush1.msra.mxu0 0.0
    %2214 = vmatprep.subr.mxu0 0.0
    %2215 = vmatpush1.msra.mxu0 0.0
    %2216 = vmatprep.subr.mxu0 0.0
    %2217 = vmatpush1.msra.mxu0 0.0
    %2218 = vmatprep.subr.mxu0 0.0
    %2219 = vmatpush1.msra.mxu0 0.0
    %2220 = vmatprep.subr.mxu0 0.0
    %2221 = vmatpush1.msra.mxu0 0.0
    %2222 = vmatprep.subr.mxu0 0.0
    %2223 = vmatpush1.msra.mxu0 0.0
    %2224 = vmatprep.subr.mxu0 0.0
    %2225 = vmatpush1.msra.mxu0 0.0
    %2226 = vmatprep.subr.mxu0 0.0
    %2227 = vmatpush1.msra.mxu0 0.0
    %2228 = vmatprep.subr.mxu0 0.0
    %2229 = vmatpush1.msra.mxu0 0.0
    %2230 = vmatprep.subr.mxu0 0.0
    %2231 = vmatpush1.msra.mxu0 0.0
    %2232 = vmatprep.subr.mxu0 0.0
    %2233 = vmatpush1.msra.mxu0 0.0
    %2234 = vmatprep.subr.mxu0 0.0
    %2235 = vmatpush1.msra.mxu0 0.0
    %2236 = vmatprep.subr.mxu0 0.0
    %2237 = vmatpush1.msra.mxu0 0.0
    %2238 = vmatprep.subr.mxu0 0.0
    %2239 = vmatpush1.msra.mxu0 0.0
    %2240 = vmatprep.subr.mxu0 0.0
    %2241 = vmatpush1.msra.mxu0 0.0
    %2242 = vmatprep.subr.mxu0 0.0
    %2243 = vmatpush1.msra.mxu0 0.0
    %2244 = vmatprep.subr.mxu0 0.0
    %2245 = vmatpush1.msra.mxu0 0.0
    %2246 = vmatprep.subr.mxu0 0.0
    %2247 = vmatpush1.msra.mxu0 0.0
    %2248 = vmatprep.subr.mxu0 0.0
    %2249 = vmatpush1.msra.mxu0 0.0
    %2250 = vmatprep.subr.mxu0 0.0
    %2251 = vmatpush1.msra.mxu0 0.0
    %2252 = vmatprep.mubr.f32.mxu0 0.0
    %2253 = vmatmul.mubr.f32.gmra.mrb[0].mxu0 %v2186
    %v2254 = vpop.f32.mrb[0].mxu0
    %v2255 = vadd.f32 0.0, %v2254
    %v2256 = vpop.f32.mrb[0].mxu0
    %2257 = vdwg.mxu0
    %v2259 = vrot.slane %v2255, 4
    %v2261 = vadd.f32 %v307, %v2259
    %v2262 = vtanh.pop %v2261
    %v2263 = vmul.f32 %v2262, %v499
    %v2264 = vadd.f32 %v2263, %v512
    %v2266 = vrot.slane %v2077, 4
    %v2268 = vmul.f32 %v2264, %v2266
    %2270 = vrot.lane.b32.xlu0 %v2264, 64
    %v2271 = vpop.permute.xlu0 %2270
    %v2273 = vmul.f32 %v2264, %v2271
    %2275 = vrot.lane.b32.xlu0 %v2273, 32
    %v2276 = vpop.permute.xlu0 %2275
    %v2278 = vadd.f32 %v2268, %v2276
    %v2279 = vtanh.pop %v2278
    %2281 = vrot.lane.b32.xlu0 %v2279, 64
    %v2282 = vpop.permute.xlu0 %2281
    %v2284 = vmul.f32 %v2264, %v2282
    %2286 = vrot.lane.b32.xlu0 %v2284, 32
    %v2287 = vpop.permute.xlu0 %2286
    %v2290 = vrot.slane %v2185, 4
    %2291 = vrot.lane.b32.xlu0 %v2290, 64
    %v2292 = vpop.permute.xlu0 %2291
    %v2294 = vsel %vm563, %v2287, %v2292
    %v2296 = vrot.slane %v2294, 4
    %v2297 = vsel %vm416, %v2296, 0
    %2299 = vmatprep.subr.mxu0 0.0
    %2300 = vmatpush1.msra.mxu0 %v154
    %2301 = vmatprep.subr.mxu0 0.0
    %2302 = vmatpush1.msra.mxu0 %v156
    %2303 = vmatprep.subr.mxu0 0.0
    %2304 = vmatpush1.msra.mxu0 %v158
    %2305 = vmatprep.subr.mxu0 0.0
    %2306 = vmatpush1.msra.mxu0 %v160
    %2307 = vmatprep.subr.mxu0 0.0
    %2308 = vmatpush1.msra.mxu0 %v162
    %2309 = vmatprep.subr.mxu0 0.0
    %2310 = vmatpush1.msra.mxu0 %v164
    %2311 = vmatprep.subr.mxu0 0.0
    %2312 = vmatpush1.msra.mxu0 %v166
    %2313 = vmatprep.subr.mxu0 0.0
    %2314 = vmatpush1.msra.mxu0 %v168
    %2315 = vmatprep.subr.mxu0 0.0
    %2316 = vmatpush1.msra.mxu0 0.0
    %2317 = vmatprep.subr.mxu0 0.0
    %2318 = vmatpush1.msra.mxu0 0.0
    %2319 = vmatprep.subr.mxu0 0.0
    %2320 = vmatpush1.msra.mxu0 0.0
    %2321 = vmatprep.subr.mxu0 0.0
    %2322 = vmatpush1.msra.mxu0 0.0
    %2323 = vmatprep.subr.mxu0 0.0
    %2324 = vmatpush1.msra.mxu0 0.0
    %2325 = vmatprep.subr.mxu0 0.0
    %2326 = vmatpush1.msra.mxu0 0.0
    %2327 = vmatprep.subr.mxu0 0.0
    %2328 = vmatpush1.msra.mxu0 0.0
    %2329 = vmatprep.subr.mxu0 0.0
    %2330 = vmatpush1.msra.mxu0 0.0
    %2331 = vmatprep.subr.mxu0 0.0
    %2332 = vmatpush1.msra.mxu0 0.0
    %2333 = vmatprep.subr.mxu0 0.0
    %2334 = vmatpush1.msra.mxu0 0.0
    %2335 = vmatprep.subr.mxu0 0.0
    %2336 = vmatpush1.msra.mxu0 0.0
    %2337 = vmatprep.subr.mxu0 0.0
    %2338 = vmatpush1.msra.mxu0 0.0
    %2339 = vmatprep.subr.mxu0 0.0
    %2340 = vmatpush1.msra.mxu0 0.0
    %2341 = vmatprep.subr.mxu0 0.0
    %2342 = vmatpush1.msra.mxu0 0.0
    %2343 = vmatprep.subr.mxu0 0.0
    %2344 = vmatpush1.msra.mxu0 0.0
    %2345 = vmatprep.subr.mxu0 0.0
    %2346 = vmatpush1.msra.mxu0 0.0
    %2347 = vmatprep.subr.mxu0 0.0
    %2348 = vmatpush1.msra.mxu0 0.0
    %2349 = vmatprep.subr.mxu0 0.0
    %2350 = vmatpush1.msra.mxu0 0.0
    %2351 = vmatprep.subr.mxu0 0.0
    %2352 = vmatpush1.msra.mxu0 0.0
    %2353 = vmatprep.subr.mxu0 0.0
    %2354 = vmatpush1.msra.mxu0 0.0
    %2355 = vmatprep.subr.mxu0 0.0
    %2356 = vmatpush1.msra.mxu0 0.0
    %2357 = vmatprep.subr.mxu0 0.0
    %2358 = vmatpush1.msra.mxu0 0.0
    %2359 = vmatprep.subr.mxu0 0.0
    %2360 = vmatpush1.msra.mxu0 0.0
    %2361 = vmatprep.subr.mxu0 0.0
    %2362 = vmatpush1.msra.mxu0 0.0
    %2363 = vmatprep.mubr.f32.mxu0 0.0
    %2364 = vmatmul.mubr.f32.gmra.mrb[0].mxu0 %v2297
    %v2365 = vpop.f32.mrb[0].mxu0
    %v2366 = vadd.f32 %v572, %v2365
    %v2367 = vpop.f32.mrb[0].mxu0
    %2368 = vdwg.mxu0
    %v2369 = vtanh.pop %v2366
    %v2370 = vmul.f32 %v2369, %v499
    %v2371 = vadd.f32 %v2370, %v512
    %v2372 = vmul.f32 %v2371, %v2179
    %2374 = vrot.lane.b32.xlu0 %v2371, 64
    %v2375 = vpop.permute.xlu0 %2374
    %v2377 = vmul.f32 %v2371, %v2375
    %2379 = vrot.lane.b32.xlu0 %v2377, 32
    %v2380 = vpop.permute.xlu0 %2379
    %v2382 = vadd.f32 %v2372, %v2380
    %2384 = vrot.lane.b32.xlu0 %v2382, 96
    %v2385 = vpop.permute.xlu0 %2384
    %v2387 = vsel %vm563, %v2385, %v1984
    %v2389 = vlaneseq
    %v2390 = vshrl.u32 %v2389, 7
    %v2391 = vsub.s32 0, %v2390
    %v2392 = vrot.slane %v197, %v2391
    %v2395 = vsel %vm416, %v2387, 0
    %2397 = vmatprep.subr.mxu0 0.0
    %2398 = vmatpush1.msra.mxu0 %v189
    %2399 = vmatprep.subr.mxu0 0.0
    %2400 = vmatpush1.msra.mxu0 %v190
    %2401 = vmatprep.subr.mxu0 0.0
    %2402 = vmatpush1.msra.mxu0 %v191
    %2403 = vmatprep.subr.mxu0 0.0
    %2404 = vmatpush1.msra.mxu0 %v192
    %2405 = vmatprep.subr.mxu0 0.0
    %2406 = vmatpush1.msra.mxu0 %v193
    %2407 = vmatprep.subr.mxu0 0.0
    %2408 = vmatpush1.msra.mxu0 %v194
    %2409 = vmatprep.subr.mxu0 0.0
    %2410 = vmatpush1.msra.mxu0 %v195
    %2411 = vmatprep.subr.mxu0 0.0
    %2412 = vmatpush1.msra.mxu0 %v196
    %2413 = vmatprep.subr.mxu0 0.0
    %2414 = vmatpush1.msra.mxu0 0.0
    %2415 = vmatprep.subr.mxu0 0.0
    %2416 = vmatpush1.msra.mxu0 0.0
    %2417 = vmatprep.subr.mxu0 0.0
    %2418 = vmatpush1.msra.mxu0 0.0
    %2419 = vmatprep.subr.mxu0 0.0
    %2420 = vmatpush1.msra.mxu0 0.0
    %2421 = vmatprep.subr.mxu0 0.0
    %2422 = vmatpush1.msra.mxu0 0.0
    %2423 = vmatprep.subr.mxu0 0.0
    %2424 = vmatpush1.msra.mxu0 0.0
    %2425 = vmatprep.subr.mxu0 0.0
    %2426 = vmatpush1.msra.mxu0 0.0
    %2427 = vmatprep.subr.mxu0 0.0
    %2428 = vmatpush1.msra.mxu0 0.0
    %2429 = vmatprep.subr.mxu0 0.0
    %2430 = vmatpush1.msra.mxu0 0.0
    %2431 = vmatprep.subr.mxu0 0.0
    %2432 = vmatpush1.msra.mxu0 0.0
    %2433 = vmatprep.subr.mxu0 0.0
    %2434 = vmatpush1.msra.mxu0 0.0
    %2435 = vmatprep.subr.mxu0 0.0
    %2436 = vmatpush1.msra.mxu0 0.0
    %2437 = vmatprep.subr.mxu0 0.0
    %2438 = vmatpush1.msra.mxu0 0.0
    %2439 = vmatprep.subr.mxu0 0.0
    %2440 = vmatpush1.msra.mxu0 0.0
    %2441 = vmatprep.subr.mxu0 0.0
    %2442 = vmatpush1.msra.mxu0 0.0
    %2443 = vmatprep.subr.mxu0 0.0
    %2444 = vmatpush1.msra.mxu0 0.0
    %2445 = vmatprep.subr.mxu0 0.0
    %2446 = vmatpush1.msra.mxu0 0.0
    %2447 = vmatprep.subr.mxu0 0.0
    %2448 = vmatpush1.msra.mxu0 0.0
    %2449 = vmatprep.subr.mxu0 0.0
    %2450 = vmatpush1.msra.mxu0 0.0
    %2451 = vmatprep.subr.mxu0 0.0
    %2452 = vmatpush1.msra.mxu0 0.0
    %2453 = vmatprep.subr.mxu0 0.0
    %2454 = vmatpush1.msra.mxu0 0.0
    %2455 = vmatprep.subr.mxu0 0.0
    %2456 = vmatpush1.msra.mxu0 0.0
    %2457 = vmatprep.subr.mxu0 0.0
    %2458 = vmatpush1.msra.mxu0 0.0
    %2459 = vmatprep.subr.mxu0 0.0
    %2460 = vmatpush1.msra.mxu0 0.0
    %2461 = vmatprep.mubr.f32.mxu0 0.0
    %2462 = vmatmul.mubr.f32.gmra.mrb[0].mxu0 %v2395
    %v2463 = vpop.f32.mrb[0].mxu0
    %v2464 = vadd.f32 %v2392, %v2463
    %v2465 = vpop.f32.mrb[0].mxu0
    %2466 = vdwg.mxu0
    %vm2467 = vcmask 76800
    %2468 = vst.msk [vmem:[#allocation13] sm:$0xf] %vm2467, %v2464
    // Predicated region
    $region78: #{forward.1} parent=1 // pred_check
      _
    $region79: #{forward.1} parent=1 // pred_check_branch
      %2470 = sbr.rel (0) target = $region81
    $region80: #{forward.1} parent=1 // pred_region
      %s2472 = ssub.s32 64, 64
      %2473 = vsyncadd [#allocation4], %s2472
      %s2475 = sshll.u32 [#allocation13], 4
      %s2476 = int_to_ptr.vmem [resolvable:$true] %s2475
      %2478 = dma.vmem_to_hbm [thread:$0]  %s2476, 64, %s13, [#allocation4]
    $region81: #{forward.1} parent=1 // pred_fallthru
      _
    // Predicated region
    $region82: #{forward.1} parent=1 // pred_check
      _
    $region83: #{forward.1} parent=1 // pred_check_branch
      %2480 = sbr.rel (0) target = $region85
    $region84: #{forward.1} parent=1 // pred_region
      %2481 = dma.done [#allocation4], 64
    $region85: #{forward.1} parent=1 // pred_fallthru
      _
    %2482 = vsyncpa [#allocation3], 1
    %2483 = vsyncpa [#allocation6], 1
    %2484 = vsyncpa [#allocation9], 1
    %2485 = vsyncpa [#allocation12], 1
    %2486 = vsyncpa [#allocation4], 1

</llo_original>
